<compile_context>
chip_gen: v6e
topology: v6e:2x2x1
jax: 0.10.0
libtpu: 0.0.40
codegen_flags: <defaults>
</compile_context>

<pallas_src>
import functools

import jax
import jax.numpy as jnp
from jax import lax
from jax.experimental import pallas as pl
from jax.experimental.pallas import tpu as pltpu


_VMEM_LIMIT = 48 * 1024 * 1024      # scoped VMEM ceiling for the fused kernels
_FUSE_BYTES = 16 * 1024 * 1024      # fuse a full MLP only if its params fit this


# ----------------------------------------------------------------------------
# Epilogues (applied to full output rows, which stay whole in every block)
# ----------------------------------------------------------------------------
def _apply_epilogue(y, epilogue):
    if epilogue == "relu":                       # nn.ReLU()
        y = jnp.maximum(y, 0.0)
    elif epilogue == "softmax":                  # nn.Softmax(dim=1)
        y = y - jnp.max(y, axis=1, keepdims=True)
        e = jnp.exp(y)
        y = e / jnp.sum(e, axis=1, keepdims=True)
    elif epilogue == "l2norm":                   # F.normalize(., dim=1)
        nrm = jnp.sqrt(jnp.sum(y * y, axis=1, keepdims=True))
        y = y / jnp.maximum(nrm, 1e-12)
    return y                                     # "none": plain affine layer


# ----------------------------------------------------------------------------
# Kernel 1: single fused Linear (+ epilogue)  -- fallback / standalone layer
# ----------------------------------------------------------------------------
def _fused_linear_kernel(x_ref, w_ref, b_ref, o_ref, *, epilogue):
    y = jnp.dot(x_ref[...], w_ref[...], preferred_element_type=jnp.float32)
    y = y + b_ref[...]
    o_ref[...] = _apply_epilogue(y, epilogue).astype(o_ref.dtype)


def fused_linear(x, w, b, epilogue="none", *, block_m=256):
    m, k = x.shape
    k2, n = w.shape
    assert k == k2 and b.shape == (n,)

    tm = m if m <= block_m else block_m
    pad = (-m) % tm
    xp = jnp.pad(x, ((0, pad), (0, 0))) if pad else x
    mp = xp.shape[0]

    out = pl.pallas_call(
        functools.partial(_fused_linear_kernel, epilogue=epilogue),
        out_shape=jax.ShapeDtypeStruct((mp, n), jnp.float32),
        grid=(mp // tm,),
        in_specs=[
            pl.BlockSpec((tm, k), lambda i: (i, 0)),   # activations: row tile
            pl.BlockSpec((k, n), lambda i: (0, 0)),    # weights: VMEM resident
            pl.BlockSpec((1, n), lambda i: (0, 0)),    # bias: VMEM resident
        ],
        out_specs=pl.BlockSpec((tm, n), lambda i: (i, 0)),
        compiler_params=pltpu.CompilerParams(
            dimension_semantics=("parallel",),
            vmem_limit_bytes=_VMEM_LIMIT,
        ),
    )(xp.astype(jnp.float32), w.astype(jnp.float32),
      b.reshape(1, n).astype(jnp.float32))
    return out[:m]


# ----------------------------------------------------------------------------
# Kernel 2: fully fused MLP stack (Encoder / Decoder) in one pallas_call
# ----------------------------------------------------------------------------
def _fused_mlp_kernel(*refs, n_layers, final_epilogue):
    x_ref, o_ref = refs[0], refs[-1]
    wb = refs[1:-1]                               # (w0, b0, w1, b1, ...)
    y = x_ref[...]
    for i in range(n_layers):
        y = jnp.dot(y, wb[2 * i][...], preferred_element_type=jnp.float32)
        y = y + wb[2 * i + 1][...]
        if i < n_layers - 1:                      # inter-layer ReLU
            y = jnp.maximum(y, 0.0)
    o_ref[...] = _apply_epilogue(y, final_epilogue).astype(o_ref.dtype)


def _params_bytes(layers):
    return sum((w.size + b.size) * 4 for (w, b) in layers)


def fused_mlp(x, layers, final_epilogue="none", *, block_m=128):
    """epilogue(LN(...ReLU(L1(x))...)) with all layers fused in one kernel."""
    if _params_bytes(layers) > _FUSE_BYTES:
        # Too big to keep every weight resident in VMEM -> per-layer fallback.
        for i, (w, b) in enumerate(layers):
            epi = "relu" if i < len(layers) - 1 else final_epilogue
            x = fused_linear(x, w, b, epilogue=epi)
        return x

    m, k = x.shape
    n_out = layers[-1][0].shape[1]

    tm = m if m <= block_m else block_m
    pad = (-m) % tm
    xp = jnp.pad(x, ((0, pad), (0, 0))) if pad else x
    mp = xp.shape[0]

    in_specs = [pl.BlockSpec((tm, k), lambda i: (i, 0))]
    args = [xp.astype(jnp.float32)]
    for (w, b) in layers:
        ki, ni = w.shape
        in_specs.append(pl.BlockSpec((ki, ni), lambda i: (0, 0)))   # resident W
        in_specs.append(pl.BlockSpec((1, ni), lambda i: (0, 0)))    # resident b
        args.append(w.astype(jnp.float32))
        args.append(b.reshape(1, ni).astype(jnp.float32))

    out = pl.pallas_call(
        functools.partial(_fused_mlp_kernel, n_layers=len(layers),
                          final_epilogue=final_epilogue),
        out_shape=jax.ShapeDtypeStruct((mp, n_out), jnp.float32),
        grid=(mp // tm,),
        in_specs=in_specs,
        out_specs=pl.BlockSpec((tm, n_out), lambda i: (i, 0)),
        compiler_params=pltpu.CompilerParams(
            dimension_semantics=("parallel",),
            vmem_limit_bytes=_VMEM_LIMIT,
        ),
    )(*args)
    return out[:m]


# ----------------------------------------------------------------------------
# Kernel 3: fused dual contrastive head  z -> (normalize(zWf+bf), softmax(zWl+bl))
# ----------------------------------------------------------------------------
def _dual_head_kernel(z_ref, wf_ref, bf_ref, wl_ref, bl_ref, h_ref, q_ref):
    z = z_ref[...]
    # feature_contrastive_module + F.normalize(dim=1)
    hp = jnp.dot(z, wf_ref[...], preferred_element_type=jnp.float32) + bf_ref[...]
    nrm = jnp.sqrt(jnp.sum(hp * hp, axis=1, keepdims=True))
    h_ref[...] = (hp / jnp.maximum(nrm, 1e-12)).astype(h_ref.dtype)
    # label_contrastive_module: Linear + Softmax(dim=1)
    qp = jnp.dot(z, wl_ref[...], preferred_element_type=jnp.float32) + bl_ref[...]
    qp = qp - jnp.max(qp, axis=1, keepdims=True)
    e = jnp.exp(qp)
    q_ref[...] = (e / jnp.sum(e, axis=1, keepdims=True)).astype(q_ref.dtype)


def fused_dual_head(z, wf, bf, wl, bl, *, block_m=256):
    m, k = z.shape
    nf, nl = wf.shape[1], wl.shape[1]

    tm = m if m <= block_m else block_m
    pad = (-m) % tm
    zp = jnp.pad(z, ((0, pad), (0, 0))) if pad else z
    mp = zp.shape[0]

    h, q = pl.pallas_call(
        _dual_head_kernel,
        out_shape=(jax.ShapeDtypeStruct((mp, nf), jnp.float32),
                   jax.ShapeDtypeStruct((mp, nl), jnp.float32)),
        grid=(mp // tm,),
        in_specs=[
            pl.BlockSpec((tm, k), lambda i: (i, 0)),
            pl.BlockSpec((k, nf), lambda i: (0, 0)),
            pl.BlockSpec((1, nf), lambda i: (0, 0)),
            pl.BlockSpec((k, nl), lambda i: (0, 0)),
            pl.BlockSpec((1, nl), lambda i: (0, 0)),
        ],
        out_specs=[
            pl.BlockSpec((tm, nf), lambda i: (i, 0)),
            pl.BlockSpec((tm, nl), lambda i: (i, 0)),
        ],
        compiler_params=pltpu.CompilerParams(
            dimension_semantics=("parallel",),
            vmem_limit_bytes=_VMEM_LIMIT,
        ),
    )(zp.astype(jnp.float32), wf.astype(jnp.float32),
      bf.reshape(1, nf).astype(jnp.float32), wl.astype(jnp.float32),
      bl.reshape(1, nl).astype(jnp.float32))
    return h[:m], q[:m]


# ----------------------------------------------------------------------------
# Network parameters (PyTorch nn.Linear-style init) and forward pass
# ----------------------------------------------------------------------------
HIDDEN_ENC = (500, 500, 2000)   # Encoder: in -> 500 -> 500 -> 2000 -> feature_dim
HIDDEN_DEC = (2000, 500, 500)   # Decoder: feature_dim -> 2000 -> 500 -> 500 -> in


def _init_linear(key, in_dim, out_dim):
    kw, kb = jax.random.split(key)
    bound = float(in_dim) ** -0.5
    w = jax.random.uniform(kw, (in_dim, out_dim), jnp.float32, -bound, bound)
    b = jax.random.uniform(kb, (out_dim,), jnp.float32, -bound, bound)
    return w, b


def _init_mlp(key, dims):
    keys = jax.random.split(key, len(dims) - 1)
    return [_init_linear(keys[i], dims[i], dims[i + 1]) for i in range(len(dims) - 1)]


def init_network_params(key, view, input_size, feature_dim, high_feature_dim, class_num):
    keys = jax.random.split(key, 2 * view + 2)
    params = {"encoders": [], "decoders": []}
    for v in range(view):
        params["encoders"].append(
            _init_mlp(keys[v], (input_size[v],) + HIDDEN_ENC + (feature_dim,)))
        params["decoders"].append(
            _init_mlp(keys[view + v], (feature_dim,) + HIDDEN_DEC + (input_size[v],)))
    params["feature_contrastive"] = _init_linear(keys[2 * view], feature_dim, high_feature_dim)
    params["label_contrastive"] = _init_linear(keys[2 * view + 1], feature_dim, class_num)
    return params


def network_forward(params, xs):
    """Pallas implementation of Network.forward: returns (hs, qs, xrs, zs)."""
    hs, qs, xrs, zs = [], [], [], []
    wf, bf = params["feature_contrastive"]
    wl, bl = params["label_contrastive"]
    for v in range(len(xs)):
        z = fused_mlp(xs[v], params["encoders"][v])          # Encoder (1 kernel)
        h, q = fused_dual_head(z, wf, bf, wl, bl)            # both heads (1 kernel)
        xr = fused_mlp(z, params["decoders"][v])             # Decoder (1 kernel)
        hs.append(h)
        zs.append(z)
        qs.append(q)
        xrs.append(xr)
    return hs, qs, xrs, zs


# ----------------------------------------------------------------------------
# Pure-JAX reference (transcription of the PyTorch forward) for validation
# ----------------------------------------------------------------------------
def _reference_forward(params, xs):
    def linear(x, wb):
        w, b = wb
        return jnp.dot(x, w, precision=lax.Precision.HIGHEST) + b

    def mlp(layers, x):
        for i, wb in enumerate(layers):
            x = linear(x, wb)
            if i < len(layers) - 1:
                x = jax.nn.relu(x)
        return x

    hs, qs, xrs, zs = [], [], [], []
    for v in range(len(xs)):
        z = mlp(params["encoders"][v], xs[v])
        hp = linear(z, params["feature_contrastive"])
        h = hp / jnp.maximum(jnp.linalg.norm(hp, axis=1, keepdims=True), 1e-12)
        q = jax.nn.softmax(linear(z, params["label_contrastive"]), axis=1)
        xr = mlp(params["decoders"][v], z)
        hs.append(h)
        zs.append(z)
        qs.append(q)
        xrs.append(xr)
    return hs, qs, xrs, zs


if __name__ == "__main__":
    key = jax.random.PRNGKey(0)

    view = 2
    input_size = [64, 80]
    feature_dim = 32
    high_feature_dim = 16
    class_num = 5
    batch = 8

    kp, kx = jax.random.split(key)
    params = init_network_params(kp, view, input_size, feature_dim,
                                 high_feature_dim, class_num)
    xkeys = jax.random.split(kx, view)
    xs = [jax.random.normal(xkeys[v], (batch, input_size[v]), jnp.float32)
          for v in range(view)]

    hs, qs, xrs, zs = network_forward(params, xs)
    jax.block_until_ready((hs, qs, xrs, zs))

    ref = _reference_forward(params, xs)
    got = (hs, qs, xrs, zs)
    for name, got_list, ref_list in zip(("hs", "qs", "xrs", "zs"), got, ref):
        for v, (g, r) in enumerate(zip(got_list, ref_list)):
            assert jnp.allclose(g, r, rtol=5e-3, atol=5e-3), (
                name, v, float(jnp.max(jnp.abs(g - r))))

    print("KERNEL_OK")
</pallas_src>

<mosaic_0001>
module attributes {stable_mosaic.version = 11 : i64} {
  func.func @_fused_mlp_kernel(%arg0: i32, %arg1: memref<8x64xf32, #tpu.memory_space<vmem>>, %arg2: memref<64x500xf32, #tpu.memory_space<vmem>>, %arg3: memref<1x500xf32, #tpu.memory_space<vmem>>, %arg4: memref<500x500xf32, #tpu.memory_space<vmem>>, %arg5: memref<1x500xf32, #tpu.memory_space<vmem>>, %arg6: memref<500x2000xf32, #tpu.memory_space<vmem>>, %arg7: memref<1x2000xf32, #tpu.memory_space<vmem>>, %arg8: memref<2000x32xf32, #tpu.memory_space<vmem>>, %arg9: memref<1x32xf32, #tpu.memory_space<vmem>>, %arg10: memref<8x32xf32, #tpu.memory_space<vmem>>) attributes {dimension_semantics = [#tpu.dimension_semantics<parallel>], iteration_bounds = array<i64: 1>, scalar_prefetch = 0 : i64, scratch_operands = 0 : i64, tpu.core_type = #tpu.core_type<tc>, window_params = [{transform_indices = @transform_0, window_bounds = array<i64: 8, 64>}, {pipeline_mode = #tpu.pipeline_mode<synchronous>, transform_indices = @transform_1, window_bounds = array<i64: 64, 500>}, {pipeline_mode = #tpu.pipeline_mode<synchronous>, transform_indices = @transform_2, window_bounds = array<i64: 1, 500>}, {pipeline_mode = #tpu.pipeline_mode<synchronous>, transform_indices = @transform_3, window_bounds = array<i64: 500, 500>}, {pipeline_mode = #tpu.pipeline_mode<synchronous>, transform_indices = @transform_4, window_bounds = array<i64: 1, 500>}, {pipeline_mode = #tpu.pipeline_mode<synchronous>, transform_indices = @transform_5, window_bounds = array<i64: 500, 2000>}, {pipeline_mode = #tpu.pipeline_mode<synchronous>, transform_indices = @transform_6, window_bounds = array<i64: 1, 2000>}, {pipeline_mode = #tpu.pipeline_mode<synchronous>, transform_indices = @transform_7, window_bounds = array<i64: 2000, 32>}, {pipeline_mode = #tpu.pipeline_mode<synchronous>, transform_indices = @transform_8, window_bounds = array<i64: 1, 32>}, {transform_indices = @transform_9, window_bounds = array<i64: 8, 32>}]} {
    %c0 = arith.constant 0 : index
    %c0_0 = arith.constant 0 : index
    %0 = vector.load %arg1[%c0, %c0_0] : memref<8x64xf32, #tpu.memory_space<vmem>>, vector<8x64xf32>
    %c0_1 = arith.constant 0 : index
    %c0_2 = arith.constant 0 : index
    %1 = vector.load %arg2[%c0_1, %c0_2] : memref<64x500xf32, #tpu.memory_space<vmem>>, vector<64x500xf32>
    %cst = arith.constant dense<0.000000e+00> : vector<8x500xf32>
    %2 = tpu.matmul %0, %1, %cst {dimension_numbers = #tpu.dot_dimension_numbers<[1], [0], [0], [1], [0, 0, 1, 1], [], []>} : vector<8x64xf32>, vector<64x500xf32>, vector<8x500xf32> -> vector<8x500xf32>
    %c0_3 = arith.constant 0 : index
    %c0_4 = arith.constant 0 : index
    %3 = vector.load %arg3[%c0_3, %c0_4] : memref<1x500xf32, #tpu.memory_space<vmem>>, vector<1x500xf32>
    %4 = vector.broadcast %3 : vector<1x500xf32> to vector<8x500xf32>
    %5 = arith.addf %2, %4 : vector<8x500xf32>
    %cst_5 = arith.constant 0.000000e+00 : f32
    %6 = vector.broadcast %cst_5 : f32 to vector<8x500xf32>
    %7 = arith.maximumf %5, %6 : vector<8x500xf32>
    %c0_6 = arith.constant 0 : index
    %c0_7 = arith.constant 0 : index
    %8 = vector.load %arg4[%c0_6, %c0_7] : memref<500x500xf32, #tpu.memory_space<vmem>>, vector<500x500xf32>
    %cst_8 = arith.constant dense<0.000000e+00> : vector<8x500xf32>
    %9 = tpu.matmul %7, %8, %cst_8 {dimension_numbers = #tpu.dot_dimension_numbers<[1], [0], [0], [1], [0, 0, 1, 1], [], []>} : vector<8x500xf32>, vector<500x500xf32>, vector<8x500xf32> -> vector<8x500xf32>
    %c0_9 = arith.constant 0 : index
    %c0_10 = arith.constant 0 : index
    %10 = vector.load %arg5[%c0_9, %c0_10] : memref<1x500xf32, #tpu.memory_space<vmem>>, vector<1x500xf32>
    %11 = vector.broadcast %10 : vector<1x500xf32> to vector<8x500xf32>
    %12 = arith.addf %9, %11 : vector<8x500xf32>
    %cst_11 = arith.constant 0.000000e+00 : f32
    %13 = vector.broadcast %cst_11 : f32 to vector<8x500xf32>
    %14 = arith.maximumf %12, %13 : vector<8x500xf32>
    %c0_12 = arith.constant 0 : index
    %c0_13 = arith.constant 0 : index
    %15 = vector.load %arg6[%c0_12, %c0_13] : memref<500x2000xf32, #tpu.memory_space<vmem>>, vector<500x2000xf32>
    %cst_14 = arith.constant dense<0.000000e+00> : vector<8x2000xf32>
    %16 = tpu.matmul %14, %15, %cst_14 {dimension_numbers = #tpu.dot_dimension_numbers<[1], [0], [0], [1], [0, 0, 1, 1], [], []>} : vector<8x500xf32>, vector<500x2000xf32>, vector<8x2000xf32> -> vector<8x2000xf32>
    %c0_15 = arith.constant 0 : index
    %c0_16 = arith.constant 0 : index
    %17 = vector.load %arg7[%c0_15, %c0_16] : memref<1x2000xf32, #tpu.memory_space<vmem>>, vector<1x2000xf32>
    %18 = vector.broadcast %17 : vector<1x2000xf32> to vector<8x2000xf32>
    %19 = arith.addf %16, %18 : vector<8x2000xf32>
    %cst_17 = arith.constant 0.000000e+00 : f32
    %20 = vector.broadcast %cst_17 : f32 to vector<8x2000xf32>
    %21 = arith.maximumf %19, %20 : vector<8x2000xf32>
    %c0_18 = arith.constant 0 : index
    %c0_19 = arith.constant 0 : index
    %22 = vector.load %arg8[%c0_18, %c0_19] : memref<2000x32xf32, #tpu.memory_space<vmem>>, vector<2000x32xf32>
    %cst_20 = arith.constant dense<0.000000e+00> : vector<8x32xf32>
    %23 = tpu.matmul %21, %22, %cst_20 {dimension_numbers = #tpu.dot_dimension_numbers<[1], [0], [0], [1], [0, 0, 1, 1], [], []>} : vector<8x2000xf32>, vector<2000x32xf32>, vector<8x32xf32> -> vector<8x32xf32>
    %c0_21 = arith.constant 0 : index
    %c0_22 = arith.constant 0 : index
    %24 = vector.load %arg9[%c0_21, %c0_22] : memref<1x32xf32, #tpu.memory_space<vmem>>, vector<1x32xf32>
    %25 = vector.broadcast %24 : vector<1x32xf32> to vector<8x32xf32>
    %26 = arith.addf %23, %25 : vector<8x32xf32>
    %c0_23 = arith.constant 0 : index
    %c0_24 = arith.constant 0 : index
    %27 = vector.load %arg10[%c0_23, %c0_24] : memref<8x32xf32, #tpu.memory_space<vmem>>, vector<8x32xf32>
    tpu.vector_store %arg10[%c0_23, %c0_24], %26 {strides = array<i32>} : memref<8x32xf32, #tpu.memory_space<vmem>>, vector<8x32xf32>,
    return
  }
  func.func @transform_0(%arg0: i32) -> (i32, i32) {
    %c0_i32 = arith.constant 0 : i32
    %c0_i32_0 = arith.constant 0 : i32
    return %arg0, %c0_i32 : i32, i32
  }
  func.func @transform_1(%arg0: i32) -> (i32, i32) {
    %c0_i32 = arith.constant 0 : i32
    %c0_i32_0 = arith.constant 0 : i32
    %c0_i32_1 = arith.constant 0 : i32
    return %c0_i32, %c0_i32_0 : i32, i32
  }
  func.func @transform_2(%arg0: i32) -> (i32, i32) {
    %c0_i32 = arith.constant 0 : i32
    %c0_i32_0 = arith.constant 0 : i32
    %c0_i32_1 = arith.constant 0 : i32
    return %c0_i32, %c0_i32_0 : i32, i32
  }
  func.func @transform_3(%arg0: i32) -> (i32, i32) {
    %c0_i32 = arith.constant 0 : i32
    %c0_i32_0 = arith.constant 0 : i32
    %c0_i32_1 = arith.constant 0 : i32
    return %c0_i32, %c0_i32_0 : i32, i32
  }
  func.func @transform_4(%arg0: i32) -> (i32, i32) {
    %c0_i32 = arith.constant 0 : i32
    %c0_i32_0 = arith.constant 0 : i32
    %c0_i32_1 = arith.constant 0 : i32
    return %c0_i32, %c0_i32_0 : i32, i32
  }
  func.func @transform_5(%arg0: i32) -> (i32, i32) {
    %c0_i32 = arith.constant 0 : i32
    %c0_i32_0 = arith.constant 0 : i32
    %c0_i32_1 = arith.constant 0 : i32
    return %c0_i32, %c0_i32_0 : i32, i32
  }
  func.func @transform_6(%arg0: i32) -> (i32, i32) {
    %c0_i32 = arith.constant 0 : i32
    %c0_i32_0 = arith.constant 0 : i32
    %c0_i32_1 = arith.constant 0 : i32
    return %c0_i32, %c0_i32_0 : i32, i32
  }
  func.func @transform_7(%arg0: i32) -> (i32, i32) {
    %c0_i32 = arith.constant 0 : i32
    %c0_i32_0 = arith.constant 0 : i32
    %c0_i32_1 = arith.constant 0 : i32
    return %c0_i32, %c0_i32_0 : i32, i32
  }
  func.func @transform_8(%arg0: i32) -> (i32, i32) {
    %c0_i32 = arith.constant 0 : i32
    %c0_i32_0 = arith.constant 0 : i32
    %c0_i32_1 = arith.constant 0 : i32
    return %c0_i32, %c0_i32_0 : i32, i32
  }
  func.func @transform_9(%arg0: i32) -> (i32, i32) {
    %c0_i32 = arith.constant 0 : i32
    %c0_i32_0 = arith.constant 0 : i32
    return %arg0, %c0_i32 : i32, i32
  }
}

</mosaic_0001>

<llo_original>
// kernel: tpu_custom_call.1
$region0: #{tpu_custom_call.1}
  #allocation0 [shape = 'u32[]', space=smem, size = 0x4, offset = 0x4, fixed_abs, tag = 'smem constant byte address 0x4 - core index']
  #allocation1 [shape = 'u32[144,128]{1,0:T(1,128)}', space=vmem, size = 0x12000, scoped, tag = 'internal scratch']
  %s0 = inlined_call_operand.vmem [shape: f32[8,64], index: 0, kind: input, shape index: {}]
  %s1 = inlined_call_operand.vmem [shape: f32[64,500], index: 1, kind: input, shape index: {}]
  %s2 = inlined_call_operand.vmem [shape: f32[1,500], index: 2, kind: input, shape index: {}]
  %s3 = inlined_call_operand.vmem [shape: f32[500,500], index: 3, kind: input, shape index: {}]
  %s4 = inlined_call_operand.vmem [shape: f32[1,500], index: 4, kind: input, shape index: {}]
  %s5 = inlined_call_operand.vmem [shape: f32[500,2000], index: 5, kind: input, shape index: {}]
  %s6 = inlined_call_operand.vmem [shape: f32[1,2000], index: 6, kind: input, shape index: {}]
  %s7 = inlined_call_operand.vmem [shape: f32[2000,32], index: 7, kind: input, shape index: {}]
  %s8 = inlined_call_operand.vmem [shape: f32[1,32], index: 8, kind: input, shape index: {}]
  %s9 = inlined_call_operand.hbm [shape: f32[8,32], index: 9, kind: output, shape index: {}]
  %s10 = sld [smem:[#allocation0]]
  $region46: #{tpu_custom_call.1} parent=0
    _
  %s12 = ssub.s32 1, %s10
  %s13 = scalar_select 0, %s12, %s10
  $region1: #{tpu_custom_call.1} parent=0
    #allocation2 [shape = 'u8[4096]{0}', space=vmem, size = 0x1000, scoped, tag = 'output window, operand 0, single buffered']
    #allocation3 [shape = 's32[1]{0}', space=sflag, size = 0x4, scoped, tag = 'scoped memory for tpu_custom_call.1']
    %14 = vsyncpa [#allocation3], 0
    // Predicated region
    $region2: #{tpu_custom_call.1} parent=1 // pred_check
      _
    $region3: #{tpu_custom_call.1} parent=1 // pred_check_branch
      %16 = sbr.rel (0) target = $region5
    $region4: #{tpu_custom_call.1} parent=1 // pred_region
      _
    $region5: #{tpu_custom_call.1} parent=1 // pred_fallthru
      _
    // Predicated region
    $region6: #{tpu_custom_call.1} parent=1 // pred_check
      _
    $region7: #{tpu_custom_call.1} parent=1 // pred_check_branch
      %18 = sbr.rel (0) target = $region9
    $region8: #{tpu_custom_call.1} parent=1 // pred_region
      _
    $region9: #{tpu_custom_call.1} parent=1 // pred_fallthru
      _
    // Predicated region
    $region10: #{tpu_custom_call.1} parent=1 // pred_check
      _
    $region11: #{tpu_custom_call.1} parent=1 // pred_check_branch
      %20 = sbr.rel (0) target = $region13
    $region12: #{tpu_custom_call.1} parent=1 // pred_region
      _
    $region13: #{tpu_custom_call.1} parent=1 // pred_fallthru
      _
    // Predicated region
    $region14: #{tpu_custom_call.1} parent=1 // pred_check
      _
    $region15: #{tpu_custom_call.1} parent=1 // pred_check_branch
      %22 = sbr.rel (0) target = $region17
    $region16: #{tpu_custom_call.1} parent=1 // pred_region
      _
    $region17: #{tpu_custom_call.1} parent=1 // pred_fallthru
      _
    // Predicated region
    $region18: #{tpu_custom_call.1} parent=1 // pred_check
      _
    $region19: #{tpu_custom_call.1} parent=1 // pred_check_branch
      %24 = sbr.rel (0) target = $region21
    $region20: #{tpu_custom_call.1} parent=1 // pred_region
      _
    $region21: #{tpu_custom_call.1} parent=1 // pred_fallthru
      _
    // Predicated region
    $region22: #{tpu_custom_call.1} parent=1 // pred_check
      _
    $region23: #{tpu_custom_call.1} parent=1 // pred_check_branch
      %26 = sbr.rel (0) target = $region25
    $region24: #{tpu_custom_call.1} parent=1 // pred_region
      _
    $region25: #{tpu_custom_call.1} parent=1 // pred_fallthru
      _
    // Predicated region
    $region26: #{tpu_custom_call.1} parent=1 // pred_check
      _
    $region27: #{tpu_custom_call.1} parent=1 // pred_check_branch
      %28 = sbr.rel (0) target = $region29
    $region28: #{tpu_custom_call.1} parent=1 // pred_region
      _
    $region29: #{tpu_custom_call.1} parent=1 // pred_fallthru
      _
    // Predicated region
    $region30: #{tpu_custom_call.1} parent=1 // pred_check
      _
    $region31: #{tpu_custom_call.1} parent=1 // pred_check_branch
      %30 = sbr.rel (0) target = $region33
    $region32: #{tpu_custom_call.1} parent=1 // pred_region
      _
    $region33: #{tpu_custom_call.1} parent=1 // pred_fallthru
      _
    // Predicated region
    $region34: #{tpu_custom_call.1} parent=1 // pred_check
      _
    $region35: #{tpu_custom_call.1} parent=1 // pred_check_branch
      %32 = sbr.rel (0) target = $region37
    $region36: #{tpu_custom_call.1} parent=1 // pred_region
      _
    $region37: #{tpu_custom_call.1} parent=1 // pred_fallthru
      _
    %v33 = vld [vmem:[%s0] sm:$0xff]
    %v34 = vld [vmem:[%s1] sm:$0xff]
    %v35 = vld [vmem:[%s1 + $0x8] sm:$0xff]
    %v36 = vld [vmem:[%s1 + $0x10] sm:$0xff]
    %v37 = vld [vmem:[%s1 + $0x18] sm:$0xff]
    %v38 = vld [vmem:[%s1 + $0x20] sm:$0xff]
    %v39 = vld [vmem:[%s1 + $0x28] sm:$0xff]
    %v40 = vld [vmem:[%s1 + $0x30] sm:$0xff]
    %v41 = vld [vmem:[%s1 + $0x38] sm:$0xff]
    %v42 = vld [vmem:[%s1 + $0x40] sm:$0xff]
    %v43 = vld [vmem:[%s1 + $0x48] sm:$0xff]
    %v44 = vld [vmem:[%s1 + $0x50] sm:$0xff]
    %v45 = vld [vmem:[%s1 + $0x58] sm:$0xff]
    %v46 = vld [vmem:[%s1 + $0x60] sm:$0xff]
    %v47 = vld [vmem:[%s1 + $0x68] sm:$0xff]
    %v48 = vld [vmem:[%s1 + $0x70] sm:$0xff]
    %v49 = vld [vmem:[%s1 + $0x78] sm:$0xff]
    %v50 = vld [vmem:[%s1 + $0x80] sm:$0xff]
    %v51 = vld [vmem:[%s1 + $0x88] sm:$0xff]
    %v52 = vld [vmem:[%s1 + $0x90] sm:$0xff]
    %v53 = vld [vmem:[%s1 + $0x98] sm:$0xff]
    %v54 = vld [vmem:[%s1 + $0xa0] sm:$0xff]
    %v55 = vld [vmem:[%s1 + $0xa8] sm:$0xff]
    %v56 = vld [vmem:[%s1 + $0xb0] sm:$0xff]
    %v57 = vld [vmem:[%s1 + $0xb8] sm:$0xff]
    %v58 = vld [vmem:[%s1 + $0xc0] sm:$0xff]
    %v59 = vld [vmem:[%s1 + $0xc8] sm:$0xff]
    %v60 = vld [vmem:[%s1 + $0xd0] sm:$0xff]
    %v61 = vld [vmem:[%s1 + $0xd8] sm:$0xff]
    %v62 = vld [vmem:[%s1 + $0xe0] sm:$0xff]
    %v63 = vld [vmem:[%s1 + $0xe8] sm:$0xff]
    %v64 = vld [vmem:[%s1 + $0xf0] sm:$0xff]
    %v65 = vld [vmem:[%s1 + $0xf8] sm:$0xff]
    %v66 = vld [vmem:[%s2] sm:$0xf]
    %v68 = vlaneseq
    %v69 = vshrl.u32 %v68, 7
    %v70 = vsub.s32 0, %v69
    %v71 = vrot.slane %v66, %v70
    %v72 = vlaneseq
    %v73 = vshrl.u32 %v72, 7
    %v74 = vsub.s32 1, %v73
    %v75 = vrot.slane %v66, %v74
    %v76 = vlaneseq
    %v77 = vshrl.u32 %v76, 7
    %v78 = vsub.s32 2, %v77
    %v79 = vrot.slane %v66, %v78
    %v80 = vlaneseq
    %v81 = vshrl.u32 %v80, 7
    %v82 = vsub.s32 3, %v81
    %v83 = vrot.slane %v66, %v82
    %vm88 = vcmask 523264
    %v90 = vsel %vm88, %v33, 0
    %92 = vmatprep.subr.mxu0 0.0
    %93 = vmatpush1.msra.mxu0 0.0
    %94 = vmatprep.subr.mxu0 0.0
    %95 = vmatpush1.msra.mxu0 0.0
    %96 = vmatprep.subr.mxu0 0.0
    %97 = vmatpush1.msra.mxu0 0.0
    %98 = vmatprep.subr.mxu0 0.0
    %99 = vmatpush1.msra.mxu0 0.0
    %100 = vmatprep.subr.mxu0 0.0
    %101 = vmatpush1.msra.mxu0 0.0
    %102 = vmatprep.subr.mxu0 0.0
    %103 = vmatpush1.msra.mxu0 0.0
    %104 = vmatprep.subr.mxu0 0.0
    %105 = vmatpush1.msra.mxu0 0.0
    %106 = vmatprep.subr.mxu0 0.0
    %107 = vmatpush1.msra.mxu0 0.0
    %108 = vmatprep.subr.mxu0 %v63
    %109 = vmatpush1.msra.mxu0 %v62
    %110 = vmatprep.subr.mxu0 %v59
    %111 = vmatpush1.msra.mxu0 %v58
    %112 = vmatprep.subr.mxu0 %v55
    %113 = vmatpush1.msra.mxu0 %v54
    %114 = vmatprep.subr.mxu0 %v51
    %115 = vmatpush1.msra.mxu0 %v50
    %116 = vmatprep.subr.mxu0 %v47
    %117 = vmatpush1.msra.mxu0 %v46
    %118 = vmatprep.subr.mxu0 %v43
    %119 = vmatpush1.msra.mxu0 %v42
    %120 = vmatprep.subr.mxu0 %v39
    %121 = vmatpush1.msra.mxu0 %v38
    %122 = vmatprep.subr.mxu0 %v35
    %123 = vmatpush1.msra.mxu0 %v34
    %124 = vmatprep.subr.mxu0 0.0
    %125 = vmatpush2.msra.mxu0 0.0
    %126 = vmatprep.subr.mxu0 0.0
    %127 = vmatpush2.msra.mxu0 0.0
    %128 = vmatprep.subr.mxu0 0.0
    %129 = vmatpush2.msra.mxu0 0.0
    %130 = vmatprep.subr.mxu0 0.0
    %131 = vmatpush2.msra.mxu0 0.0
    %132 = vmatprep.subr.mxu0 0.0
    %133 = vmatpush2.msra.mxu0 0.0
    %134 = vmatprep.subr.mxu0 0.0
    %135 = vmatpush2.msra.mxu0 0.0
    %136 = vmatprep.subr.mxu0 0.0
    %137 = vmatpush2.msra.mxu0 0.0
    %138 = vmatprep.subr.mxu0 0.0
    %139 = vmatpush2.msra.mxu0 0.0
    %140 = vmatprep.subr.mxu0 0.0
    %141 = vmatpush2.msra.mxu0 0.0
    %142 = vmatprep.subr.mxu0 0.0
    %143 = vmatpush2.msra.mxu0 0.0
    %144 = vmatprep.subr.mxu0 0.0
    %145 = vmatpush2.msra.mxu0 0.0
    %146 = vmatprep.subr.mxu0 0.0
    %147 = vmatpush2.msra.mxu0 0.0
    %148 = vmatprep.subr.mxu0 0.0
    %149 = vmatpush2.msra.mxu0 0.0
    %150 = vmatprep.subr.mxu0 0.0
    %151 = vmatpush2.msra.mxu0 0.0
    %152 = vmatprep.subr.mxu0 0.0
    %153 = vmatpush2.msra.mxu0 0.0
    %154 = vmatprep.subr.mxu0 0.0
    %155 = vmatpush2.msra.mxu0 0.0
    %156 = vmatprep.mubr.f32.mxu0 0.0
    %157 = vmatmul.mubr.f32.gmra.mxu0 %v90
    %v158 = vpop.f32.mrf.mxu0
    %v159 = vadd.f32 %v71, %v158
    %v160 = vpop.f32.mrf.mxu0
    %v161 = vadd.f32 %v75, %v160
    %162 = vdwg.mxu0
    %163 = vmatprep.subr.mxu0 0.0
    %164 = vmatpush1.msra.mxu0 0.0
    %165 = vmatprep.subr.mxu0 0.0
    %166 = vmatpush1.msra.mxu0 0.0
    %167 = vmatprep.subr.mxu0 0.0
    %168 = vmatpush1.msra.mxu0 0.0
    %169 = vmatprep.subr.mxu0 0.0
    %170 = vmatpush1.msra.mxu0 0.0
    %171 = vmatprep.subr.mxu0 0.0
    %172 = vmatpush1.msra.mxu0 0.0
    %173 = vmatprep.subr.mxu0 0.0
    %174 = vmatpush1.msra.mxu0 0.0
    %175 = vmatprep.subr.mxu0 0.0
    %176 = vmatpush1.msra.mxu0 0.0
    %177 = vmatprep.subr.mxu0 0.0
    %178 = vmatpush1.msra.mxu0 0.0
    %179 = vmatprep.subr.mxu0 %v65
    %180 = vmatpush1.msra.mxu0 %v64
    %181 = vmatprep.subr.mxu0 %v61
    %182 = vmatpush1.msra.mxu0 %v60
    %183 = vmatprep.subr.mxu0 %v57
    %184 = vmatpush1.msra.mxu0 %v56
    %185 = vmatprep.subr.mxu0 %v53
    %186 = vmatpush1.msra.mxu0 %v52
    %187 = vmatprep.subr.mxu0 %v49
    %188 = vmatpush1.msra.mxu0 %v48
    %189 = vmatprep.subr.mxu0 %v45
    %190 = vmatpush1.msra.mxu0 %v44
    %191 = vmatprep.subr.mxu0 %v41
    %192 = vmatpush1.msra.mxu0 %v40
    %193 = vmatprep.subr.mxu0 %v37
    %194 = vmatpush1.msra.mxu0 %v36
    %195 = vmatprep.subr.mxu0 0.0
    %196 = vmatpush2.msra.mxu0 0.0
    %197 = vmatprep.subr.mxu0 0.0
    %198 = vmatpush2.msra.mxu0 0.0
    %199 = vmatprep.subr.mxu0 0.0
    %200 = vmatpush2.msra.mxu0 0.0
    %201 = vmatprep.subr.mxu0 0.0
    %202 = vmatpush2.msra.mxu0 0.0
    %203 = vmatprep.subr.mxu0 0.0
    %204 = vmatpush2.msra.mxu0 0.0
    %205 = vmatprep.subr.mxu0 0.0
    %206 = vmatpush2.msra.mxu0 0.0
    %207 = vmatprep.subr.mxu0 0.0
    %208 = vmatpush2.msra.mxu0 0.0
    %209 = vmatprep.subr.mxu0 0.0
    %210 = vmatpush2.msra.mxu0 0.0
    %211 = vmatprep.subr.mxu0 0.0
    %212 = vmatpush2.msra.mxu0 0.0
    %213 = vmatprep.subr.mxu0 0.0
    %214 = vmatpush2.msra.mxu0 0.0
    %215 = vmatprep.subr.mxu0 0.0
    %216 = vmatpush2.msra.mxu0 0.0
    %217 = vmatprep.subr.mxu0 0.0
    %218 = vmatpush2.msra.mxu0 0.0
    %219 = vmatprep.subr.mxu0 0.0
    %220 = vmatpush2.msra.mxu0 0.0
    %221 = vmatprep.subr.mxu0 0.0
    %222 = vmatpush2.msra.mxu0 0.0
    %223 = vmatprep.subr.mxu0 0.0
    %224 = vmatpush2.msra.mxu0 0.0
    %225 = vmatprep.subr.mxu0 0.0
    %226 = vmatpush2.msra.mxu0 0.0
    %227 = vmatprep.mubr.f32.mxu0 0.0
    %228 = vmatmul.mubr.f32.gmra.mxu0 %v90
    %v229 = vpop.f32.mrf.mxu0
    %v230 = vadd.f32 %v79, %v229
    %v231 = vpop.f32.mrf.mxu0
    %v232 = vadd.f32 %v83, %v231
    %233 = vdwg.mxu0
    %v234 = vmax.f32 %v159, 0.0
    %v235 = vmax.f32 %v161, 0.0
    %v236 = vmax.f32 %v230, 0.0
    %v237 = vmax.f32 %v232, 0.0
    %v238 = vld [vmem:[%s3] sm:$0xff]
    %v239 = vld [vmem:[%s3 + $0x8] sm:$0xff]
    %v240 = vld [vmem:[%s3 + $0x10] sm:$0xff]
    %v241 = vld [vmem:[%s3 + $0x18] sm:$0xff]
    %v242 = vld [vmem:[%s3 + $0x20] sm:$0xff]
    %v243 = vld [vmem:[%s3 + $0x28] sm:$0xff]
    %v244 = vld [vmem:[%s3 + $0x30] sm:$0xff]
    %v245 = vld [vmem:[%s3 + $0x38] sm:$0xff]
    %v246 = vld [vmem:[%s3 + $0x40] sm:$0xff]
    %v247 = vld [vmem:[%s3 + $0x48] sm:$0xff]
    %v248 = vld [vmem:[%s3 + $0x50] sm:$0xff]
    %v249 = vld [vmem:[%s3 + $0x58] sm:$0xff]
    %v250 = vld [vmem:[%s3 + $0x60] sm:$0xff]
    %v251 = vld [vmem:[%s3 + $0x68] sm:$0xff]
    %v252 = vld [vmem:[%s3 + $0x70] sm:$0xff]
    %v253 = vld [vmem:[%s3 + $0x78] sm:$0xff]
    %v254 = vld [vmem:[%s3 + $0x80] sm:$0xff]
    %v255 = vld [vmem:[%s3 + $0x88] sm:$0xff]
    %v256 = vld [vmem:[%s3 + $0x90] sm:$0xff]
    %v257 = vld [vmem:[%s3 + $0x98] sm:$0xff]
    %v258 = vld [vmem:[%s3 + $0xa0] sm:$0xff]
    %v259 = vld [vmem:[%s3 + $0xa8] sm:$0xff]
    %v260 = vld [vmem:[%s3 + $0xb0] sm:$0xff]
    %v261 = vld [vmem:[%s3 + $0xb8] sm:$0xff]
    %v262 = vld [vmem:[%s3 + $0xc0] sm:$0xff]
    %v263 = vld [vmem:[%s3 + $0xc8] sm:$0xff]
    %v264 = vld [vmem:[%s3 + $0xd0] sm:$0xff]
    %v265 = vld [vmem:[%s3 + $0xd8] sm:$0xff]
    %v266 = vld [vmem:[%s3 + $0xe0] sm:$0xff]
    %v267 = vld [vmem:[%s3 + $0xe8] sm:$0xff]
    %v268 = vld [vmem:[%s3 + $0xf0] sm:$0xff]
    %v269 = vld [vmem:[%s3 + $0xf8] sm:$0xff]
    %v270 = vld [vmem:[%s3 + $0x100] sm:$0xff]
    %v271 = vld [vmem:[%s3 + $0x108] sm:$0xff]
    %v272 = vld [vmem:[%s3 + $0x110] sm:$0xff]
    %v273 = vld [vmem:[%s3 + $0x118] sm:$0xff]
    %v274 = vld [vmem:[%s3 + $0x120] sm:$0xff]
    %v275 = vld [vmem:[%s3 + $0x128] sm:$0xff]
    %v276 = vld [vmem:[%s3 + $0x130] sm:$0xff]
    %v277 = vld [vmem:[%s3 + $0x138] sm:$0xff]
    %v278 = vld [vmem:[%s3 + $0x140] sm:$0xff]
    %v279 = vld [vmem:[%s3 + $0x148] sm:$0xff]
    %v280 = vld [vmem:[%s3 + $0x150] sm:$0xff]
    %v281 = vld [vmem:[%s3 + $0x158] sm:$0xff]
    %v282 = vld [vmem:[%s3 + $0x160] sm:$0xff]
    %v283 = vld [vmem:[%s3 + $0x168] sm:$0xff]
    %v284 = vld [vmem:[%s3 + $0x170] sm:$0xff]
    %v285 = vld [vmem:[%s3 + $0x178] sm:$0xff]
    %v286 = vld [vmem:[%s3 + $0x180] sm:$0xff]
    %v287 = vld [vmem:[%s3 + $0x188] sm:$0xff]
    %v288 = vld [vmem:[%s3 + $0x190] sm:$0xff]
    %v289 = vld [vmem:[%s3 + $0x198] sm:$0xff]
    %v290 = vld [vmem:[%s3 + $0x1a0] sm:$0xff]
    %v291 = vld [vmem:[%s3 + $0x1a8] sm:$0xff]
    %v292 = vld [vmem:[%s3 + $0x1b0] sm:$0xff]
    %v293 = vld [vmem:[%s3 + $0x1b8] sm:$0xff]
    %v294 = vld [vmem:[%s3 + $0x1c0] sm:$0xff]
    %v295 = vld [vmem:[%s3 + $0x1c8] sm:$0xff]
    %v296 = vld [vmem:[%s3 + $0x1d0] sm:$0xff]
    %v297 = vld [vmem:[%s3 + $0x1d8] sm:$0xff]
    %v298 = vld [vmem:[%s3 + $0x1e0] sm:$0xff]
    %v299 = vld [vmem:[%s3 + $0x1e8] sm:$0xff]
    %v300 = vld [vmem:[%s3 + $0x1f0] sm:$0xff]
    %v301 = vld [vmem:[%s3 + $0x1f8] sm:$0xff]
    %v302 = vld [vmem:[%s3 + $0x200] sm:$0xff]
    %v303 = vld [vmem:[%s3 + $0x208] sm:$0xff]
    %v304 = vld [vmem:[%s3 + $0x210] sm:$0xff]
    %v305 = vld [vmem:[%s3 + $0x218] sm:$0xff]
    %v306 = vld [vmem:[%s3 + $0x220] sm:$0xff]
    %v307 = vld [vmem:[%s3 + $0x228] sm:$0xff]
    %v308 = vld [vmem:[%s3 + $0x230] sm:$0xff]
    %v309 = vld [vmem:[%s3 + $0x238] sm:$0xff]
    %v310 = vld [vmem:[%s3 + $0x240] sm:$0xff]
    %v311 = vld [vmem:[%s3 + $0x248] sm:$0xff]
    %v312 = vld [vmem:[%s3 + $0x250] sm:$0xff]
    %v313 = vld [vmem:[%s3 + $0x258] sm:$0xff]
    %v314 = vld [vmem:[%s3 + $0x260] sm:$0xff]
    %v315 = vld [vmem:[%s3 + $0x268] sm:$0xff]
    %v316 = vld [vmem:[%s3 + $0x270] sm:$0xff]
    %v317 = vld [vmem:[%s3 + $0x278] sm:$0xff]
    %v318 = vld [vmem:[%s3 + $0x280] sm:$0xff]
    %v319 = vld [vmem:[%s3 + $0x288] sm:$0xff]
    %v320 = vld [vmem:[%s3 + $0x290] sm:$0xff]
    %v321 = vld [vmem:[%s3 + $0x298] sm:$0xff]
    %v322 = vld [vmem:[%s3 + $0x2a0] sm:$0xff]
    %v323 = vld [vmem:[%s3 + $0x2a8] sm:$0xff]
    %v324 = vld [vmem:[%s3 + $0x2b0] sm:$0xff]
    %v325 = vld [vmem:[%s3 + $0x2b8] sm:$0xff]
    %v326 = vld [vmem:[%s3 + $0x2c0] sm:$0xff]
    %v327 = vld [vmem:[%s3 + $0x2c8] sm:$0xff]
    %v328 = vld [vmem:[%s3 + $0x2d0] sm:$0xff]
    %v329 = vld [vmem:[%s3 + $0x2d8] sm:$0xff]
    %v330 = vld [vmem:[%s3 + $0x2e0] sm:$0xff]
    %v331 = vld [vmem:[%s3 + $0x2e8] sm:$0xff]
    %v332 = vld [vmem:[%s3 + $0x2f0] sm:$0xff]
    %v333 = vld [vmem:[%s3 + $0x2f8] sm:$0xff]
    %v334 = vld [vmem:[%s3 + $0x300] sm:$0xff]
    %v335 = vld [vmem:[%s3 + $0x308] sm:$0xff]
    %v336 = vld [vmem:[%s3 + $0x310] sm:$0xff]
    %v337 = vld [vmem:[%s3 + $0x318] sm:$0xff]
    %v338 = vld [vmem:[%s3 + $0x320] sm:$0xff]
    %v339 = vld [vmem:[%s3 + $0x328] sm:$0xff]
    %v340 = vld [vmem:[%s3 + $0x330] sm:$0xff]
    %v341 = vld [vmem:[%s3 + $0x338] sm:$0xff]
    %v342 = vld [vmem:[%s3 + $0x340] sm:$0xff]
    %v343 = vld [vmem:[%s3 + $0x348] sm:$0xff]
    %v344 = vld [vmem:[%s3 + $0x350] sm:$0xff]
    %v345 = vld [vmem:[%s3 + $0x358] sm:$0xff]
    %v346 = vld [vmem:[%s3 + $0x360] sm:$0xff]
    %v347 = vld [vmem:[%s3 + $0x368] sm:$0xff]
    %v348 = vld [vmem:[%s3 + $0x370] sm:$0xff]
    %v349 = vld [vmem:[%s3 + $0x378] sm:$0xff]
    %v350 = vld [vmem:[%s3 + $0x380] sm:$0xff]
    %v351 = vld [vmem:[%s3 + $0x388] sm:$0xff]
    %v352 = vld [vmem:[%s3 + $0x390] sm:$0xff]
    %v353 = vld [vmem:[%s3 + $0x398] sm:$0xff]
    %v354 = vld [vmem:[%s3 + $0x3a0] sm:$0xff]
    %v355 = vld [vmem:[%s3 + $0x3a8] sm:$0xff]
    %v356 = vld [vmem:[%s3 + $0x3b0] sm:$0xff]
    %v357 = vld [vmem:[%s3 + $0x3b8] sm:$0xff]
    %v358 = vld [vmem:[%s3 + $0x3c0] sm:$0xff]
    %v359 = vld [vmem:[%s3 + $0x3c8] sm:$0xff]
    %v360 = vld [vmem:[%s3 + $0x3d0] sm:$0xff]
    %v361 = vld [vmem:[%s3 + $0x3d8] sm:$0xff]
    %v362 = vld [vmem:[%s3 + $0x3e0] sm:$0xff]
    %v363 = vld [vmem:[%s3 + $0x3e8] sm:$0xff]
    %v364 = vld [vmem:[%s3 + $0x3f0] sm:$0xff]
    %v365 = vld [vmem:[%s3 + $0x3f8] sm:$0xff]
    %v366 = vld [vmem:[%s3 + $0x400] sm:$0xff]
    %v367 = vld [vmem:[%s3 + $0x408] sm:$0xff]
    %v368 = vld [vmem:[%s3 + $0x410] sm:$0xff]
    %v369 = vld [vmem:[%s3 + $0x418] sm:$0xff]
    %v370 = vld [vmem:[%s3 + $0x420] sm:$0xff]
    %v371 = vld [vmem:[%s3 + $0x428] sm:$0xff]
    %v372 = vld [vmem:[%s3 + $0x430] sm:$0xff]
    %v373 = vld [vmem:[%s3 + $0x438] sm:$0xff]
    %v374 = vld [vmem:[%s3 + $0x440] sm:$0xff]
    %v375 = vld [vmem:[%s3 + $0x448] sm:$0xff]
    %v376 = vld [vmem:[%s3 + $0x450] sm:$0xff]
    %v377 = vld [vmem:[%s3 + $0x458] sm:$0xff]
    %v378 = vld [vmem:[%s3 + $0x460] sm:$0xff]
    %v379 = vld [vmem:[%s3 + $0x468] sm:$0xff]
    %v380 = vld [vmem:[%s3 + $0x470] sm:$0xff]
    %v381 = vld [vmem:[%s3 + $0x478] sm:$0xff]
    %v382 = vld [vmem:[%s3 + $0x480] sm:$0xff]
    %v383 = vld [vmem:[%s3 + $0x488] sm:$0xff]
    %v384 = vld [vmem:[%s3 + $0x490] sm:$0xff]
    %v385 = vld [vmem:[%s3 + $0x498] sm:$0xff]
    %v386 = vld [vmem:[%s3 + $0x4a0] sm:$0xff]
    %v387 = vld [vmem:[%s3 + $0x4a8] sm:$0xff]
    %v388 = vld [vmem:[%s3 + $0x4b0] sm:$0xff]
    %v389 = vld [vmem:[%s3 + $0x4b8] sm:$0xff]
    %v390 = vld [vmem:[%s3 + $0x4c0] sm:$0xff]
    %v391 = vld [vmem:[%s3 + $0x4c8] sm:$0xff]
    %v392 = vld [vmem:[%s3 + $0x4d0] sm:$0xff]
    %v393 = vld [vmem:[%s3 + $0x4d8] sm:$0xff]
    %v394 = vld [vmem:[%s3 + $0x4e0] sm:$0xff]
    %v395 = vld [vmem:[%s3 + $0x4e8] sm:$0xff]
    %v396 = vld [vmem:[%s3 + $0x4f0] sm:$0xff]
    %v397 = vld [vmem:[%s3 + $0x4f8] sm:$0xff]
    %v398 = vld [vmem:[%s3 + $0x500] sm:$0xff]
    %v399 = vld [vmem:[%s3 + $0x508] sm:$0xff]
    %v400 = vld [vmem:[%s3 + $0x510] sm:$0xff]
    %v401 = vld [vmem:[%s3 + $0x518] sm:$0xff]
    %v402 = vld [vmem:[%s3 + $0x520] sm:$0xff]
    %v403 = vld [vmem:[%s3 + $0x528] sm:$0xff]
    %v404 = vld [vmem:[%s3 + $0x530] sm:$0xff]
    %v405 = vld [vmem:[%s3 + $0x538] sm:$0xff]
    %v406 = vld [vmem:[%s3 + $0x540] sm:$0xff]
    %v407 = vld [vmem:[%s3 + $0x548] sm:$0xff]
    %v408 = vld [vmem:[%s3 + $0x550] sm:$0xff]
    %v409 = vld [vmem:[%s3 + $0x558] sm:$0xff]
    %v410 = vld [vmem:[%s3 + $0x560] sm:$0xff]
    %v411 = vld [vmem:[%s3 + $0x568] sm:$0xff]
    %v412 = vld [vmem:[%s3 + $0x570] sm:$0xff]
    %v413 = vld [vmem:[%s3 + $0x578] sm:$0xff]
    %v414 = vld [vmem:[%s3 + $0x580] sm:$0xff]
    %v415 = vld [vmem:[%s3 + $0x588] sm:$0xff]
    %v416 = vld [vmem:[%s3 + $0x590] sm:$0xff]
    %v417 = vld [vmem:[%s3 + $0x598] sm:$0xff]
    %v418 = vld [vmem:[%s3 + $0x5a0] sm:$0xff]
    %v419 = vld [vmem:[%s3 + $0x5a8] sm:$0xff]
    %v420 = vld [vmem:[%s3 + $0x5b0] sm:$0xff]
    %v421 = vld [vmem:[%s3 + $0x5b8] sm:$0xff]
    %v422 = vld [vmem:[%s3 + $0x5c0] sm:$0xff]
    %v423 = vld [vmem:[%s3 + $0x5c8] sm:$0xff]
    %v424 = vld [vmem:[%s3 + $0x5d0] sm:$0xff]
    %v425 = vld [vmem:[%s3 + $0x5d8] sm:$0xff]
    %v426 = vld [vmem:[%s3 + $0x5e0] sm:$0xff]
    %v427 = vld [vmem:[%s3 + $0x5e8] sm:$0xff]
    %v428 = vld [vmem:[%s3 + $0x5f0] sm:$0xff]
    %v429 = vld [vmem:[%s3 + $0x5f8] sm:$0xff]
    %v430 = vld [vmem:[%s3 + $0x600] sm:$0xff]
    %v431 = vld [vmem:[%s3 + $0x608] sm:$0xff]
    %v432 = vld [vmem:[%s3 + $0x610] sm:$0xff]
    %v433 = vld [vmem:[%s3 + $0x618] sm:$0xff]
    %v434 = vld [vmem:[%s3 + $0x620] sm:$0xff]
    %v435 = vld [vmem:[%s3 + $0x628] sm:$0xff]
    %v436 = vld [vmem:[%s3 + $0x630] sm:$0xff]
    %v437 = vld [vmem:[%s3 + $0x638] sm:$0xff]
    %v438 = vld [vmem:[%s3 + $0x640] sm:$0xff]
    %v439 = vld [vmem:[%s3 + $0x648] sm:$0xff]
    %v440 = vld [vmem:[%s3 + $0x650] sm:$0xff]
    %v441 = vld [vmem:[%s3 + $0x658] sm:$0xff]
    %v442 = vld [vmem:[%s3 + $0x660] sm:$0xff]
    %v443 = vld [vmem:[%s3 + $0x668] sm:$0xff]
    %v444 = vld [vmem:[%s3 + $0x670] sm:$0xff]
    %v445 = vld [vmem:[%s3 + $0x678] sm:$0xff]
    %v446 = vld [vmem:[%s3 + $0x680] sm:$0xff]
    %v447 = vld [vmem:[%s3 + $0x688] sm:$0xff]
    %v448 = vld [vmem:[%s3 + $0x690] sm:$0xff]
    %v449 = vld [vmem:[%s3 + $0x698] sm:$0xff]
    %v450 = vld [vmem:[%s3 + $0x6a0] sm:$0xff]
    %v451 = vld [vmem:[%s3 + $0x6a8] sm:$0xff]
    %v452 = vld [vmem:[%s3 + $0x6b0] sm:$0xff]
    %v453 = vld [vmem:[%s3 + $0x6b8] sm:$0xff]
    %v454 = vld [vmem:[%s3 + $0x6c0] sm:$0xff]
    %v455 = vld [vmem:[%s3 + $0x6c8] sm:$0xff]
    %v456 = vld [vmem:[%s3 + $0x6d0] sm:$0xff]
    %v457 = vld [vmem:[%s3 + $0x6d8] sm:$0xff]
    %v458 = vld [vmem:[%s3 + $0x6e0] sm:$0xff]
    %v459 = vld [vmem:[%s3 + $0x6e8] sm:$0xff]
    %v460 = vld [vmem:[%s3 + $0x6f0] sm:$0xff]
    %v461 = vld [vmem:[%s3 + $0x6f8] sm:$0xff]
    %v462 = vld [vmem:[%s3 + $0x700] sm:$0xff]
    %v463 = vld [vmem:[%s3 + $0x708] sm:$0xff]
    %v464 = vld [vmem:[%s3 + $0x710] sm:$0xff]
    %v465 = vld [vmem:[%s3 + $0x718] sm:$0xff]
    %v466 = vld [vmem:[%s3 + $0x720] sm:$0xff]
    %v467 = vld [vmem:[%s3 + $0x728] sm:$0xff]
    %v468 = vld [vmem:[%s3 + $0x730] sm:$0xff]
    %v469 = vld [vmem:[%s3 + $0x738] sm:$0xff]
    %v470 = vld [vmem:[%s3 + $0x740] sm:$0xff]
    %v471 = vld [vmem:[%s3 + $0x748] sm:$0xff]
    %v472 = vld [vmem:[%s3 + $0x750] sm:$0xff]
    %v473 = vld [vmem:[%s3 + $0x758] sm:$0xff]
    %v474 = vld [vmem:[%s3 + $0x760] sm:$0xff]
    %v475 = vld [vmem:[%s3 + $0x768] sm:$0xff]
    %v476 = vld [vmem:[%s3 + $0x770] sm:$0xff]
    %v477 = vld [vmem:[%s3 + $0x778] sm:$0xff]
    %v478 = vld [vmem:[%s3 + $0x780] sm:$0xff]
    %v479 = vld [vmem:[%s3 + $0x788] sm:$0xff]
    %v480 = vld [vmem:[%s3 + $0x790] sm:$0xff]
    %v481 = vld [vmem:[%s3 + $0x798] sm:$0xff]
    %v482 = vld [vmem:[%s3 + $0x7a0] sm:$0xff]
    %v483 = vld [vmem:[%s3 + $0x7a8] sm:$0xff]
    %v484 = vld [vmem:[%s3 + $0x7b0] sm:$0xff]
    %v485 = vld [vmem:[%s3 + $0x7b8] sm:$0xff]
    %v486 = vld [vmem:[%s3 + $0x7c0] sm:$0xf]
    %v487 = vld [vmem:[%s3 + $0x7c8] sm:$0xf]
    %v488 = vld [vmem:[%s3 + $0x7d0] sm:$0xf]
    %v489 = vld [vmem:[%s3 + $0x7d8] sm:$0xf]
    %v490 = vld [vmem:[%s4] sm:$0xf]
    %v492 = vlaneseq
    %v493 = vshrl.u32 %v492, 7
    %v494 = vsub.s32 0, %v493
    %v495 = vrot.slane %v490, %v494
    %v496 = vlaneseq
    %v497 = vshrl.u32 %v496, 7
    %v498 = vsub.s32 1, %v497
    %v499 = vrot.slane %v490, %v498
    %v500 = vlaneseq
    %v501 = vshrl.u32 %v500, 7
    %v502 = vsub.s32 2, %v501
    %v503 = vrot.slane %v490, %v502
    %v504 = vlaneseq
    %v505 = vshrl.u32 %v504, 7
    %v506 = vsub.s32 3, %v505
    %v507 = vrot.slane %v490, %v506
    %vm512 = vcmask 949248
    %v514 = vsel %vm512, %v237, 0
    %vm516 = vcmask 1043456
    %v518 = vsel %vm516, %v486, 0
    %v521 = vsel %vm516, %v487, 0
    %v524 = vsel %vm516, %v488, 0
    %v527 = vsel %vm516, %v489, 0
    %529 = vmatprep.subr.mxu0 %v299
    %530 = vmatpush1.msra.mxu0 %v298
    %531 = vmatprep.subr.mxu0 %v295
    %532 = vmatpush1.msra.mxu0 %v294
    %533 = vmatprep.subr.mxu0 %v291
    %534 = vmatpush1.msra.mxu0 %v290
    %535 = vmatprep.subr.mxu0 %v287
    %536 = vmatpush1.msra.mxu0 %v286
    %537 = vmatprep.subr.mxu0 %v283
    %538 = vmatpush1.msra.mxu0 %v282
    %539 = vmatprep.subr.mxu0 %v279
    %540 = vmatpush1.msra.mxu0 %v278
    %541 = vmatprep.subr.mxu0 %v275
    %542 = vmatpush1.msra.mxu0 %v274
    %543 = vmatprep.subr.mxu0 %v271
    %544 = vmatpush1.msra.mxu0 %v270
    %545 = vmatprep.subr.mxu0 %v267
    %546 = vmatpush1.msra.mxu0 %v266
    %547 = vmatprep.subr.mxu0 %v263
    %548 = vmatpush1.msra.mxu0 %v262
    %549 = vmatprep.subr.mxu0 %v259
    %550 = vmatpush1.msra.mxu0 %v258
    %551 = vmatprep.subr.mxu0 %v255
    %552 = vmatpush1.msra.mxu0 %v254
    %553 = vmatprep.subr.mxu0 %v251
    %554 = vmatpush1.msra.mxu0 %v250
    %555 = vmatprep.subr.mxu0 %v247
    %556 = vmatpush1.msra.mxu0 %v246
    %557 = vmatprep.subr.mxu0 %v243
    %558 = vmatpush1.msra.mxu0 %v242
    %559 = vmatprep.subr.mxu0 %v239
    %560 = vmatpush1.msra.mxu0 %v238
    %561 = vmatprep.subr.mxu0 %v363
    %562 = vmatpush2.msra.mxu0 %v362
    %563 = vmatprep.subr.mxu0 %v359
    %564 = vmatpush2.msra.mxu0 %v358
    %565 = vmatprep.subr.mxu0 %v355
    %566 = vmatpush2.msra.mxu0 %v354
    %567 = vmatprep.subr.mxu0 %v351
    %568 = vmatpush2.msra.mxu0 %v350
    %569 = vmatprep.subr.mxu0 %v347
    %570 = vmatpush2.msra.mxu0 %v346
    %571 = vmatprep.subr.mxu0 %v343
    %572 = vmatpush2.msra.mxu0 %v342
    %573 = vmatprep.subr.mxu0 %v339
    %574 = vmatpush2.msra.mxu0 %v338
    %575 = vmatprep.subr.mxu0 %v335
    %576 = vmatpush2.msra.mxu0 %v334
    %577 = vmatprep.subr.mxu0 %v331
    %578 = vmatpush2.msra.mxu0 %v330
    %579 = vmatprep.subr.mxu0 %v327
    %580 = vmatpush2.msra.mxu0 %v326
    %581 = vmatprep.subr.mxu0 %v323
    %582 = vmatpush2.msra.mxu0 %v322
    %583 = vmatprep.subr.mxu0 %v319
    %584 = vmatpush2.msra.mxu0 %v318
    %585 = vmatprep.subr.mxu0 %v315
    %586 = vmatpush2.msra.mxu0 %v314
    %587 = vmatprep.subr.mxu0 %v311
    %588 = vmatpush2.msra.mxu0 %v310
    %589 = vmatprep.subr.mxu0 %v307
    %590 = vmatpush2.msra.mxu0 %v306
    %591 = vmatprep.subr.mxu0 %v303
    %592 = vmatpush2.msra.mxu0 %v302
    %593 = vmatprep.mubr.f32.mxu0 %v235
    %594 = vmatmul.mubr.f32.gmra.mxu0 %v234
    %v595 = vpop.f32.mrf.mxu0
    %v596 = vadd.f32 %v495, %v595
    %v597 = vpop.f32.mrf.mxu0
    %v598 = vadd.f32 %v499, %v597
    %599 = vdwg.mxu0
    %600 = vmatprep.subr.mxu0 %v427
    %601 = vmatpush1.msra.mxu0 %v426
    %602 = vmatprep.subr.mxu0 %v423
    %603 = vmatpush1.msra.mxu0 %v422
    %604 = vmatprep.subr.mxu0 %v419
    %605 = vmatpush1.msra.mxu0 %v418
    %606 = vmatprep.subr.mxu0 %v415
    %607 = vmatpush1.msra.mxu0 %v414
    %608 = vmatprep.subr.mxu0 %v411
    %609 = vmatpush1.msra.mxu0 %v410
    %610 = vmatprep.subr.mxu0 %v407
    %611 = vmatpush1.msra.mxu0 %v406
    %612 = vmatprep.subr.mxu0 %v403
    %613 = vmatpush1.msra.mxu0 %v402
    %614 = vmatprep.subr.mxu0 %v399
    %615 = vmatpush1.msra.mxu0 %v398
    %616 = vmatprep.subr.mxu0 %v395
    %617 = vmatpush1.msra.mxu0 %v394
    %618 = vmatprep.subr.mxu0 %v391
    %619 = vmatpush1.msra.mxu0 %v390
    %620 = vmatprep.subr.mxu0 %v387
    %621 = vmatpush1.msra.mxu0 %v386
    %622 = vmatprep.subr.mxu0 %v383
    %623 = vmatpush1.msra.mxu0 %v382
    %624 = vmatprep.subr.mxu0 %v379
    %625 = vmatpush1.msra.mxu0 %v378
    %626 = vmatprep.subr.mxu0 %v375
    %627 = vmatpush1.msra.mxu0 %v374
    %628 = vmatprep.subr.mxu0 %v371
    %629 = vmatpush1.msra.mxu0 %v370
    %630 = vmatprep.subr.mxu0 %v367
    %631 = vmatpush1.msra.mxu0 %v366
    %632 = vmatprep.subr.mxu0 0.0
    %633 = vmatpush2.msra.mxu0 0.0
    %634 = vmatprep.subr.mxu0 %v521
    %635 = vmatpush2.msra.mxu0 %v518
    %636 = vmatprep.subr.mxu0 %v483
    %637 = vmatpush2.msra.mxu0 %v482
    %638 = vmatprep.subr.mxu0 %v479
    %639 = vmatpush2.msra.mxu0 %v478
    %640 = vmatprep.subr.mxu0 %v475
    %641 = vmatpush2.msra.mxu0 %v474
    %642 = vmatprep.subr.mxu0 %v471
    %643 = vmatpush2.msra.mxu0 %v470
    %644 = vmatprep.subr.mxu0 %v467
    %645 = vmatpush2.msra.mxu0 %v466
    %646 = vmatprep.subr.mxu0 %v463
    %647 = vmatpush2.msra.mxu0 %v462
    %648 = vmatprep.subr.mxu0 %v459
    %649 = vmatpush2.msra.mxu0 %v458
    %650 = vmatprep.subr.mxu0 %v455
    %651 = vmatpush2.msra.mxu0 %v454
    %652 = vmatprep.subr.mxu0 %v451
    %653 = vmatpush2.msra.mxu0 %v450
    %654 = vmatprep.subr.mxu0 %v447
    %655 = vmatpush2.msra.mxu0 %v446
    %656 = vmatprep.subr.mxu0 %v443
    %657 = vmatpush2.msra.mxu0 %v442
    %658 = vmatprep.subr.mxu0 %v439
    %659 = vmatpush2.msra.mxu0 %v438
    %660 = vmatprep.subr.mxu0 %v435
    %661 = vmatpush2.msra.mxu0 %v434
    %662 = vmatprep.subr.mxu0 %v431
    %663 = vmatpush2.msra.mxu0 %v430
    %664 = vmatprep.mubr.f32.mxu0 %v514
    %665 = vmatmul.mubr.f32.gmra.mxu0 %v236
    %v666 = vpop.f32.mrf.mxu0
    %v667 = vadd.f32 %v596, %v666
    %v668 = vpop.f32.mrf.mxu0
    %v669 = vadd.f32 %v598, %v668
    %670 = vdwg.mxu0
    %671 = vmatprep.subr.mxu0 %v301
    %672 = vmatpush1.msra.mxu0 %v300
    %673 = vmatprep.subr.mxu0 %v297
    %674 = vmatpush1.msra.mxu0 %v296
    %675 = vmatprep.subr.mxu0 %v293
    %676 = vmatpush1.msra.mxu0 %v292
    %677 = vmatprep.subr.mxu0 %v289
    %678 = vmatpush1.msra.mxu0 %v288
    %679 = vmatprep.subr.mxu0 %v285
    %680 = vmatpush1.msra.mxu0 %v284
    %681 = vmatprep.subr.mxu0 %v281
    %682 = vmatpush1.msra.mxu0 %v280
    %683 = vmatprep.subr.mxu0 %v277
    %684 = vmatpush1.msra.mxu0 %v276
    %685 = vmatprep.subr.mxu0 %v273
    %686 = vmatpush1.msra.mxu0 %v272
    %687 = vmatprep.subr.mxu0 %v269
    %688 = vmatpush1.msra.mxu0 %v268
    %689 = vmatprep.subr.mxu0 %v265
    %690 = vmatpush1.msra.mxu0 %v264
    %691 = vmatprep.subr.mxu0 %v261
    %692 = vmatpush1.msra.mxu0 %v260
    %693 = vmatprep.subr.mxu0 %v257
    %694 = vmatpush1.msra.mxu0 %v256
    %695 = vmatprep.subr.mxu0 %v253
    %696 = vmatpush1.msra.mxu0 %v252
    %697 = vmatprep.subr.mxu0 %v249
    %698 = vmatpush1.msra.mxu0 %v248
    %699 = vmatprep.subr.mxu0 %v245
    %700 = vmatpush1.msra.mxu0 %v244
    %701 = vmatprep.subr.mxu0 %v241
    %702 = vmatpush1.msra.mxu0 %v240
    %703 = vmatprep.subr.mxu0 %v365
    %704 = vmatpush2.msra.mxu0 %v364
    %705 = vmatprep.subr.mxu0 %v361
    %706 = vmatpush2.msra.mxu0 %v360
    %707 = vmatprep.subr.mxu0 %v357
    %708 = vmatpush2.msra.mxu0 %v356
    %709 = vmatprep.subr.mxu0 %v353
    %710 = vmatpush2.msra.mxu0 %v352
    %711 = vmatprep.subr.mxu0 %v349
    %712 = vmatpush2.msra.mxu0 %v348
    %713 = vmatprep.subr.mxu0 %v345
    %714 = vmatpush2.msra.mxu0 %v344
    %715 = vmatprep.subr.mxu0 %v341
    %716 = vmatpush2.msra.mxu0 %v340
    %717 = vmatprep.subr.mxu0 %v337
    %718 = vmatpush2.msra.mxu0 %v336
    %719 = vmatprep.subr.mxu0 %v333
    %720 = vmatpush2.msra.mxu0 %v332
    %721 = vmatprep.subr.mxu0 %v329
    %722 = vmatpush2.msra.mxu0 %v328
    %723 = vmatprep.subr.mxu0 %v325
    %724 = vmatpush2.msra.mxu0 %v324
    %725 = vmatprep.subr.mxu0 %v321
    %726 = vmatpush2.msra.mxu0 %v320
    %727 = vmatprep.subr.mxu0 %v317
    %728 = vmatpush2.msra.mxu0 %v316
    %729 = vmatprep.subr.mxu0 %v313
    %730 = vmatpush2.msra.mxu0 %v312
    %731 = vmatprep.subr.mxu0 %v309
    %732 = vmatpush2.msra.mxu0 %v308
    %733 = vmatprep.subr.mxu0 %v305
    %734 = vmatpush2.msra.mxu0 %v304
    %735 = vmatprep.mubr.f32.mxu0 %v235
    %736 = vmatmul.mubr.f32.gmra.mxu0 %v234
    %v737 = vpop.f32.mrf.mxu0
    %v738 = vadd.f32 %v503, %v737
    %v739 = vpop.f32.mrf.mxu0
    %v740 = vadd.f32 %v507, %v739
    %741 = vdwg.mxu0
    %742 = vmatprep.subr.mxu0 %v429
    %743 = vmatpush1.msra.mxu0 %v428
    %744 = vmatprep.subr.mxu0 %v425
    %745 = vmatpush1.msra.mxu0 %v424
    %746 = vmatprep.subr.mxu0 %v421
    %747 = vmatpush1.msra.mxu0 %v420
    %748 = vmatprep.subr.mxu0 %v417
    %749 = vmatpush1.msra.mxu0 %v416
    %750 = vmatprep.subr.mxu0 %v413
    %751 = vmatpush1.msra.mxu0 %v412
    %752 = vmatprep.subr.mxu0 %v409
    %753 = vmatpush1.msra.mxu0 %v408
    %754 = vmatprep.subr.mxu0 %v405
    %755 = vmatpush1.msra.mxu0 %v404
    %756 = vmatprep.subr.mxu0 %v401
    %757 = vmatpush1.msra.mxu0 %v400
    %758 = vmatprep.subr.mxu0 %v397
    %759 = vmatpush1.msra.mxu0 %v396
    %760 = vmatprep.subr.mxu0 %v393
    %761 = vmatpush1.msra.mxu0 %v392
    %762 = vmatprep.subr.mxu0 %v389
    %763 = vmatpush1.msra.mxu0 %v388
    %764 = vmatprep.subr.mxu0 %v385
    %765 = vmatpush1.msra.mxu0 %v384
    %766 = vmatprep.subr.mxu0 %v381
    %767 = vmatpush1.msra.mxu0 %v380
    %768 = vmatprep.subr.mxu0 %v377
    %769 = vmatpush1.msra.mxu0 %v376
    %770 = vmatprep.subr.mxu0 %v373
    %771 = vmatpush1.msra.mxu0 %v372
    %772 = vmatprep.subr.mxu0 %v369
    %773 = vmatpush1.msra.mxu0 %v368
    %774 = vmatprep.subr.mxu0 0.0
    %775 = vmatpush2.msra.mxu0 0.0
    %776 = vmatprep.subr.mxu0 %v527
    %777 = vmatpush2.msra.mxu0 %v524
    %778 = vmatprep.subr.mxu0 %v485
    %779 = vmatpush2.msra.mxu0 %v484
    %780 = vmatprep.subr.mxu0 %v481
    %781 = vmatpush2.msra.mxu0 %v480
    %782 = vmatprep.subr.mxu0 %v477
    %783 = vmatpush2.msra.mxu0 %v476
    %784 = vmatprep.subr.mxu0 %v473
    %785 = vmatpush2.msra.mxu0 %v472
    %786 = vmatprep.subr.mxu0 %v469
    %787 = vmatpush2.msra.mxu0 %v468
    %788 = vmatprep.subr.mxu0 %v465
    %789 = vmatpush2.msra.mxu0 %v464
    %790 = vmatprep.subr.mxu0 %v461
    %791 = vmatpush2.msra.mxu0 %v460
    %792 = vmatprep.subr.mxu0 %v457
    %793 = vmatpush2.msra.mxu0 %v456
    %794 = vmatprep.subr.mxu0 %v453
    %795 = vmatpush2.msra.mxu0 %v452
    %796 = vmatprep.subr.mxu0 %v449
    %797 = vmatpush2.msra.mxu0 %v448
    %798 = vmatprep.subr.mxu0 %v445
    %799 = vmatpush2.msra.mxu0 %v444
    %800 = vmatprep.subr.mxu0 %v441
    %801 = vmatpush2.msra.mxu0 %v440
    %802 = vmatprep.subr.mxu0 %v437
    %803 = vmatpush2.msra.mxu0 %v436
    %804 = vmatprep.subr.mxu0 %v433
    %805 = vmatpush2.msra.mxu0 %v432
    %806 = vmatprep.mubr.f32.mxu0 %v514
    %807 = vmatmul.mubr.f32.gmra.mxu0 %v236
    %v808 = vpop.f32.mrf.mxu0
    %v809 = vadd.f32 %v738, %v808
    %v810 = vpop.f32.mrf.mxu0
    %v811 = vadd.f32 %v740, %v810
    %812 = vdwg.mxu0
    %v813 = vmax.f32 %v667, 0.0
    %v814 = vmax.f32 %v669, 0.0
    %v815 = vmax.f32 %v809, 0.0
    %v816 = vmax.f32 %v811, 0.0
    %v817 = vld [vmem:[%s5] sm:$0xff]
    %v818 = vld [vmem:[%s5 + $0x8] sm:$0xff]
    %v819 = vld [vmem:[%s5 + $0x10] sm:$0xff]
    %v820 = vld [vmem:[%s5 + $0x18] sm:$0xff]
    %v821 = vld [vmem:[%s5 + $0x20] sm:$0xff]
    %v822 = vld [vmem:[%s5 + $0x28] sm:$0xff]
    %v823 = vld [vmem:[%s5 + $0x30] sm:$0xff]
    %v824 = vld [vmem:[%s5 + $0x38] sm:$0xff]
    %v825 = vld [vmem:[%s5 + $0x40] sm:$0xff]
    %v826 = vld [vmem:[%s5 + $0x48] sm:$0xff]
    %v827 = vld [vmem:[%s5 + $0x50] sm:$0xff]
    %v828 = vld [vmem:[%s5 + $0x58] sm:$0xff]
    %v829 = vld [vmem:[%s5 + $0x60] sm:$0xff]
    %v830 = vld [vmem:[%s5 + $0x68] sm:$0xff]
    %v831 = vld [vmem:[%s5 + $0x70] sm:$0xff]
    %v832 = vld [vmem:[%s5 + $0x78] sm:$0xff]
    %v833 = vld [vmem:[%s5 + $0x80] sm:$0xff]
    %v834 = vld [vmem:[%s5 + $0x88] sm:$0xff]
    %v835 = vld [vmem:[%s5 + $0x90] sm:$0xff]
    %v836 = vld [vmem:[%s5 + $0x98] sm:$0xff]
    %v837 = vld [vmem:[%s5 + $0xa0] sm:$0xff]
    %v838 = vld [vmem:[%s5 + $0xa8] sm:$0xff]
    %v839 = vld [vmem:[%s5 + $0xb0] sm:$0xff]
    %v840 = vld [vmem:[%s5 + $0xb8] sm:$0xff]
    %v841 = vld [vmem:[%s5 + $0xc0] sm:$0xff]
    %v842 = vld [vmem:[%s5 + $0xc8] sm:$0xff]
    %v843 = vld [vmem:[%s5 + $0xd0] sm:$0xff]
    %v844 = vld [vmem:[%s5 + $0xd8] sm:$0xff]
    %v845 = vld [vmem:[%s5 + $0xe0] sm:$0xff]
    %v846 = vld [vmem:[%s5 + $0xe8] sm:$0xff]
    %v847 = vld [vmem:[%s5 + $0xf0] sm:$0xff]
    %v848 = vld [vmem:[%s5 + $0xf8] sm:$0xff]
    %v849 = vld [vmem:[%s5 + $0x100] sm:$0xff]
    %v850 = vld [vmem:[%s5 + $0x108] sm:$0xff]
    %v851 = vld [vmem:[%s5 + $0x110] sm:$0xff]
    %v852 = vld [vmem:[%s5 + $0x118] sm:$0xff]
    %v853 = vld [vmem:[%s5 + $0x120] sm:$0xff]
    %v854 = vld [vmem:[%s5 + $0x128] sm:$0xff]
    %v855 = vld [vmem:[%s5 + $0x130] sm:$0xff]
    %v856 = vld [vmem:[%s5 + $0x138] sm:$0xff]
    %v857 = vld [vmem:[%s5 + $0x140] sm:$0xff]
    %v858 = vld [vmem:[%s5 + $0x148] sm:$0xff]
    %v859 = vld [vmem:[%s5 + $0x150] sm:$0xff]
    %v860 = vld [vmem:[%s5 + $0x158] sm:$0xff]
    %v861 = vld [vmem:[%s5 + $0x160] sm:$0xff]
    %v862 = vld [vmem:[%s5 + $0x168] sm:$0xff]
    %v863 = vld [vmem:[%s5 + $0x170] sm:$0xff]
    %v864 = vld [vmem:[%s5 + $0x178] sm:$0xff]
    %v865 = vld [vmem:[%s5 + $0x180] sm:$0xff]
    %v866 = vld [vmem:[%s5 + $0x188] sm:$0xff]
    %v867 = vld [vmem:[%s5 + $0x190] sm:$0xff]
    %v868 = vld [vmem:[%s5 + $0x198] sm:$0xff]
    %v869 = vld [vmem:[%s5 + $0x1a0] sm:$0xff]
    %v870 = vld [vmem:[%s5 + $0x1a8] sm:$0xff]
    %v871 = vld [vmem:[%s5 + $0x1b0] sm:$0xff]
    %v872 = vld [vmem:[%s5 + $0x1b8] sm:$0xff]
    %v873 = vld [vmem:[%s5 + $0x1c0] sm:$0xff]
    %v874 = vld [vmem:[%s5 + $0x1c8] sm:$0xff]
    %v875 = vld [vmem:[%s5 + $0x1d0] sm:$0xff]
    %v876 = vld [vmem:[%s5 + $0x1d8] sm:$0xff]
    %v877 = vld [vmem:[%s5 + $0x1e0] sm:$0xff]
    %v878 = vld [vmem:[%s5 + $0x1e8] sm:$0xff]
    %v879 = vld [vmem:[%s5 + $0x1f0] sm:$0xff]
    %v880 = vld [vmem:[%s5 + $0x1f8] sm:$0xff]
    %v881 = vld [vmem:[%s5 + $0x200] sm:$0xff]
    %v882 = vld [vmem:[%s5 + $0x208] sm:$0xff]
    %v883 = vld [vmem:[%s5 + $0x210] sm:$0xff]
    %v884 = vld [vmem:[%s5 + $0x218] sm:$0xff]
    %v885 = vld [vmem:[%s5 + $0x220] sm:$0xff]
    %v886 = vld [vmem:[%s5 + $0x228] sm:$0xff]
    %v887 = vld [vmem:[%s5 + $0x230] sm:$0xff]
    %v888 = vld [vmem:[%s5 + $0x238] sm:$0xff]
    %v889 = vld [vmem:[%s5 + $0x240] sm:$0xff]
    %v890 = vld [vmem:[%s5 + $0x248] sm:$0xff]
    %v891 = vld [vmem:[%s5 + $0x250] sm:$0xff]
    %v892 = vld [vmem:[%s5 + $0x258] sm:$0xff]
    %v893 = vld [vmem:[%s5 + $0x260] sm:$0xff]
    %v894 = vld [vmem:[%s5 + $0x268] sm:$0xff]
    %v895 = vld [vmem:[%s5 + $0x270] sm:$0xff]
    %v896 = vld [vmem:[%s5 + $0x278] sm:$0xff]
    %v897 = vld [vmem:[%s5 + $0x280] sm:$0xff]
    %v898 = vld [vmem:[%s5 + $0x288] sm:$0xff]
    %v899 = vld [vmem:[%s5 + $0x290] sm:$0xff]
    %v900 = vld [vmem:[%s5 + $0x298] sm:$0xff]
    %v901 = vld [vmem:[%s5 + $0x2a0] sm:$0xff]
    %v902 = vld [vmem:[%s5 + $0x2a8] sm:$0xff]
    %v903 = vld [vmem:[%s5 + $0x2b0] sm:$0xff]
    %v904 = vld [vmem:[%s5 + $0x2b8] sm:$0xff]
    %v905 = vld [vmem:[%s5 + $0x2c0] sm:$0xff]
    %v906 = vld [vmem:[%s5 + $0x2c8] sm:$0xff]
    %v907 = vld [vmem:[%s5 + $0x2d0] sm:$0xff]
    %v908 = vld [vmem:[%s5 + $0x2d8] sm:$0xff]
    %v909 = vld [vmem:[%s5 + $0x2e0] sm:$0xff]
    %v910 = vld [vmem:[%s5 + $0x2e8] sm:$0xff]
    %v911 = vld [vmem:[%s5 + $0x2f0] sm:$0xff]
    %v912 = vld [vmem:[%s5 + $0x2f8] sm:$0xff]
    %v913 = vld [vmem:[%s5 + $0x300] sm:$0xff]
    %v914 = vld [vmem:[%s5 + $0x308] sm:$0xff]
    %v915 = vld [vmem:[%s5 + $0x310] sm:$0xff]
    %v916 = vld [vmem:[%s5 + $0x318] sm:$0xff]
    %v917 = vld [vmem:[%s5 + $0x320] sm:$0xff]
    %v918 = vld [vmem:[%s5 + $0x328] sm:$0xff]
    %v919 = vld [vmem:[%s5 + $0x330] sm:$0xff]
    %v920 = vld [vmem:[%s5 + $0x338] sm:$0xff]
    %v921 = vld [vmem:[%s5 + $0x340] sm:$0xff]
    %v922 = vld [vmem:[%s5 + $0x348] sm:$0xff]
    %v923 = vld [vmem:[%s5 + $0x350] sm:$0xff]
    %v924 = vld [vmem:[%s5 + $0x358] sm:$0xff]
    %v925 = vld [vmem:[%s5 + $0x360] sm:$0xff]
    %v926 = vld [vmem:[%s5 + $0x368] sm:$0xff]
    %v927 = vld [vmem:[%s5 + $0x370] sm:$0xff]
    %v928 = vld [vmem:[%s5 + $0x378] sm:$0xff]
    %v929 = vld [vmem:[%s5 + $0x380] sm:$0xff]
    %v930 = vld [vmem:[%s5 + $0x388] sm:$0xff]
    %v931 = vld [vmem:[%s5 + $0x390] sm:$0xff]
    %v932 = vld [vmem:[%s5 + $0x398] sm:$0xff]
    %v933 = vld [vmem:[%s5 + $0x3a0] sm:$0xff]
    %v934 = vld [vmem:[%s5 + $0x3a8] sm:$0xff]
    %v935 = vld [vmem:[%s5 + $0x3b0] sm:$0xff]
    %v936 = vld [vmem:[%s5 + $0x3b8] sm:$0xff]
    %v937 = vld [vmem:[%s5 + $0x3c0] sm:$0xff]
    %v938 = vld [vmem:[%s5 + $0x3c8] sm:$0xff]
    %v939 = vld [vmem:[%s5 + $0x3d0] sm:$0xff]
    %v940 = vld [vmem:[%s5 + $0x3d8] sm:$0xff]
    %v941 = vld [vmem:[%s5 + $0x3e0] sm:$0xff]
    %v942 = vld [vmem:[%s5 + $0x3e8] sm:$0xff]
    %v943 = vld [vmem:[%s5 + $0x3f0] sm:$0xff]
    %v944 = vld [vmem:[%s5 + $0x3f8] sm:$0xff]
    %v945 = vld [vmem:[%s5 + $0x400] sm:$0xff]
    %v946 = vld [vmem:[%s5 + $0x408] sm:$0xff]
    %v947 = vld [vmem:[%s5 + $0x410] sm:$0xff]
    %v948 = vld [vmem:[%s5 + $0x418] sm:$0xff]
    %v949 = vld [vmem:[%s5 + $0x420] sm:$0xff]
    %v950 = vld [vmem:[%s5 + $0x428] sm:$0xff]
    %v951 = vld [vmem:[%s5 + $0x430] sm:$0xff]
    %v952 = vld [vmem:[%s5 + $0x438] sm:$0xff]
    %v953 = vld [vmem:[%s5 + $0x440] sm:$0xff]
    %v954 = vld [vmem:[%s5 + $0x448] sm:$0xff]
    %v955 = vld [vmem:[%s5 + $0x450] sm:$0xff]
    %v956 = vld [vmem:[%s5 + $0x458] sm:$0xff]
    %v957 = vld [vmem:[%s5 + $0x460] sm:$0xff]
    %v958 = vld [vmem:[%s5 + $0x468] sm:$0xff]
    %v959 = vld [vmem:[%s5 + $0x470] sm:$0xff]
    %v960 = vld [vmem:[%s5 + $0x478] sm:$0xff]
    %v961 = vld [vmem:[%s5 + $0x480] sm:$0xff]
    %v962 = vld [vmem:[%s5 + $0x488] sm:$0xff]
    %v963 = vld [vmem:[%s5 + $0x490] sm:$0xff]
    %v964 = vld [vmem:[%s5 + $0x498] sm:$0xff]
    %v965 = vld [vmem:[%s5 + $0x4a0] sm:$0xff]
    %v966 = vld [vmem:[%s5 + $0x4a8] sm:$0xff]
    %v967 = vld [vmem:[%s5 + $0x4b0] sm:$0xff]
    %v968 = vld [vmem:[%s5 + $0x4b8] sm:$0xff]
    %v969 = vld [vmem:[%s5 + $0x4c0] sm:$0xff]
    %v970 = vld [vmem:[%s5 + $0x4c8] sm:$0xff]
    %v971 = vld [vmem:[%s5 + $0x4d0] sm:$0xff]
    %v972 = vld [vmem:[%s5 + $0x4d8] sm:$0xff]
    %v973 = vld [vmem:[%s5 + $0x4e0] sm:$0xff]
    %v974 = vld [vmem:[%s5 + $0x4e8] sm:$0xff]
    %v975 = vld [vmem:[%s5 + $0x4f0] sm:$0xff]
    %v976 = vld [vmem:[%s5 + $0x4f8] sm:$0xff]
    %v977 = vld [vmem:[%s5 + $0x500] sm:$0xff]
    %v978 = vld [vmem:[%s5 + $0x508] sm:$0xff]
    %v979 = vld [vmem:[%s5 + $0x510] sm:$0xff]
    %v980 = vld [vmem:[%s5 + $0x518] sm:$0xff]
    %v981 = vld [vmem:[%s5 + $0x520] sm:$0xff]
    %v982 = vld [vmem:[%s5 + $0x528] sm:$0xff]
    %v983 = vld [vmem:[%s5 + $0x530] sm:$0xff]
    %v984 = vld [vmem:[%s5 + $0x538] sm:$0xff]
    %v985 = vld [vmem:[%s5 + $0x540] sm:$0xff]
    %v986 = vld [vmem:[%s5 + $0x548] sm:$0xff]
    %v987 = vld [vmem:[%s5 + $0x550] sm:$0xff]
    %v988 = vld [vmem:[%s5 + $0x558] sm:$0xff]
    %v989 = vld [vmem:[%s5 + $0x560] sm:$0xff]
    %v990 = vld [vmem:[%s5 + $0x568] sm:$0xff]
    %v991 = vld [vmem:[%s5 + $0x570] sm:$0xff]
    %v992 = vld [vmem:[%s5 + $0x578] sm:$0xff]
    %v993 = vld [vmem:[%s5 + $0x580] sm:$0xff]
    %v994 = vld [vmem:[%s5 + $0x588] sm:$0xff]
    %v995 = vld [vmem:[%s5 + $0x590] sm:$0xff]
    %v996 = vld [vmem:[%s5 + $0x598] sm:$0xff]
    %v997 = vld [vmem:[%s5 + $0x5a0] sm:$0xff]
    %v998 = vld [vmem:[%s5 + $0x5a8] sm:$0xff]
    %v999 = vld [vmem:[%s5 + $0x5b0] sm:$0xff]
    %v1000 = vld [vmem:[%s5 + $0x5b8] sm:$0xff]
    %v1001 = vld [vmem:[%s5 + $0x5c0] sm:$0xff]
    %v1002 = vld [vmem:[%s5 + $0x5c8] sm:$0xff]
    %v1003 = vld [vmem:[%s5 + $0x5d0] sm:$0xff]
    %v1004 = vld [vmem:[%s5 + $0x5d8] sm:$0xff]
    %v1005 = vld [vmem:[%s5 + $0x5e0] sm:$0xff]
    %v1006 = vld [vmem:[%s5 + $0x5e8] sm:$0xff]
    %v1007 = vld [vmem:[%s5 + $0x5f0] sm:$0xff]
    %v1008 = vld [vmem:[%s5 + $0x5f8] sm:$0xff]
    %v1009 = vld [vmem:[%s5 + $0x600] sm:$0xff]
    %v1010 = vld [vmem:[%s5 + $0x608] sm:$0xff]
    %v1011 = vld [vmem:[%s5 + $0x610] sm:$0xff]
    %v1012 = vld [vmem:[%s5 + $0x618] sm:$0xff]
    %v1013 = vld [vmem:[%s5 + $0x620] sm:$0xff]
    %v1014 = vld [vmem:[%s5 + $0x628] sm:$0xff]
    %v1015 = vld [vmem:[%s5 + $0x630] sm:$0xff]
    %v1016 = vld [vmem:[%s5 + $0x638] sm:$0xff]
    %v1017 = vld [vmem:[%s5 + $0x640] sm:$0xff]
    %v1018 = vld [vmem:[%s5 + $0x648] sm:$0xff]
    %v1019 = vld [vmem:[%s5 + $0x650] sm:$0xff]
    %v1020 = vld [vmem:[%s5 + $0x658] sm:$0xff]
    %v1021 = vld [vmem:[%s5 + $0x660] sm:$0xff]
    %v1022 = vld [vmem:[%s5 + $0x668] sm:$0xff]
    %v1023 = vld [vmem:[%s5 + $0x670] sm:$0xff]
    %v1024 = vld [vmem:[%s5 + $0x678] sm:$0xff]
    %v1025 = vld [vmem:[%s5 + $0x680] sm:$0xff]
    %v1026 = vld [vmem:[%s5 + $0x688] sm:$0xff]
    %v1027 = vld [vmem:[%s5 + $0x690] sm:$0xff]
    %v1028 = vld [vmem:[%s5 + $0x698] sm:$0xff]
    %v1029 = vld [vmem:[%s5 + $0x6a0] sm:$0xff]
    %v1030 = vld [vmem:[%s5 + $0x6a8] sm:$0xff]
    %v1031 = vld [vmem:[%s5 + $0x6b0] sm:$0xff]
    %v1032 = vld [vmem:[%s5 + $0x6b8] sm:$0xff]
    %v1033 = vld [vmem:[%s5 + $0x6c0] sm:$0xff]
    %v1034 = vld [vmem:[%s5 + $0x6c8] sm:$0xff]
    %v1035 = vld [vmem:[%s5 + $0x6d0] sm:$0xff]
    %v1036 = vld [vmem:[%s5 + $0x6d8] sm:$0xff]
    %v1037 = vld [vmem:[%s5 + $0x6e0] sm:$0xff]
    %v1038 = vld [vmem:[%s5 + $0x6e8] sm:$0xff]
    %v1039 = vld [vmem:[%s5 + $0x6f0] sm:$0xff]
    %v1040 = vld [vmem:[%s5 + $0x6f8] sm:$0xff]
    %v1041 = vld [vmem:[%s5 + $0x700] sm:$0xff]
    %v1042 = vld [vmem:[%s5 + $0x708] sm:$0xff]
    %v1043 = vld [vmem:[%s5 + $0x710] sm:$0xff]
    %v1044 = vld [vmem:[%s5 + $0x718] sm:$0xff]
    %v1045 = vld [vmem:[%s5 + $0x720] sm:$0xff]
    %v1046 = vld [vmem:[%s5 + $0x728] sm:$0xff]
    %v1047 = vld [vmem:[%s5 + $0x730] sm:$0xff]
    %v1048 = vld [vmem:[%s5 + $0x738] sm:$0xff]
    %v1049 = vld [vmem:[%s5 + $0x740] sm:$0xff]
    %v1050 = vld [vmem:[%s5 + $0x748] sm:$0xff]
    %v1051 = vld [vmem:[%s5 + $0x750] sm:$0xff]
    %v1052 = vld [vmem:[%s5 + $0x758] sm:$0xff]
    %v1053 = vld [vmem:[%s5 + $0x760] sm:$0xff]
    %v1054 = vld [vmem:[%s5 + $0x768] sm:$0xff]
    %v1055 = vld [vmem:[%s5 + $0x770] sm:$0xff]
    %v1056 = vld [vmem:[%s5 + $0x778] sm:$0xff]
    %v1057 = vld [vmem:[%s5 + $0x780] sm:$0xff]
    %v1058 = vld [vmem:[%s5 + $0x788] sm:$0xff]
    %v1059 = vld [vmem:[%s5 + $0x790] sm:$0xff]
    %v1060 = vld [vmem:[%s5 + $0x798] sm:$0xff]
    %v1061 = vld [vmem:[%s5 + $0x7a0] sm:$0xff]
    %v1062 = vld [vmem:[%s5 + $0x7a8] sm:$0xff]
    %v1063 = vld [vmem:[%s5 + $0x7b0] sm:$0xff]
    %v1064 = vld [vmem:[%s5 + $0x7b8] sm:$0xff]
    %v1065 = vld [vmem:[%s5 + $0x7c0] sm:$0xff]
    %v1066 = vld [vmem:[%s5 + $0x7c8] sm:$0xff]
    %v1067 = vld [vmem:[%s5 + $0x7d0] sm:$0xff]
    %v1068 = vld [vmem:[%s5 + $0x7d8] sm:$0xff]
    %v1069 = vld [vmem:[%s5 + $0x7e0] sm:$0xff]
    %v1070 = vld [vmem:[%s5 + $0x7e8] sm:$0xff]
    %v1071 = vld [vmem:[%s5 + $0x7f0] sm:$0xff]
    %v1072 = vld [vmem:[%s5 + $0x7f8] sm:$0xff]
    %v1073 = vld [vmem:[%s5 + $0x800] sm:$0xff]
    %v1074 = vld [vmem:[%s5 + $0x808] sm:$0xff]
    %v1075 = vld [vmem:[%s5 + $0x810] sm:$0xff]
    %v1076 = vld [vmem:[%s5 + $0x818] sm:$0xff]
    %v1077 = vld [vmem:[%s5 + $0x820] sm:$0xff]
    %v1078 = vld [vmem:[%s5 + $0x828] sm:$0xff]
    %v1079 = vld [vmem:[%s5 + $0x830] sm:$0xff]
    %v1080 = vld [vmem:[%s5 + $0x838] sm:$0xff]
    %v1081 = vld [vmem:[%s5 + $0x840] sm:$0xff]
    %v1082 = vld [vmem:[%s5 + $0x848] sm:$0xff]
    %v1083 = vld [vmem:[%s5 + $0x850] sm:$0xff]
    %v1084 = vld [vmem:[%s5 + $0x858] sm:$0xff]
    %v1085 = vld [vmem:[%s5 + $0x860] sm:$0xff]
    %v1086 = vld [vmem:[%s5 + $0x868] sm:$0xff]
    %v1087 = vld [vmem:[%s5 + $0x870] sm:$0xff]
    %v1088 = vld [vmem:[%s5 + $0x878] sm:$0xff]
    %v1089 = vld [vmem:[%s5 + $0x880] sm:$0xff]
    %v1090 = vld [vmem:[%s5 + $0x888] sm:$0xff]
    %v1091 = vld [vmem:[%s5 + $0x890] sm:$0xff]
    %v1092 = vld [vmem:[%s5 + $0x898] sm:$0xff]
    %v1093 = vld [vmem:[%s5 + $0x8a0] sm:$0xff]
    %v1094 = vld [vmem:[%s5 + $0x8a8] sm:$0xff]
    %v1095 = vld [vmem:[%s5 + $0x8b0] sm:$0xff]
    %v1096 = vld [vmem:[%s5 + $0x8b8] sm:$0xff]
    %v1097 = vld [vmem:[%s5 + $0x8c0] sm:$0xff]
    %v1098 = vld [vmem:[%s5 + $0x8c8] sm:$0xff]
    %v1099 = vld [vmem:[%s5 + $0x8d0] sm:$0xff]
    %v1100 = vld [vmem:[%s5 + $0x8d8] sm:$0xff]
    %v1101 = vld [vmem:[%s5 + $0x8e0] sm:$0xff]
    %v1102 = vld [vmem:[%s5 + $0x8e8] sm:$0xff]
    %v1103 = vld [vmem:[%s5 + $0x8f0] sm:$0xff]
    %v1104 = vld [vmem:[%s5 + $0x8f8] sm:$0xff]
    %v1105 = vld [vmem:[%s5 + $0x900] sm:$0xff]
    %v1106 = vld [vmem:[%s5 + $0x908] sm:$0xff]
    %v1107 = vld [vmem:[%s5 + $0x910] sm:$0xff]
    %v1108 = vld [vmem:[%s5 + $0x918] sm:$0xff]
    %v1109 = vld [vmem:[%s5 + $0x920] sm:$0xff]
    %v1110 = vld [vmem:[%s5 + $0x928] sm:$0xff]
    %v1111 = vld [vmem:[%s5 + $0x930] sm:$0xff]
    %v1112 = vld [vmem:[%s5 + $0x938] sm:$0xff]
    %v1113 = vld [vmem:[%s5 + $0x940] sm:$0xff]
    %v1114 = vld [vmem:[%s5 + $0x948] sm:$0xff]
    %v1115 = vld [vmem:[%s5 + $0x950] sm:$0xff]
    %v1116 = vld [vmem:[%s5 + $0x958] sm:$0xff]
    %v1117 = vld [vmem:[%s5 + $0x960] sm:$0xff]
    %v1118 = vld [vmem:[%s5 + $0x968] sm:$0xff]
    %v1119 = vld [vmem:[%s5 + $0x970] sm:$0xff]
    %v1120 = vld [vmem:[%s5 + $0x978] sm:$0xff]
    %v1121 = vld [vmem:[%s5 + $0x980] sm:$0xff]
    %v1122 = vld [vmem:[%s5 + $0x988] sm:$0xff]
    %v1123 = vld [vmem:[%s5 + $0x990] sm:$0xff]
    %v1124 = vld [vmem:[%s5 + $0x998] sm:$0xff]
    %v1125 = vld [vmem:[%s5 + $0x9a0] sm:$0xff]
    %v1126 = vld [vmem:[%s5 + $0x9a8] sm:$0xff]
    %v1127 = vld [vmem:[%s5 + $0x9b0] sm:$0xff]
    %v1128 = vld [vmem:[%s5 + $0x9b8] sm:$0xff]
    %v1129 = vld [vmem:[%s5 + $0x9c0] sm:$0xff]
    %v1130 = vld [vmem:[%s5 + $0x9c8] sm:$0xff]
    %v1131 = vld [vmem:[%s5 + $0x9d0] sm:$0xff]
    %v1132 = vld [vmem:[%s5 + $0x9d8] sm:$0xff]
    %v1133 = vld [vmem:[%s5 + $0x9e0] sm:$0xff]
    %v1134 = vld [vmem:[%s5 + $0x9e8] sm:$0xff]
    %v1135 = vld [vmem:[%s5 + $0x9f0] sm:$0xff]
    %v1136 = vld [vmem:[%s5 + $0x9f8] sm:$0xff]
    %v1137 = vld [vmem:[%s5 + $0xa00] sm:$0xff]
    %v1138 = vld [vmem:[%s5 + $0xa08] sm:$0xff]
    %v1139 = vld [vmem:[%s5 + $0xa10] sm:$0xff]
    %v1140 = vld [vmem:[%s5 + $0xa18] sm:$0xff]
    %v1141 = vld [vmem:[%s5 + $0xa20] sm:$0xff]
    %v1142 = vld [vmem:[%s5 + $0xa28] sm:$0xff]
    %v1143 = vld [vmem:[%s5 + $0xa30] sm:$0xff]
    %v1144 = vld [vmem:[%s5 + $0xa38] sm:$0xff]
    %v1145 = vld [vmem:[%s5 + $0xa40] sm:$0xff]
    %v1146 = vld [vmem:[%s5 + $0xa48] sm:$0xff]
    %v1147 = vld [vmem:[%s5 + $0xa50] sm:$0xff]
    %v1148 = vld [vmem:[%s5 + $0xa58] sm:$0xff]
    %v1149 = vld [vmem:[%s5 + $0xa60] sm:$0xff]
    %v1150 = vld [vmem:[%s5 + $0xa68] sm:$0xff]
    %v1151 = vld [vmem:[%s5 + $0xa70] sm:$0xff]
    %v1152 = vld [vmem:[%s5 + $0xa78] sm:$0xff]
    %v1153 = vld [vmem:[%s5 + $0xa80] sm:$0xff]
    %v1154 = vld [vmem:[%s5 + $0xa88] sm:$0xff]
    %v1155 = vld [vmem:[%s5 + $0xa90] sm:$0xff]
    %v1156 = vld [vmem:[%s5 + $0xa98] sm:$0xff]
    %v1157 = vld [vmem:[%s5 + $0xaa0] sm:$0xff]
    %v1158 = vld [vmem:[%s5 + $0xaa8] sm:$0xff]
    %v1159 = vld [vmem:[%s5 + $0xab0] sm:$0xff]
    %v1160 = vld [vmem:[%s5 + $0xab8] sm:$0xff]
    %v1161 = vld [vmem:[%s5 + $0xac0] sm:$0xff]
    %v1162 = vld [vmem:[%s5 + $0xac8] sm:$0xff]
    %v1163 = vld [vmem:[%s5 + $0xad0] sm:$0xff]
    %v1164 = vld [vmem:[%s5 + $0xad8] sm:$0xff]
    %v1165 = vld [vmem:[%s5 + $0xae0] sm:$0xff]
    %v1166 = vld [vmem:[%s5 + $0xae8] sm:$0xff]
    %v1167 = vld [vmem:[%s5 + $0xaf0] sm:$0xff]
    %v1168 = vld [vmem:[%s5 + $0xaf8] sm:$0xff]
    %v1169 = vld [vmem:[%s5 + $0xb00] sm:$0xff]
    %v1170 = vld [vmem:[%s5 + $0xb08] sm:$0xff]
    %v1171 = vld [vmem:[%s5 + $0xb10] sm:$0xff]
    %v1172 = vld [vmem:[%s5 + $0xb18] sm:$0xff]
    %v1173 = vld [vmem:[%s5 + $0xb20] sm:$0xff]
    %v1174 = vld [vmem:[%s5 + $0xb28] sm:$0xff]
    %v1175 = vld [vmem:[%s5 + $0xb30] sm:$0xff]
    %v1176 = vld [vmem:[%s5 + $0xb38] sm:$0xff]
    %v1177 = vld [vmem:[%s5 + $0xb40] sm:$0xff]
    %v1178 = vld [vmem:[%s5 + $0xb48] sm:$0xff]
    %v1179 = vld [vmem:[%s5 + $0xb50] sm:$0xff]
    %v1180 = vld [vmem:[%s5 + $0xb58] sm:$0xff]
    %v1181 = vld [vmem:[%s5 + $0xb60] sm:$0xff]
    %v1182 = vld [vmem:[%s5 + $0xb68] sm:$0xff]
    %v1183 = vld [vmem:[%s5 + $0xb70] sm:$0xff]
    %v1184 = vld [vmem:[%s5 + $0xb78] sm:$0xff]
    %v1185 = vld [vmem:[%s5 + $0xb80] sm:$0xff]
    %v1186 = vld [vmem:[%s5 + $0xb88] sm:$0xff]
    %v1187 = vld [vmem:[%s5 + $0xb90] sm:$0xff]
    %v1188 = vld [vmem:[%s5 + $0xb98] sm:$0xff]
    %v1189 = vld [vmem:[%s5 + $0xba0] sm:$0xff]
    %v1190 = vld [vmem:[%s5 + $0xba8] sm:$0xff]
    %v1191 = vld [vmem:[%s5 + $0xbb0] sm:$0xff]
    %v1192 = vld [vmem:[%s5 + $0xbb8] sm:$0xff]
    %v1193 = vld [vmem:[%s5 + $0xbc0] sm:$0xff]
    %v1194 = vld [vmem:[%s5 + $0xbc8] sm:$0xff]
    %v1195 = vld [vmem:[%s5 + $0xbd0] sm:$0xff]
    %v1196 = vld [vmem:[%s5 + $0xbd8] sm:$0xff]
    %v1197 = vld [vmem:[%s5 + $0xbe0] sm:$0xff]
    %v1198 = vld [vmem:[%s5 + $0xbe8] sm:$0xff]
    %v1199 = vld [vmem:[%s5 + $0xbf0] sm:$0xff]
    %v1200 = vld [vmem:[%s5 + $0xbf8] sm:$0xff]
    %v1201 = vld [vmem:[%s5 + $0xc00] sm:$0xff]
    %v1202 = vld [vmem:[%s5 + $0xc08] sm:$0xff]
    %v1203 = vld [vmem:[%s5 + $0xc10] sm:$0xff]
    %v1204 = vld [vmem:[%s5 + $0xc18] sm:$0xff]
    %v1205 = vld [vmem:[%s5 + $0xc20] sm:$0xff]
    %v1206 = vld [vmem:[%s5 + $0xc28] sm:$0xff]
    %v1207 = vld [vmem:[%s5 + $0xc30] sm:$0xff]
    %v1208 = vld [vmem:[%s5 + $0xc38] sm:$0xff]
    %v1209 = vld [vmem:[%s5 + $0xc40] sm:$0xff]
    %v1210 = vld [vmem:[%s5 + $0xc48] sm:$0xff]
    %v1211 = vld [vmem:[%s5 + $0xc50] sm:$0xff]
    %v1212 = vld [vmem:[%s5 + $0xc58] sm:$0xff]
    %v1213 = vld [vmem:[%s5 + $0xc60] sm:$0xff]
    %v1214 = vld [vmem:[%s5 + $0xc68] sm:$0xff]
    %v1215 = vld [vmem:[%s5 + $0xc70] sm:$0xff]
    %v1216 = vld [vmem:[%s5 + $0xc78] sm:$0xff]
    %v1217 = vld [vmem:[%s5 + $0xc80] sm:$0xff]
    %v1218 = vld [vmem:[%s5 + $0xc88] sm:$0xff]
    %v1219 = vld [vmem:[%s5 + $0xc90] sm:$0xff]
    %v1220 = vld [vmem:[%s5 + $0xc98] sm:$0xff]
    %v1221 = vld [vmem:[%s5 + $0xca0] sm:$0xff]
    %v1222 = vld [vmem:[%s5 + $0xca8] sm:$0xff]
    %v1223 = vld [vmem:[%s5 + $0xcb0] sm:$0xff]
    %v1224 = vld [vmem:[%s5 + $0xcb8] sm:$0xff]
    %v1225 = vld [vmem:[%s5 + $0xcc0] sm:$0xff]
    %v1226 = vld [vmem:[%s5 + $0xcc8] sm:$0xff]
    %v1227 = vld [vmem:[%s5 + $0xcd0] sm:$0xff]
    %v1228 = vld [vmem:[%s5 + $0xcd8] sm:$0xff]
    %v1229 = vld [vmem:[%s5 + $0xce0] sm:$0xff]
    %v1230 = vld [vmem:[%s5 + $0xce8] sm:$0xff]
    %v1231 = vld [vmem:[%s5 + $0xcf0] sm:$0xff]
    %v1232 = vld [vmem:[%s5 + $0xcf8] sm:$0xff]
    %v1233 = vld [vmem:[%s5 + $0xd00] sm:$0xff]
    %v1234 = vld [vmem:[%s5 + $0xd08] sm:$0xff]
    %v1235 = vld [vmem:[%s5 + $0xd10] sm:$0xff]
    %v1236 = vld [vmem:[%s5 + $0xd18] sm:$0xff]
    %v1237 = vld [vmem:[%s5 + $0xd20] sm:$0xff]
    %v1238 = vld [vmem:[%s5 + $0xd28] sm:$0xff]
    %v1239 = vld [vmem:[%s5 + $0xd30] sm:$0xff]
    %v1240 = vld [vmem:[%s5 + $0xd38] sm:$0xff]
    %v1241 = vld [vmem:[%s5 + $0xd40] sm:$0xff]
    %v1242 = vld [vmem:[%s5 + $0xd48] sm:$0xff]
    %v1243 = vld [vmem:[%s5 + $0xd50] sm:$0xff]
    %v1244 = vld [vmem:[%s5 + $0xd58] sm:$0xff]
    %v1245 = vld [vmem:[%s5 + $0xd60] sm:$0xff]
    %v1246 = vld [vmem:[%s5 + $0xd68] sm:$0xff]
    %v1247 = vld [vmem:[%s5 + $0xd70] sm:$0xff]
    %v1248 = vld [vmem:[%s5 + $0xd78] sm:$0xff]
    %v1249 = vld [vmem:[%s5 + $0xd80] sm:$0xff]
    %v1250 = vld [vmem:[%s5 + $0xd88] sm:$0xff]
    %v1251 = vld [vmem:[%s5 + $0xd90] sm:$0xff]
    %v1252 = vld [vmem:[%s5 + $0xd98] sm:$0xff]
    %v1253 = vld [vmem:[%s5 + $0xda0] sm:$0xff]
    %v1254 = vld [vmem:[%s5 + $0xda8] sm:$0xff]
    %v1255 = vld [vmem:[%s5 + $0xdb0] sm:$0xff]
    %v1256 = vld [vmem:[%s5 + $0xdb8] sm:$0xff]
    %v1257 = vld [vmem:[%s5 + $0xdc0] sm:$0xff]
    %v1258 = vld [vmem:[%s5 + $0xdc8] sm:$0xff]
    %v1259 = vld [vmem:[%s5 + $0xdd0] sm:$0xff]
    %v1260 = vld [vmem:[%s5 + $0xdd8] sm:$0xff]
    %v1261 = vld [vmem:[%s5 + $0xde0] sm:$0xff]
    %v1262 = vld [vmem:[%s5 + $0xde8] sm:$0xff]
    %v1263 = vld [vmem:[%s5 + $0xdf0] sm:$0xff]
    %v1264 = vld [vmem:[%s5 + $0xdf8] sm:$0xff]
    %v1265 = vld [vmem:[%s5 + $0xe00] sm:$0xff]
    %v1266 = vld [vmem:[%s5 + $0xe08] sm:$0xff]
    %v1267 = vld [vmem:[%s5 + $0xe10] sm:$0xff]
    %v1268 = vld [vmem:[%s5 + $0xe18] sm:$0xff]
    %v1269 = vld [vmem:[%s5 + $0xe20] sm:$0xff]
    %v1270 = vld [vmem:[%s5 + $0xe28] sm:$0xff]
    %v1271 = vld [vmem:[%s5 + $0xe30] sm:$0xff]
    %v1272 = vld [vmem:[%s5 + $0xe38] sm:$0xff]
    %v1273 = vld [vmem:[%s5 + $0xe40] sm:$0xff]
    %v1274 = vld [vmem:[%s5 + $0xe48] sm:$0xff]
    %v1275 = vld [vmem:[%s5 + $0xe50] sm:$0xff]
    %v1276 = vld [vmem:[%s5 + $0xe58] sm:$0xff]
    %v1277 = vld [vmem:[%s5 + $0xe60] sm:$0xff]
    %v1278 = vld [vmem:[%s5 + $0xe68] sm:$0xff]
    %v1279 = vld [vmem:[%s5 + $0xe70] sm:$0xff]
    %v1280 = vld [vmem:[%s5 + $0xe78] sm:$0xff]
    %v1281 = vld [vmem:[%s5 + $0xe80] sm:$0xff]
    %v1282 = vld [vmem:[%s5 + $0xe88] sm:$0xff]
    %v1283 = vld [vmem:[%s5 + $0xe90] sm:$0xff]
    %v1284 = vld [vmem:[%s5 + $0xe98] sm:$0xff]
    %v1285 = vld [vmem:[%s5 + $0xea0] sm:$0xff]
    %v1286 = vld [vmem:[%s5 + $0xea8] sm:$0xff]
    %v1287 = vld [vmem:[%s5 + $0xeb0] sm:$0xff]
    %v1288 = vld [vmem:[%s5 + $0xeb8] sm:$0xff]
    %v1289 = vld [vmem:[%s5 + $0xec0] sm:$0xff]
    %v1290 = vld [vmem:[%s5 + $0xec8] sm:$0xff]
    %v1291 = vld [vmem:[%s5 + $0xed0] sm:$0xff]
    %v1292 = vld [vmem:[%s5 + $0xed8] sm:$0xff]
    %v1293 = vld [vmem:[%s5 + $0xee0] sm:$0xff]
    %v1294 = vld [vmem:[%s5 + $0xee8] sm:$0xff]
    %v1295 = vld [vmem:[%s5 + $0xef0] sm:$0xff]
    %v1296 = vld [vmem:[%s5 + $0xef8] sm:$0xff]
    %v1297 = vld [vmem:[%s5 + $0xf00] sm:$0xff]
    %v1298 = vld [vmem:[%s5 + $0xf08] sm:$0xff]
    %v1299 = vld [vmem:[%s5 + $0xf10] sm:$0xff]
    %v1300 = vld [vmem:[%s5 + $0xf18] sm:$0xff]
    %v1301 = vld [vmem:[%s5 + $0xf20] sm:$0xff]
    %v1302 = vld [vmem:[%s5 + $0xf28] sm:$0xff]
    %v1303 = vld [vmem:[%s5 + $0xf30] sm:$0xff]
    %v1304 = vld [vmem:[%s5 + $0xf38] sm:$0xff]
    %v1305 = vld [vmem:[%s5 + $0xf40] sm:$0xff]
    %v1306 = vld [vmem:[%s5 + $0xf48] sm:$0xff]
    %v1307 = vld [vmem:[%s5 + $0xf50] sm:$0xff]
    %v1308 = vld [vmem:[%s5 + $0xf58] sm:$0xff]
    %v1309 = vld [vmem:[%s5 + $0xf60] sm:$0xff]
    %v1310 = vld [vmem:[%s5 + $0xf68] sm:$0xff]
    %v1311 = vld [vmem:[%s5 + $0xf70] sm:$0xff]
    %v1312 = vld [vmem:[%s5 + $0xf78] sm:$0xff]
    %v1313 = vld [vmem:[%s5 + $0xf80] sm:$0xff]
    %v1314 = vld [vmem:[%s5 + $0xf88] sm:$0xff]
    %v1315 = vld [vmem:[%s5 + $0xf90] sm:$0xff]
    %v1316 = vld [vmem:[%s5 + $0xf98] sm:$0xff]
    %v1317 = vld [vmem:[%s5 + $0xfa0] sm:$0xff]
    %v1318 = vld [vmem:[%s5 + $0xfa8] sm:$0xff]
    %v1319 = vld [vmem:[%s5 + $0xfb0] sm:$0xff]
    %v1320 = vld [vmem:[%s5 + $0xfb8] sm:$0xff]
    %v1321 = vld [vmem:[%s5 + $0xfc0] sm:$0xff]
    %v1322 = vld [vmem:[%s5 + $0xfc8] sm:$0xff]
    %v1323 = vld [vmem:[%s5 + $0xfd0] sm:$0xff]
    %v1324 = vld [vmem:[%s5 + $0xfd8] sm:$0xff]
    %v1325 = vld [vmem:[%s5 + $0xfe0] sm:$0xff]
    %v1326 = vld [vmem:[%s5 + $0xfe8] sm:$0xff]
    %v1327 = vld [vmem:[%s5 + $0xff0] sm:$0xff]
    %v1328 = vld [vmem:[%s5 + $0xff8] sm:$0xff]
    %v1329 = vld [vmem:[%s5 + $0x1000] sm:$0xff]
    %v1330 = vld [vmem:[%s5 + $0x1008] sm:$0xff]
    %v1331 = vld [vmem:[%s5 + $0x1010] sm:$0xff]
    %v1332 = vld [vmem:[%s5 + $0x1018] sm:$0xff]
    %v1333 = vld [vmem:[%s5 + $0x1020] sm:$0xff]
    %v1334 = vld [vmem:[%s5 + $0x1028] sm:$0xff]
    %v1335 = vld [vmem:[%s5 + $0x1030] sm:$0xff]
    %v1336 = vld [vmem:[%s5 + $0x1038] sm:$0xff]
    %v1337 = vld [vmem:[%s5 + $0x1040] sm:$0xff]
    %v1338 = vld [vmem:[%s5 + $0x1048] sm:$0xff]
    %v1339 = vld [vmem:[%s5 + $0x1050] sm:$0xff]
    %v1340 = vld [vmem:[%s5 + $0x1058] sm:$0xff]
    %v1341 = vld [vmem:[%s5 + $0x1060] sm:$0xff]
    %v1342 = vld [vmem:[%s5 + $0x1068] sm:$0xff]
    %v1343 = vld [vmem:[%s5 + $0x1070] sm:$0xff]
    %v1344 = vld [vmem:[%s5 + $0x1078] sm:$0xff]
    %v1345 = vld [vmem:[%s5 + $0x1080] sm:$0xff]
    %v1346 = vld [vmem:[%s5 + $0x1088] sm:$0xff]
    %v1347 = vld [vmem:[%s5 + $0x1090] sm:$0xff]
    %v1348 = vld [vmem:[%s5 + $0x1098] sm:$0xff]
    %v1349 = vld [vmem:[%s5 + $0x10a0] sm:$0xff]
    %v1350 = vld [vmem:[%s5 + $0x10a8] sm:$0xff]
    %v1351 = vld [vmem:[%s5 + $0x10b0] sm:$0xff]
    %v1352 = vld [vmem:[%s5 + $0x10b8] sm:$0xff]
    %v1353 = vld [vmem:[%s5 + $0x10c0] sm:$0xff]
    %v1354 = vld [vmem:[%s5 + $0x10c8] sm:$0xff]
    %v1355 = vld [vmem:[%s5 + $0x10d0] sm:$0xff]
    %v1356 = vld [vmem:[%s5 + $0x10d8] sm:$0xff]
    %v1357 = vld [vmem:[%s5 + $0x10e0] sm:$0xff]
    %v1358 = vld [vmem:[%s5 + $0x10e8] sm:$0xff]
    %v1359 = vld [vmem:[%s5 + $0x10f0] sm:$0xff]
    %v1360 = vld [vmem:[%s5 + $0x10f8] sm:$0xff]
    %v1361 = vld [vmem:[%s5 + $0x1100] sm:$0xff]
    %v1362 = vld [vmem:[%s5 + $0x1108] sm:$0xff]
    %v1363 = vld [vmem:[%s5 + $0x1110] sm:$0xff]
    %v1364 = vld [vmem:[%s5 + $0x1118] sm:$0xff]
    %v1365 = vld [vmem:[%s5 + $0x1120] sm:$0xff]
    %v1366 = vld [vmem:[%s5 + $0x1128] sm:$0xff]
    %v1367 = vld [vmem:[%s5 + $0x1130] sm:$0xff]
    %v1368 = vld [vmem:[%s5 + $0x1138] sm:$0xff]
    %v1369 = vld [vmem:[%s5 + $0x1140] sm:$0xff]
    %v1370 = vld [vmem:[%s5 + $0x1148] sm:$0xff]
    %v1371 = vld [vmem:[%s5 + $0x1150] sm:$0xff]
    %v1372 = vld [vmem:[%s5 + $0x1158] sm:$0xff]
    %v1373 = vld [vmem:[%s5 + $0x1160] sm:$0xff]
    %v1374 = vld [vmem:[%s5 + $0x1168] sm:$0xff]
    %v1375 = vld [vmem:[%s5 + $0x1170] sm:$0xff]
    %v1376 = vld [vmem:[%s5 + $0x1178] sm:$0xff]
    %v1377 = vld [vmem:[%s5 + $0x1180] sm:$0xff]
    %v1378 = vld [vmem:[%s5 + $0x1188] sm:$0xff]
    %v1379 = vld [vmem:[%s5 + $0x1190] sm:$0xff]
    %v1380 = vld [vmem:[%s5 + $0x1198] sm:$0xff]
    %v1381 = vld [vmem:[%s5 + $0x11a0] sm:$0xff]
    %v1382 = vld [vmem:[%s5 + $0x11a8] sm:$0xff]
    %v1383 = vld [vmem:[%s5 + $0x11b0] sm:$0xff]
    %v1384 = vld [vmem:[%s5 + $0x11b8] sm:$0xff]
    %v1385 = vld [vmem:[%s5 + $0x11c0] sm:$0xff]
    %v1386 = vld [vmem:[%s5 + $0x11c8] sm:$0xff]
    %v1387 = vld [vmem:[%s5 + $0x11d0] sm:$0xff]
    %v1388 = vld [vmem:[%s5 + $0x11d8] sm:$0xff]
    %v1389 = vld [vmem:[%s5 + $0x11e0] sm:$0xff]
    %v1390 = vld [vmem:[%s5 + $0x11e8] sm:$0xff]
    %v1391 = vld [vmem:[%s5 + $0x11f0] sm:$0xff]
    %v1392 = vld [vmem:[%s5 + $0x11f8] sm:$0xff]
    %v1393 = vld [vmem:[%s5 + $0x1200] sm:$0xff]
    %v1394 = vld [vmem:[%s5 + $0x1208] sm:$0xff]
    %v1395 = vld [vmem:[%s5 + $0x1210] sm:$0xff]
    %v1396 = vld [vmem:[%s5 + $0x1218] sm:$0xff]
    %v1397 = vld [vmem:[%s5 + $0x1220] sm:$0xff]
    %v1398 = vld [vmem:[%s5 + $0x1228] sm:$0xff]
    %v1399 = vld [vmem:[%s5 + $0x1230] sm:$0xff]
    %v1400 = vld [vmem:[%s5 + $0x1238] sm:$0xff]
    %v1401 = vld [vmem:[%s5 + $0x1240] sm:$0xff]
    %v1402 = vld [vmem:[%s5 + $0x1248] sm:$0xff]
    %v1403 = vld [vmem:[%s5 + $0x1250] sm:$0xff]
    %v1404 = vld [vmem:[%s5 + $0x1258] sm:$0xff]
    %v1405 = vld [vmem:[%s5 + $0x1260] sm:$0xff]
    %v1406 = vld [vmem:[%s5 + $0x1268] sm:$0xff]
    %v1407 = vld [vmem:[%s5 + $0x1270] sm:$0xff]
    %v1408 = vld [vmem:[%s5 + $0x1278] sm:$0xff]
    %v1409 = vld [vmem:[%s5 + $0x1280] sm:$0xff]
    %v1410 = vld [vmem:[%s5 + $0x1288] sm:$0xff]
    %v1411 = vld [vmem:[%s5 + $0x1290] sm:$0xff]
    %v1412 = vld [vmem:[%s5 + $0x1298] sm:$0xff]
    %v1413 = vld [vmem:[%s5 + $0x12a0] sm:$0xff]
    %v1414 = vld [vmem:[%s5 + $0x12a8] sm:$0xff]
    %v1415 = vld [vmem:[%s5 + $0x12b0] sm:$0xff]
    %v1416 = vld [vmem:[%s5 + $0x12b8] sm:$0xff]
    %v1417 = vld [vmem:[%s5 + $0x12c0] sm:$0xff]
    %v1418 = vld [vmem:[%s5 + $0x12c8] sm:$0xff]
    %v1419 = vld [vmem:[%s5 + $0x12d0] sm:$0xff]
    %v1420 = vld [vmem:[%s5 + $0x12d8] sm:$0xff]
    %v1421 = vld [vmem:[%s5 + $0x12e0] sm:$0xff]
    %v1422 = vld [vmem:[%s5 + $0x12e8] sm:$0xff]
    %v1423 = vld [vmem:[%s5 + $0x12f0] sm:$0xff]
    %v1424 = vld [vmem:[%s5 + $0x12f8] sm:$0xff]
    %v1425 = vld [vmem:[%s5 + $0x1300] sm:$0xff]
    %v1426 = vld [vmem:[%s5 + $0x1308] sm:$0xff]
    %v1427 = vld [vmem:[%s5 + $0x1310] sm:$0xff]
    %v1428 = vld [vmem:[%s5 + $0x1318] sm:$0xff]
    %v1429 = vld [vmem:[%s5 + $0x1320] sm:$0xff]
    %v1430 = vld [vmem:[%s5 + $0x1328] sm:$0xff]
    %v1431 = vld [vmem:[%s5 + $0x1330] sm:$0xff]
    %v1432 = vld [vmem:[%s5 + $0x1338] sm:$0xff]
    %v1433 = vld [vmem:[%s5 + $0x1340] sm:$0xff]
    %v1434 = vld [vmem:[%s5 + $0x1348] sm:$0xff]
    %v1435 = vld [vmem:[%s5 + $0x1350] sm:$0xff]
    %v1436 = vld [vmem:[%s5 + $0x1358] sm:$0xff]
    %v1437 = vld [vmem:[%s5 + $0x1360] sm:$0xff]
    %v1438 = vld [vmem:[%s5 + $0x1368] sm:$0xff]
    %v1439 = vld [vmem:[%s5 + $0x1370] sm:$0xff]
    %v1440 = vld [vmem:[%s5 + $0x1378] sm:$0xff]
    %v1441 = vld [vmem:[%s5 + $0x1380] sm:$0xff]
    %v1442 = vld [vmem:[%s5 + $0x1388] sm:$0xff]
    %v1443 = vld [vmem:[%s5 + $0x1390] sm:$0xff]
    %v1444 = vld [vmem:[%s5 + $0x1398] sm:$0xff]
    %v1445 = vld [vmem:[%s5 + $0x13a0] sm:$0xff]
    %v1446 = vld [vmem:[%s5 + $0x13a8] sm:$0xff]
    %v1447 = vld [vmem:[%s5 + $0x13b0] sm:$0xff]
    %v1448 = vld [vmem:[%s5 + $0x13b8] sm:$0xff]
    %v1449 = vld [vmem:[%s5 + $0x13c0] sm:$0xff]
    %v1450 = vld [vmem:[%s5 + $0x13c8] sm:$0xff]
    %v1451 = vld [vmem:[%s5 + $0x13d0] sm:$0xff]
    %v1452 = vld [vmem:[%s5 + $0x13d8] sm:$0xff]
    %v1453 = vld [vmem:[%s5 + $0x13e0] sm:$0xff]
    %v1454 = vld [vmem:[%s5 + $0x13e8] sm:$0xff]
    %v1455 = vld [vmem:[%s5 + $0x13f0] sm:$0xff]
    %v1456 = vld [vmem:[%s5 + $0x13f8] sm:$0xff]
    %v1457 = vld [vmem:[%s5 + $0x1400] sm:$0xff]
    %v1458 = vld [vmem:[%s5 + $0x1408] sm:$0xff]
    %v1459 = vld [vmem:[%s5 + $0x1410] sm:$0xff]
    %v1460 = vld [vmem:[%s5 + $0x1418] sm:$0xff]
    %v1461 = vld [vmem:[%s5 + $0x1420] sm:$0xff]
    %v1462 = vld [vmem:[%s5 + $0x1428] sm:$0xff]
    %v1463 = vld [vmem:[%s5 + $0x1430] sm:$0xff]
    %v1464 = vld [vmem:[%s5 + $0x1438] sm:$0xff]
    %v1465 = vld [vmem:[%s5 + $0x1440] sm:$0xff]
    %v1466 = vld [vmem:[%s5 + $0x1448] sm:$0xff]
    %v1467 = vld [vmem:[%s5 + $0x1450] sm:$0xff]
    %v1468 = vld [vmem:[%s5 + $0x1458] sm:$0xff]
    %v1469 = vld [vmem:[%s5 + $0x1460] sm:$0xff]
    %v1470 = vld [vmem:[%s5 + $0x1468] sm:$0xff]
    %v1471 = vld [vmem:[%s5 + $0x1470] sm:$0xff]
    %v1472 = vld [vmem:[%s5 + $0x1478] sm:$0xff]
    %v1473 = vld [vmem:[%s5 + $0x1480] sm:$0xff]
    %v1474 = vld [vmem:[%s5 + $0x1488] sm:$0xff]
    %v1475 = vld [vmem:[%s5 + $0x1490] sm:$0xff]
    %v1476 = vld [vmem:[%s5 + $0x1498] sm:$0xff]
    %v1477 = vld [vmem:[%s5 + $0x14a0] sm:$0xff]
    %v1478 = vld [vmem:[%s5 + $0x14a8] sm:$0xff]
    %v1479 = vld [vmem:[%s5 + $0x14b0] sm:$0xff]
    %v1480 = vld [vmem:[%s5 + $0x14b8] sm:$0xff]
    %v1481 = vld [vmem:[%s5 + $0x14c0] sm:$0xff]
    %v1482 = vld [vmem:[%s5 + $0x14c8] sm:$0xff]
    %v1483 = vld [vmem:[%s5 + $0x14d0] sm:$0xff]
    %v1484 = vld [vmem:[%s5 + $0x14d8] sm:$0xff]
    %v1485 = vld [vmem:[%s5 + $0x14e0] sm:$0xff]
    %v1486 = vld [vmem:[%s5 + $0x14e8] sm:$0xff]
    %v1487 = vld [vmem:[%s5 + $0x14f0] sm:$0xff]
    %v1488 = vld [vmem:[%s5 + $0x14f8] sm:$0xff]
    %v1489 = vld [vmem:[%s5 + $0x1500] sm:$0xff]
    %v1490 = vld [vmem:[%s5 + $0x1508] sm:$0xff]
    %v1491 = vld [vmem:[%s5 + $0x1510] sm:$0xff]
    %v1492 = vld [vmem:[%s5 + $0x1518] sm:$0xff]
    %v1493 = vld [vmem:[%s5 + $0x1520] sm:$0xff]
    %v1494 = vld [vmem:[%s5 + $0x1528] sm:$0xff]
    %v1495 = vld [vmem:[%s5 + $0x1530] sm:$0xff]
    %v1496 = vld [vmem:[%s5 + $0x1538] sm:$0xff]
    %v1497 = vld [vmem:[%s5 + $0x1540] sm:$0xff]
    %v1498 = vld [vmem:[%s5 + $0x1548] sm:$0xff]
    %v1499 = vld [vmem:[%s5 + $0x1550] sm:$0xff]
    %v1500 = vld [vmem:[%s5 + $0x1558] sm:$0xff]
    %v1501 = vld [vmem:[%s5 + $0x1560] sm:$0xff]
    %v1502 = vld [vmem:[%s5 + $0x1568] sm:$0xff]
    %v1503 = vld [vmem:[%s5 + $0x1570] sm:$0xff]
    %v1504 = vld [vmem:[%s5 + $0x1578] sm:$0xff]
    %v1505 = vld [vmem:[%s5 + $0x1580] sm:$0xff]
    %v1506 = vld [vmem:[%s5 + $0x1588] sm:$0xff]
    %v1507 = vld [vmem:[%s5 + $0x1590] sm:$0xff]
    %v1508 = vld [vmem:[%s5 + $0x1598] sm:$0xff]
    %v1509 = vld [vmem:[%s5 + $0x15a0] sm:$0xff]
    %v1510 = vld [vmem:[%s5 + $0x15a8] sm:$0xff]
    %v1511 = vld [vmem:[%s5 + $0x15b0] sm:$0xff]
    %v1512 = vld [vmem:[%s5 + $0x15b8] sm:$0xff]
    %v1513 = vld [vmem:[%s5 + $0x15c0] sm:$0xff]
    %v1514 = vld [vmem:[%s5 + $0x15c8] sm:$0xff]
    %v1515 = vld [vmem:[%s5 + $0x15d0] sm:$0xff]
    %v1516 = vld [vmem:[%s5 + $0x15d8] sm:$0xff]
    %v1517 = vld [vmem:[%s5 + $0x15e0] sm:$0xff]
    %v1518 = vld [vmem:[%s5 + $0x15e8] sm:$0xff]
    %v1519 = vld [vmem:[%s5 + $0x15f0] sm:$0xff]
    %v1520 = vld [vmem:[%s5 + $0x15f8] sm:$0xff]
    %v1521 = vld [vmem:[%s5 + $0x1600] sm:$0xff]
    %v1522 = vld [vmem:[%s5 + $0x1608] sm:$0xff]
    %v1523 = vld [vmem:[%s5 + $0x1610] sm:$0xff]
    %v1524 = vld [vmem:[%s5 + $0x1618] sm:$0xff]
    %v1525 = vld [vmem:[%s5 + $0x1620] sm:$0xff]
    %v1526 = vld [vmem:[%s5 + $0x1628] sm:$0xff]
    %v1527 = vld [vmem:[%s5 + $0x1630] sm:$0xff]
    %v1528 = vld [vmem:[%s5 + $0x1638] sm:$0xff]
    %v1529 = vld [vmem:[%s5 + $0x1640] sm:$0xff]
    %v1530 = vld [vmem:[%s5 + $0x1648] sm:$0xff]
    %v1531 = vld [vmem:[%s5 + $0x1650] sm:$0xff]
    %v1532 = vld [vmem:[%s5 + $0x1658] sm:$0xff]
    %v1533 = vld [vmem:[%s5 + $0x1660] sm:$0xff]
    %v1534 = vld [vmem:[%s5 + $0x1668] sm:$0xff]
    %v1535 = vld [vmem:[%s5 + $0x1670] sm:$0xff]
    %v1536 = vld [vmem:[%s5 + $0x1678] sm:$0xff]
    %v1537 = vld [vmem:[%s5 + $0x1680] sm:$0xff]
    %v1538 = vld [vmem:[%s5 + $0x1688] sm:$0xff]
    %v1539 = vld [vmem:[%s5 + $0x1690] sm:$0xff]
    %v1540 = vld [vmem:[%s5 + $0x1698] sm:$0xff]
    %v1541 = vld [vmem:[%s5 + $0x16a0] sm:$0xff]
    %v1542 = vld [vmem:[%s5 + $0x16a8] sm:$0xff]
    %v1543 = vld [vmem:[%s5 + $0x16b0] sm:$0xff]
    %v1544 = vld [vmem:[%s5 + $0x16b8] sm:$0xff]
    %v1545 = vld [vmem:[%s5 + $0x16c0] sm:$0xff]
    %v1546 = vld [vmem:[%s5 + $0x16c8] sm:$0xff]
    %v1547 = vld [vmem:[%s5 + $0x16d0] sm:$0xff]
    %v1548 = vld [vmem:[%s5 + $0x16d8] sm:$0xff]
    %v1549 = vld [vmem:[%s5 + $0x16e0] sm:$0xff]
    %v1550 = vld [vmem:[%s5 + $0x16e8] sm:$0xff]
    %v1551 = vld [vmem:[%s5 + $0x16f0] sm:$0xff]
    %v1552 = vld [vmem:[%s5 + $0x16f8] sm:$0xff]
    %v1553 = vld [vmem:[%s5 + $0x1700] sm:$0xff]
    %v1554 = vld [vmem:[%s5 + $0x1708] sm:$0xff]
    %v1555 = vld [vmem:[%s5 + $0x1710] sm:$0xff]
    %v1556 = vld [vmem:[%s5 + $0x1718] sm:$0xff]
    %v1557 = vld [vmem:[%s5 + $0x1720] sm:$0xff]
    %v1558 = vld [vmem:[%s5 + $0x1728] sm:$0xff]
    %v1559 = vld [vmem:[%s5 + $0x1730] sm:$0xff]
    %v1560 = vld [vmem:[%s5 + $0x1738] sm:$0xff]
    %v1561 = vld [vmem:[%s5 + $0x1740] sm:$0xff]
    %v1562 = vld [vmem:[%s5 + $0x1748] sm:$0xff]
    %v1563 = vld [vmem:[%s5 + $0x1750] sm:$0xff]
    %v1564 = vld [vmem:[%s5 + $0x1758] sm:$0xff]
    %v1565 = vld [vmem:[%s5 + $0x1760] sm:$0xff]
    %v1566 = vld [vmem:[%s5 + $0x1768] sm:$0xff]
    %v1567 = vld [vmem:[%s5 + $0x1770] sm:$0xff]
    %v1568 = vld [vmem:[%s5 + $0x1778] sm:$0xff]
    %v1569 = vld [vmem:[%s5 + $0x1780] sm:$0xff]
    %v1570 = vld [vmem:[%s5 + $0x1788] sm:$0xff]
    %v1571 = vld [vmem:[%s5 + $0x1790] sm:$0xff]
    %v1572 = vld [vmem:[%s5 + $0x1798] sm:$0xff]
    %v1573 = vld [vmem:[%s5 + $0x17a0] sm:$0xff]
    %v1574 = vld [vmem:[%s5 + $0x17a8] sm:$0xff]
    %v1575 = vld [vmem:[%s5 + $0x17b0] sm:$0xff]
    %v1576 = vld [vmem:[%s5 + $0x17b8] sm:$0xff]
    %v1577 = vld [vmem:[%s5 + $0x17c0] sm:$0xff]
    %v1578 = vld [vmem:[%s5 + $0x17c8] sm:$0xff]
    %v1579 = vld [vmem:[%s5 + $0x17d0] sm:$0xff]
    %v1580 = vld [vmem:[%s5 + $0x17d8] sm:$0xff]
    %v1581 = vld [vmem:[%s5 + $0x17e0] sm:$0xff]
    %v1582 = vld [vmem:[%s5 + $0x17e8] sm:$0xff]
    %v1583 = vld [vmem:[%s5 + $0x17f0] sm:$0xff]
    %v1584 = vld [vmem:[%s5 + $0x17f8] sm:$0xff]
    %v1585 = vld [vmem:[%s5 + $0x1800] sm:$0xff]
    %v1586 = vld [vmem:[%s5 + $0x1808] sm:$0xff]
    %v1587 = vld [vmem:[%s5 + $0x1810] sm:$0xff]
    %v1588 = vld [vmem:[%s5 + $0x1818] sm:$0xff]
    %v1589 = vld [vmem:[%s5 + $0x1820] sm:$0xff]
    %v1590 = vld [vmem:[%s5 + $0x1828] sm:$0xff]
    %v1591 = vld [vmem:[%s5 + $0x1830] sm:$0xff]
    %v1592 = vld [vmem:[%s5 + $0x1838] sm:$0xff]
    %v1593 = vld [vmem:[%s5 + $0x1840] sm:$0xff]
    %v1594 = vld [vmem:[%s5 + $0x1848] sm:$0xff]
    %v1595 = vld [vmem:[%s5 + $0x1850] sm:$0xff]
    %v1596 = vld [vmem:[%s5 + $0x1858] sm:$0xff]
    %v1597 = vld [vmem:[%s5 + $0x1860] sm:$0xff]
    %v1598 = vld [vmem:[%s5 + $0x1868] sm:$0xff]
    %v1599 = vld [vmem:[%s5 + $0x1870] sm:$0xff]
    %v1600 = vld [vmem:[%s5 + $0x1878] sm:$0xff]
    %v1601 = vld [vmem:[%s5 + $0x1880] sm:$0xff]
    %v1602 = vld [vmem:[%s5 + $0x1888] sm:$0xff]
    %v1603 = vld [vmem:[%s5 + $0x1890] sm:$0xff]
    %v1604 = vld [vmem:[%s5 + $0x1898] sm:$0xff]
    %v1605 = vld [vmem:[%s5 + $0x18a0] sm:$0xff]
    %v1606 = vld [vmem:[%s5 + $0x18a8] sm:$0xff]
    %v1607 = vld [vmem:[%s5 + $0x18b0] sm:$0xff]
    %v1608 = vld [vmem:[%s5 + $0x18b8] sm:$0xff]
    %v1609 = vld [vmem:[%s5 + $0x18c0] sm:$0xff]
    %v1610 = vld [vmem:[%s5 + $0x18c8] sm:$0xff]
    %v1611 = vld [vmem:[%s5 + $0x18d0] sm:$0xff]
    %v1612 = vld [vmem:[%s5 + $0x18d8] sm:$0xff]
    %v1613 = vld [vmem:[%s5 + $0x18e0] sm:$0xff]
    %v1614 = vld [vmem:[%s5 + $0x18e8] sm:$0xff]
    %v1615 = vld [vmem:[%s5 + $0x18f0] sm:$0xff]
    %v1616 = vld [vmem:[%s5 + $0x18f8] sm:$0xff]
    %v1617 = vld [vmem:[%s5 + $0x1900] sm:$0xff]
    %v1618 = vld [vmem:[%s5 + $0x1908] sm:$0xff]
    %v1619 = vld [vmem:[%s5 + $0x1910] sm:$0xff]
    %v1620 = vld [vmem:[%s5 + $0x1918] sm:$0xff]
    %v1621 = vld [vmem:[%s5 + $0x1920] sm:$0xff]
    %v1622 = vld [vmem:[%s5 + $0x1928] sm:$0xff]
    %v1623 = vld [vmem:[%s5 + $0x1930] sm:$0xff]
    %v1624 = vld [vmem:[%s5 + $0x1938] sm:$0xff]
    %v1625 = vld [vmem:[%s5 + $0x1940] sm:$0xff]
    %v1626 = vld [vmem:[%s5 + $0x1948] sm:$0xff]
    %v1627 = vld [vmem:[%s5 + $0x1950] sm:$0xff]
    %v1628 = vld [vmem:[%s5 + $0x1958] sm:$0xff]
    %v1629 = vld [vmem:[%s5 + $0x1960] sm:$0xff]
    %v1630 = vld [vmem:[%s5 + $0x1968] sm:$0xff]
    %v1631 = vld [vmem:[%s5 + $0x1970] sm:$0xff]
    %v1632 = vld [vmem:[%s5 + $0x1978] sm:$0xff]
    %v1633 = vld [vmem:[%s5 + $0x1980] sm:$0xff]
    %v1634 = vld [vmem:[%s5 + $0x1988] sm:$0xff]
    %v1635 = vld [vmem:[%s5 + $0x1990] sm:$0xff]
    %v1636 = vld [vmem:[%s5 + $0x1998] sm:$0xff]
    %v1637 = vld [vmem:[%s5 + $0x19a0] sm:$0xff]
    %v1638 = vld [vmem:[%s5 + $0x19a8] sm:$0xff]
    %v1639 = vld [vmem:[%s5 + $0x19b0] sm:$0xff]
    %v1640 = vld [vmem:[%s5 + $0x19b8] sm:$0xff]
    %v1641 = vld [vmem:[%s5 + $0x19c0] sm:$0xff]
    %v1642 = vld [vmem:[%s5 + $0x19c8] sm:$0xff]
    %v1643 = vld [vmem:[%s5 + $0x19d0] sm:$0xff]
    %v1644 = vld [vmem:[%s5 + $0x19d8] sm:$0xff]
    %v1645 = vld [vmem:[%s5 + $0x19e0] sm:$0xff]
    %v1646 = vld [vmem:[%s5 + $0x19e8] sm:$0xff]
    %v1647 = vld [vmem:[%s5 + $0x19f0] sm:$0xff]
    %v1648 = vld [vmem:[%s5 + $0x19f8] sm:$0xff]
    %v1649 = vld [vmem:[%s5 + $0x1a00] sm:$0xff]
    %v1650 = vld [vmem:[%s5 + $0x1a08] sm:$0xff]
    %v1651 = vld [vmem:[%s5 + $0x1a10] sm:$0xff]
    %v1652 = vld [vmem:[%s5 + $0x1a18] sm:$0xff]
    %v1653 = vld [vmem:[%s5 + $0x1a20] sm:$0xff]
    %v1654 = vld [vmem:[%s5 + $0x1a28] sm:$0xff]
    %v1655 = vld [vmem:[%s5 + $0x1a30] sm:$0xff]
    %v1656 = vld [vmem:[%s5 + $0x1a38] sm:$0xff]
    %v1657 = vld [vmem:[%s5 + $0x1a40] sm:$0xff]
    %v1658 = vld [vmem:[%s5 + $0x1a48] sm:$0xff]
    %v1659 = vld [vmem:[%s5 + $0x1a50] sm:$0xff]
    %v1660 = vld [vmem:[%s5 + $0x1a58] sm:$0xff]
    %v1661 = vld [vmem:[%s5 + $0x1a60] sm:$0xff]
    %v1662 = vld [vmem:[%s5 + $0x1a68] sm:$0xff]
    %v1663 = vld [vmem:[%s5 + $0x1a70] sm:$0xff]
    %v1664 = vld [vmem:[%s5 + $0x1a78] sm:$0xff]
    %v1665 = vld [vmem:[%s5 + $0x1a80] sm:$0xff]
    %v1666 = vld [vmem:[%s5 + $0x1a88] sm:$0xff]
    %v1667 = vld [vmem:[%s5 + $0x1a90] sm:$0xff]
    %v1668 = vld [vmem:[%s5 + $0x1a98] sm:$0xff]
    %v1669 = vld [vmem:[%s5 + $0x1aa0] sm:$0xff]
    %v1670 = vld [vmem:[%s5 + $0x1aa8] sm:$0xff]
    %v1671 = vld [vmem:[%s5 + $0x1ab0] sm:$0xff]
    %v1672 = vld [vmem:[%s5 + $0x1ab8] sm:$0xff]
    %v1673 = vld [vmem:[%s5 + $0x1ac0] sm:$0xff]
    %v1674 = vld [vmem:[%s5 + $0x1ac8] sm:$0xff]
    %v1675 = vld [vmem:[%s5 + $0x1ad0] sm:$0xff]
    %v1676 = vld [vmem:[%s5 + $0x1ad8] sm:$0xff]
    %v1677 = vld [vmem:[%s5 + $0x1ae0] sm:$0xff]
    %v1678 = vld [vmem:[%s5 + $0x1ae8] sm:$0xff]
    %v1679 = vld [vmem:[%s5 + $0x1af0] sm:$0xff]
    %v1680 = vld [vmem:[%s5 + $0x1af8] sm:$0xff]
    %v1681 = vld [vmem:[%s5 + $0x1b00] sm:$0xff]
    %v1682 = vld [vmem:[%s5 + $0x1b08] sm:$0xff]
    %v1683 = vld [vmem:[%s5 + $0x1b10] sm:$0xff]
    %v1684 = vld [vmem:[%s5 + $0x1b18] sm:$0xff]
    %v1685 = vld [vmem:[%s5 + $0x1b20] sm:$0xff]
    %v1686 = vld [vmem:[%s5 + $0x1b28] sm:$0xff]
    %v1687 = vld [vmem:[%s5 + $0x1b30] sm:$0xff]
    %v1688 = vld [vmem:[%s5 + $0x1b38] sm:$0xff]
    %v1689 = vld [vmem:[%s5 + $0x1b40] sm:$0xff]
    %v1690 = vld [vmem:[%s5 + $0x1b48] sm:$0xff]
    %v1691 = vld [vmem:[%s5 + $0x1b50] sm:$0xff]
    %v1692 = vld [vmem:[%s5 + $0x1b58] sm:$0xff]
    %v1693 = vld [vmem:[%s5 + $0x1b60] sm:$0xff]
    %v1694 = vld [vmem:[%s5 + $0x1b68] sm:$0xff]
    %v1695 = vld [vmem:[%s5 + $0x1b70] sm:$0xff]
    %v1696 = vld [vmem:[%s5 + $0x1b78] sm:$0xff]
    %v1697 = vld [vmem:[%s5 + $0x1b80] sm:$0xff]
    %v1698 = vld [vmem:[%s5 + $0x1b88] sm:$0xff]
    %v1699 = vld [vmem:[%s5 + $0x1b90] sm:$0xff]
    %v1700 = vld [vmem:[%s5 + $0x1b98] sm:$0xff]
    %v1701 = vld [vmem:[%s5 + $0x1ba0] sm:$0xff]
    %v1702 = vld [vmem:[%s5 + $0x1ba8] sm:$0xff]
    %v1703 = vld [vmem:[%s5 + $0x1bb0] sm:$0xff]
    %v1704 = vld [vmem:[%s5 + $0x1bb8] sm:$0xff]
    %v1705 = vld [vmem:[%s5 + $0x1bc0] sm:$0xff]
    %v1706 = vld [vmem:[%s5 + $0x1bc8] sm:$0xff]
    %v1707 = vld [vmem:[%s5 + $0x1bd0] sm:$0xff]
    %v1708 = vld [vmem:[%s5 + $0x1bd8] sm:$0xff]
    %v1709 = vld [vmem:[%s5 + $0x1be0] sm:$0xff]
    %v1710 = vld [vmem:[%s5 + $0x1be8] sm:$0xff]
    %v1711 = vld [vmem:[%s5 + $0x1bf0] sm:$0xff]
    %v1712 = vld [vmem:[%s5 + $0x1bf8] sm:$0xff]
    %v1713 = vld [vmem:[%s5 + $0x1c00] sm:$0xff]
    %v1714 = vld [vmem:[%s5 + $0x1c08] sm:$0xff]
    %v1715 = vld [vmem:[%s5 + $0x1c10] sm:$0xff]
    %v1716 = vld [vmem:[%s5 + $0x1c18] sm:$0xff]
    %v1717 = vld [vmem:[%s5 + $0x1c20] sm:$0xff]
    %v1718 = vld [vmem:[%s5 + $0x1c28] sm:$0xff]
    %v1719 = vld [vmem:[%s5 + $0x1c30] sm:$0xff]
    %v1720 = vld [vmem:[%s5 + $0x1c38] sm:$0xff]
    %v1721 = vld [vmem:[%s5 + $0x1c40] sm:$0xff]
    %v1722 = vld [vmem:[%s5 + $0x1c48] sm:$0xff]
    %v1723 = vld [vmem:[%s5 + $0x1c50] sm:$0xff]
    %v1724 = vld [vmem:[%s5 + $0x1c58] sm:$0xff]
    %v1725 = vld [vmem:[%s5 + $0x1c60] sm:$0xff]
    %v1726 = vld [vmem:[%s5 + $0x1c68] sm:$0xff]
    %v1727 = vld [vmem:[%s5 + $0x1c70] sm:$0xff]
    %v1728 = vld [vmem:[%s5 + $0x1c78] sm:$0xff]
    %v1729 = vld [vmem:[%s5 + $0x1c80] sm:$0xff]
    %v1730 = vld [vmem:[%s5 + $0x1c88] sm:$0xff]
    %v1731 = vld [vmem:[%s5 + $0x1c90] sm:$0xff]
    %v1732 = vld [vmem:[%s5 + $0x1c98] sm:$0xff]
    %v1733 = vld [vmem:[%s5 + $0x1ca0] sm:$0xff]
    %v1734 = vld [vmem:[%s5 + $0x1ca8] sm:$0xff]
    %v1735 = vld [vmem:[%s5 + $0x1cb0] sm:$0xff]
    %v1736 = vld [vmem:[%s5 + $0x1cb8] sm:$0xff]
    %v1737 = vld [vmem:[%s5 + $0x1cc0] sm:$0xff]
    %v1738 = vld [vmem:[%s5 + $0x1cc8] sm:$0xff]
    %v1739 = vld [vmem:[%s5 + $0x1cd0] sm:$0xff]
    %v1740 = vld [vmem:[%s5 + $0x1cd8] sm:$0xff]
    %v1741 = vld [vmem:[%s5 + $0x1ce0] sm:$0xff]
    %v1742 = vld [vmem:[%s5 + $0x1ce8] sm:$0xff]
    %v1743 = vld [vmem:[%s5 + $0x1cf0] sm:$0xff]
    %v1744 = vld [vmem:[%s5 + $0x1cf8] sm:$0xff]
    %v1745 = vld [vmem:[%s5 + $0x1d00] sm:$0xff]
    %v1746 = vld [vmem:[%s5 + $0x1d08] sm:$0xff]
    %v1747 = vld [vmem:[%s5 + $0x1d10] sm:$0xff]
    %v1748 = vld [vmem:[%s5 + $0x1d18] sm:$0xff]
    %v1749 = vld [vmem:[%s5 + $0x1d20] sm:$0xff]
    %v1750 = vld [vmem:[%s5 + $0x1d28] sm:$0xff]
    %v1751 = vld [vmem:[%s5 + $0x1d30] sm:$0xff]
    %v1752 = vld [vmem:[%s5 + $0x1d38] sm:$0xff]
    %v1753 = vld [vmem:[%s5 + $0x1d40] sm:$0xff]
    %v1754 = vld [vmem:[%s5 + $0x1d48] sm:$0xff]
    %v1755 = vld [vmem:[%s5 + $0x1d50] sm:$0xff]
    %v1756 = vld [vmem:[%s5 + $0x1d58] sm:$0xff]
    %v1757 = vld [vmem:[%s5 + $0x1d60] sm:$0xff]
    %v1758 = vld [vmem:[%s5 + $0x1d68] sm:$0xff]
    %v1759 = vld [vmem:[%s5 + $0x1d70] sm:$0xff]
    %v1760 = vld [vmem:[%s5 + $0x1d78] sm:$0xff]
    %v1761 = vld [vmem:[%s5 + $0x1d80] sm:$0xff]
    %v1762 = vld [vmem:[%s5 + $0x1d88] sm:$0xff]
    %v1763 = vld [vmem:[%s5 + $0x1d90] sm:$0xff]
    %v1764 = vld [vmem:[%s5 + $0x1d98] sm:$0xff]
    %v1765 = vld [vmem:[%s5 + $0x1da0] sm:$0xff]
    %v1766 = vld [vmem:[%s5 + $0x1da8] sm:$0xff]
    %v1767 = vld [vmem:[%s5 + $0x1db0] sm:$0xff]
    %v1768 = vld [vmem:[%s5 + $0x1db8] sm:$0xff]
    %v1769 = vld [vmem:[%s5 + $0x1dc0] sm:$0xff]
    %v1770 = vld [vmem:[%s5 + $0x1dc8] sm:$0xff]
    %v1771 = vld [vmem:[%s5 + $0x1dd0] sm:$0xff]
    %v1772 = vld [vmem:[%s5 + $0x1dd8] sm:$0xff]
    %v1773 = vld [vmem:[%s5 + $0x1de0] sm:$0xff]
    %v1774 = vld [vmem:[%s5 + $0x1de8] sm:$0xff]
    %v1775 = vld [vmem:[%s5 + $0x1df0] sm:$0xff]
    %v1776 = vld [vmem:[%s5 + $0x1df8] sm:$0xff]
    %v1777 = vld [vmem:[%s5 + $0x1e00] sm:$0xff]
    %v1778 = vld [vmem:[%s5 + $0x1e08] sm:$0xff]
    %v1779 = vld [vmem:[%s5 + $0x1e10] sm:$0xff]
    %v1780 = vld [vmem:[%s5 + $0x1e18] sm:$0xff]
    %v1781 = vld [vmem:[%s5 + $0x1e20] sm:$0xff]
    %v1782 = vld [vmem:[%s5 + $0x1e28] sm:$0xff]
    %v1783 = vld [vmem:[%s5 + $0x1e30] sm:$0xff]
    %v1784 = vld [vmem:[%s5 + $0x1e38] sm:$0xff]
    %v1785 = vld [vmem:[%s5 + $0x1e40] sm:$0xff]
    %v1786 = vld [vmem:[%s5 + $0x1e48] sm:$0xff]
    %v1787 = vld [vmem:[%s5 + $0x1e50] sm:$0xff]
    %v1788 = vld [vmem:[%s5 + $0x1e58] sm:$0xff]
    %v1789 = vld [vmem:[%s5 + $0x1e60] sm:$0xff]
    %v1790 = vld [vmem:[%s5 + $0x1e68] sm:$0xff]
    %v1791 = vld [vmem:[%s5 + $0x1e70] sm:$0xff]
    %v1792 = vld [vmem:[%s5 + $0x1e78] sm:$0xff]
    %v1793 = vld [vmem:[%s5 + $0x1e80] sm:$0xff]
    %v1794 = vld [vmem:[%s5 + $0x1e88] sm:$0xff]
    %v1795 = vld [vmem:[%s5 + $0x1e90] sm:$0xff]
    %v1796 = vld [vmem:[%s5 + $0x1e98] sm:$0xff]
    %v1797 = vld [vmem:[%s5 + $0x1ea0] sm:$0xff]
    %v1798 = vld [vmem:[%s5 + $0x1ea8] sm:$0xff]
    %v1799 = vld [vmem:[%s5 + $0x1eb0] sm:$0xff]
    %v1800 = vld [vmem:[%s5 + $0x1eb8] sm:$0xff]
    %v1801 = vld [vmem:[%s5 + $0x1ec0] sm:$0xff]
    %v1802 = vld [vmem:[%s5 + $0x1ec8] sm:$0xff]
    %v1803 = vld [vmem:[%s5 + $0x1ed0] sm:$0xff]
    %v1804 = vld [vmem:[%s5 + $0x1ed8] sm:$0xff]
    %v1805 = vld [vmem:[%s5 + $0x1ee0] sm:$0xff]
    %v1806 = vld [vmem:[%s5 + $0x1ee8] sm:$0xff]
    %v1807 = vld [vmem:[%s5 + $0x1ef0] sm:$0xff]
    %v1808 = vld [vmem:[%s5 + $0x1ef8] sm:$0xff]
    %v1809 = vld [vmem:[%s5 + $0x1f00] sm:$0xf]
    %v1810 = vld [vmem:[%s5 + $0x1f08] sm:$0xf]
    %v1811 = vld [vmem:[%s5 + $0x1f10] sm:$0xf]
    %v1812 = vld [vmem:[%s5 + $0x1f18] sm:$0xf]
    %v1813 = vld [vmem:[%s5 + $0x1f20] sm:$0xf]
    %v1814 = vld [vmem:[%s5 + $0x1f28] sm:$0xf]
    %v1815 = vld [vmem:[%s5 + $0x1f30] sm:$0xf]
    %v1816 = vld [vmem:[%s5 + $0x1f38] sm:$0xf]
    %v1817 = vld [vmem:[%s5 + $0x1f40] sm:$0xf]
    %v1818 = vld [vmem:[%s5 + $0x1f48] sm:$0xf]
    %v1819 = vld [vmem:[%s5 + $0x1f50] sm:$0xf]
    %v1820 = vld [vmem:[%s5 + $0x1f58] sm:$0xf]
    %v1821 = vld [vmem:[%s5 + $0x1f60] sm:$0xf]
    %v1822 = vld [vmem:[%s5 + $0x1f68] sm:$0xf]
    %v1823 = vld [vmem:[%s5 + $0x1f70] sm:$0xf]
    %v1824 = vld [vmem:[%s5 + $0x1f78] sm:$0xf]
    %v1825 = vld [vmem:[%s6] sm:$0xff]
    %v1826 = vld [vmem:[%s6 + $0x8] sm:$0xff]
    %v1829 = vlaneseq
    %v1830 = vshrl.u32 %v1829, 7
    %v1831 = vsub.s32 0, %v1830
    %v1832 = vrot.slane %v1825, %v1831
    %v1833 = vlaneseq
    %v1834 = vshrl.u32 %v1833, 7
    %v1835 = vsub.s32 1, %v1834
    %v1836 = vrot.slane %v1825, %v1835
    %v1837 = vlaneseq
    %v1838 = vshrl.u32 %v1837, 7
    %v1839 = vsub.s32 2, %v1838
    %v1840 = vrot.slane %v1825, %v1839
    %v1841 = vlaneseq
    %v1842 = vshrl.u32 %v1841, 7
    %v1843 = vsub.s32 3, %v1842
    %v1844 = vrot.slane %v1825, %v1843
    %v1845 = vlaneseq
    %v1846 = vshrl.u32 %v1845, 7
    %v1847 = vsub.s32 4, %v1846
    %v1848 = vrot.slane %v1825, %v1847
    %v1849 = vlaneseq
    %v1850 = vshrl.u32 %v1849, 7
    %v1851 = vsub.s32 5, %v1850
    %v1852 = vrot.slane %v1825, %v1851
    %v1853 = vlaneseq
    %v1854 = vshrl.u32 %v1853, 7
    %v1855 = vsub.s32 6, %v1854
    %v1856 = vrot.slane %v1825, %v1855
    %v1857 = vlaneseq
    %v1858 = vshrl.u32 %v1857, 7
    %v1859 = vsub.s32 7, %v1858
    %v1860 = vrot.slane %v1825, %v1859
    %v1861 = vlaneseq
    %v1862 = vshrl.u32 %v1861, 7
    %v1863 = vsub.s32 0, %v1862
    %v1864 = vrot.slane %v1826, %v1863
    %v1865 = vlaneseq
    %v1866 = vshrl.u32 %v1865, 7
    %v1867 = vsub.s32 1, %v1866
    %v1868 = vrot.slane %v1826, %v1867
    %v1869 = vlaneseq
    %v1870 = vshrl.u32 %v1869, 7
    %v1871 = vsub.s32 2, %v1870
    %v1872 = vrot.slane %v1826, %v1871
    %v1873 = vlaneseq
    %v1874 = vshrl.u32 %v1873, 7
    %v1875 = vsub.s32 3, %v1874
    %v1876 = vrot.slane %v1826, %v1875
    %v1877 = vlaneseq
    %v1878 = vshrl.u32 %v1877, 7
    %v1879 = vsub.s32 4, %v1878
    %v1880 = vrot.slane %v1826, %v1879
    %v1881 = vlaneseq
    %v1882 = vshrl.u32 %v1881, 7
    %v1883 = vsub.s32 5, %v1882
    %v1884 = vrot.slane %v1826, %v1883
    %v1885 = vlaneseq
    %v1886 = vshrl.u32 %v1885, 7
    %v1887 = vsub.s32 6, %v1886
    %v1888 = vrot.slane %v1826, %v1887
    %v1889 = vlaneseq
    %v1890 = vshrl.u32 %v1889, 7
    %v1891 = vsub.s32 7, %v1890
    %v1892 = vrot.slane %v1826, %v1891
    %v1910 = vsel %vm512, %v816, 0
    %v1913 = vsel %vm516, %v1809, 0
    %v1916 = vsel %vm516, %v1810, 0
    %v1919 = vsel %vm516, %v1811, 0
    %v1922 = vsel %vm516, %v1812, 0
    %v1925 = vsel %vm516, %v1813, 0
    %v1928 = vsel %vm516, %v1814, 0
    %v1931 = vsel %vm516, %v1815, 0
    %v1934 = vsel %vm516, %v1816, 0
    %v1937 = vsel %vm516, %v1817, 0
    %v1940 = vsel %vm516, %v1818, 0
    %v1943 = vsel %vm516, %v1819, 0
    %v1946 = vsel %vm516, %v1820, 0
    %v1949 = vsel %vm516, %v1821, 0
    %v1952 = vsel %vm516, %v1822, 0
    %v1955 = vsel %vm516, %v1823, 0
    %v1958 = vsel %vm516, %v1824, 0
    %1960 = vmatprep.subr.mxu0 %v1058
    %1961 = vmatpush1.msra.mxu0 %v1057
    %1962 = vmatprep.subr.mxu0 %v1042
    %1963 = vmatpush1.msra.mxu0 %v1041
    %1964 = vmatprep.subr.mxu0 %v1026
    %1965 = vmatpush1.msra.mxu0 %v1025
    %1966 = vmatprep.subr.mxu0 %v1010
    %1967 = vmatpush1.msra.mxu0 %v1009
    %1968 = vmatprep.subr.mxu0 %v994
    %1969 = vmatpush1.msra.mxu0 %v993
    %1970 = vmatprep.subr.mxu0 %v978
    %1971 = vmatpush1.msra.mxu0 %v977
    %1972 = vmatprep.subr.mxu0 %v962
    %1973 = vmatpush1.msra.mxu0 %v961
    %1974 = vmatprep.subr.mxu0 %v946
    %1975 = vmatpush1.msra.mxu0 %v945
    %1976 = vmatprep.subr.mxu0 %v930
    %1977 = vmatpush1.msra.mxu0 %v929
    %1978 = vmatprep.subr.mxu0 %v914
    %1979 = vmatpush1.msra.mxu0 %v913
    %1980 = vmatprep.subr.mxu0 %v898
    %1981 = vmatpush1.msra.mxu0 %v897
    %1982 = vmatprep.subr.mxu0 %v882
    %1983 = vmatpush1.msra.mxu0 %v881
    %1984 = vmatprep.subr.mxu0 %v866
    %1985 = vmatpush1.msra.mxu0 %v865
    %1986 = vmatprep.subr.mxu0 %v850
    %1987 = vmatpush1.msra.mxu0 %v849
    %1988 = vmatprep.subr.mxu0 %v834
    %1989 = vmatpush1.msra.mxu0 %v833
    %1990 = vmatprep.subr.mxu0 %v818
    %1991 = vmatpush1.msra.mxu0 %v817
    %1992 = vmatprep.subr.mxu0 %v1314
    %1993 = vmatpush2.msra.mxu0 %v1313
    %1994 = vmatprep.subr.mxu0 %v1298
    %1995 = vmatpush2.msra.mxu0 %v1297
    %1996 = vmatprep.subr.mxu0 %v1282
    %1997 = vmatpush2.msra.mxu0 %v1281
    %1998 = vmatprep.subr.mxu0 %v1266
    %1999 = vmatpush2.msra.mxu0 %v1265
    %2000 = vmatprep.subr.mxu0 %v1250
    %2001 = vmatpush2.msra.mxu0 %v1249
    %2002 = vmatprep.subr.mxu0 %v1234
    %2003 = vmatpush2.msra.mxu0 %v1233
    %2004 = vmatprep.subr.mxu0 %v1218
    %2005 = vmatpush2.msra.mxu0 %v1217
    %2006 = vmatprep.subr.mxu0 %v1202
    %2007 = vmatpush2.msra.mxu0 %v1201
    %2008 = vmatprep.subr.mxu0 %v1186
    %2009 = vmatpush2.msra.mxu0 %v1185
    %2010 = vmatprep.subr.mxu0 %v1170
    %2011 = vmatpush2.msra.mxu0 %v1169
    %2012 = vmatprep.subr.mxu0 %v1154
    %2013 = vmatpush2.msra.mxu0 %v1153
    %2014 = vmatprep.subr.mxu0 %v1138
    %2015 = vmatpush2.msra.mxu0 %v1137
    %2016 = vmatprep.subr.mxu0 %v1122
    %2017 = vmatpush2.msra.mxu0 %v1121
    %2018 = vmatprep.subr.mxu0 %v1106
    %2019 = vmatpush2.msra.mxu0 %v1105
    %2020 = vmatprep.subr.mxu0 %v1090
    %2021 = vmatpush2.msra.mxu0 %v1089
    %2022 = vmatprep.subr.mxu0 %v1074
    %2023 = vmatpush2.msra.mxu0 %v1073
    %2024 = vmatprep.mubr.f32.mxu0 %v814
    %2025 = vmatmul.mubr.f32.gmra.mxu0 %v813
    %v2026 = vpop.f32.mrf.mxu0
    %v2027 = vadd.f32 %v1832, %v2026
    %v2028 = vpop.f32.mrf.mxu0
    %v2029 = vadd.f32 %v1836, %v2028
    %2030 = vdwg.mxu0
    %2031 = vmatprep.subr.mxu0 %v1570
    %2032 = vmatpush1.msra.mxu0 %v1569
    %2033 = vmatprep.subr.mxu0 %v1554
    %2034 = vmatpush1.msra.mxu0 %v1553
    %2035 = vmatprep.subr.mxu0 %v1538
    %2036 = vmatpush1.msra.mxu0 %v1537
    %2037 = vmatprep.subr.mxu0 %v1522
    %2038 = vmatpush1.msra.mxu0 %v1521
    %2039 = vmatprep.subr.mxu0 %v1506
    %2040 = vmatpush1.msra.mxu0 %v1505
    %2041 = vmatprep.subr.mxu0 %v1490
    %2042 = vmatpush1.msra.mxu0 %v1489
    %2043 = vmatprep.subr.mxu0 %v1474
    %2044 = vmatpush1.msra.mxu0 %v1473
    %2045 = vmatprep.subr.mxu0 %v1458
    %2046 = vmatpush1.msra.mxu0 %v1457
    %2047 = vmatprep.subr.mxu0 %v1442
    %2048 = vmatpush1.msra.mxu0 %v1441
    %2049 = vmatprep.subr.mxu0 %v1426
    %2050 = vmatpush1.msra.mxu0 %v1425
    %2051 = vmatprep.subr.mxu0 %v1410
    %2052 = vmatpush1.msra.mxu0 %v1409
    %2053 = vmatprep.subr.mxu0 %v1394
    %2054 = vmatpush1.msra.mxu0 %v1393
    %2055 = vmatprep.subr.mxu0 %v1378
    %2056 = vmatpush1.msra.mxu0 %v1377
    %2057 = vmatprep.subr.mxu0 %v1362
    %2058 = vmatpush1.msra.mxu0 %v1361
    %2059 = vmatprep.subr.mxu0 %v1346
    %2060 = vmatpush1.msra.mxu0 %v1345
    %2061 = vmatprep.subr.mxu0 %v1330
    %2062 = vmatpush1.msra.mxu0 %v1329
    %2063 = vmatprep.subr.mxu0 0.0
    %2064 = vmatpush2.msra.mxu0 0.0
    %2065 = vmatprep.subr.mxu0 %v1916
    %2066 = vmatpush2.msra.mxu0 %v1913
    %2067 = vmatprep.subr.mxu0 %v1794
    %2068 = vmatpush2.msra.mxu0 %v1793
    %2069 = vmatprep.subr.mxu0 %v1778
    %2070 = vmatpush2.msra.mxu0 %v1777
    %2071 = vmatprep.subr.mxu0 %v1762
    %2072 = vmatpush2.msra.mxu0 %v1761
    %2073 = vmatprep.subr.mxu0 %v1746
    %2074 = vmatpush2.msra.mxu0 %v1745
    %2075 = vmatprep.subr.mxu0 %v1730
    %2076 = vmatpush2.msra.mxu0 %v1729
    %2077 = vmatprep.subr.mxu0 %v1714
    %2078 = vmatpush2.msra.mxu0 %v1713
    %2079 = vmatprep.subr.mxu0 %v1698
    %2080 = vmatpush2.msra.mxu0 %v1697
    %2081 = vmatprep.subr.mxu0 %v1682
    %2082 = vmatpush2.msra.mxu0 %v1681
    %2083 = vmatprep.subr.mxu0 %v1666
    %2084 = vmatpush2.msra.mxu0 %v1665
    %2085 = vmatprep.subr.mxu0 %v1650
    %2086 = vmatpush2.msra.mxu0 %v1649
    %2087 = vmatprep.subr.mxu0 %v1634
    %2088 = vmatpush2.msra.mxu0 %v1633
    %2089 = vmatprep.subr.mxu0 %v1618
    %2090 = vmatpush2.msra.mxu0 %v1617
    %2091 = vmatprep.subr.mxu0 %v1602
    %2092 = vmatpush2.msra.mxu0 %v1601
    %2093 = vmatprep.subr.mxu0 %v1586
    %2094 = vmatpush2.msra.mxu0 %v1585
    %2095 = vmatprep.mubr.f32.mxu0 %v1910
    %2096 = vmatmul.mubr.f32.gmra.mxu0 %v815
    %v2097 = vpop.f32.mrf.mxu0
    %v2098 = vadd.f32 %v2027, %v2097
    %v2099 = vpop.f32.mrf.mxu0
    %v2100 = vadd.f32 %v2029, %v2099
    %2101 = vdwg.mxu0
    %2102 = vmatprep.subr.mxu0 %v1060
    %2103 = vmatpush1.msra.mxu0 %v1059
    %2104 = vmatprep.subr.mxu0 %v1044
    %2105 = vmatpush1.msra.mxu0 %v1043
    %2106 = vmatprep.subr.mxu0 %v1028
    %2107 = vmatpush1.msra.mxu0 %v1027
    %2108 = vmatprep.subr.mxu0 %v1012
    %2109 = vmatpush1.msra.mxu0 %v1011
    %2110 = vmatprep.subr.mxu0 %v996
    %2111 = vmatpush1.msra.mxu0 %v995
    %2112 = vmatprep.subr.mxu0 %v980
    %2113 = vmatpush1.msra.mxu0 %v979
    %2114 = vmatprep.subr.mxu0 %v964
    %2115 = vmatpush1.msra.mxu0 %v963
    %2116 = vmatprep.subr.mxu0 %v948
    %2117 = vmatpush1.msra.mxu0 %v947
    %2118 = vmatprep.subr.mxu0 %v932
    %2119 = vmatpush1.msra.mxu0 %v931
    %2120 = vmatprep.subr.mxu0 %v916
    %2121 = vmatpush1.msra.mxu0 %v915
    %2122 = vmatprep.subr.mxu0 %v900
    %2123 = vmatpush1.msra.mxu0 %v899
    %2124 = vmatprep.subr.mxu0 %v884
    %2125 = vmatpush1.msra.mxu0 %v883
    %2126 = vmatprep.subr.mxu0 %v868
    %2127 = vmatpush1.msra.mxu0 %v867
    %2128 = vmatprep.subr.mxu0 %v852
    %2129 = vmatpush1.msra.mxu0 %v851
    %2130 = vmatprep.subr.mxu0 %v836
    %2131 = vmatpush1.msra.mxu0 %v835
    %2132 = vmatprep.subr.mxu0 %v820
    %2133 = vmatpush1.msra.mxu0 %v819
    %2134 = vmatprep.subr.mxu0 %v1316
    %2135 = vmatpush2.msra.mxu0 %v1315
    %2136 = vmatprep.subr.mxu0 %v1300
    %2137 = vmatpush2.msra.mxu0 %v1299
    %2138 = vmatprep.subr.mxu0 %v1284
    %2139 = vmatpush2.msra.mxu0 %v1283
    %2140 = vmatprep.subr.mxu0 %v1268
    %2141 = vmatpush2.msra.mxu0 %v1267
    %2142 = vmatprep.subr.mxu0 %v1252
    %2143 = vmatpush2.msra.mxu0 %v1251
    %2144 = vmatprep.subr.mxu0 %v1236
    %2145 = vmatpush2.msra.mxu0 %v1235
    %2146 = vmatprep.subr.mxu0 %v1220
    %2147 = vmatpush2.msra.mxu0 %v1219
    %2148 = vmatprep.subr.mxu0 %v1204
    %2149 = vmatpush2.msra.mxu0 %v1203
    %2150 = vmatprep.subr.mxu0 %v1188
    %2151 = vmatpush2.msra.mxu0 %v1187
    %2152 = vmatprep.subr.mxu0 %v1172
    %2153 = vmatpush2.msra.mxu0 %v1171
    %2154 = vmatprep.subr.mxu0 %v1156
    %2155 = vmatpush2.msra.mxu0 %v1155
    %2156 = vmatprep.subr.mxu0 %v1140
    %2157 = vmatpush2.msra.mxu0 %v1139
    %2158 = vmatprep.subr.mxu0 %v1124
    %2159 = vmatpush2.msra.mxu0 %v1123
    %2160 = vmatprep.subr.mxu0 %v1108
    %2161 = vmatpush2.msra.mxu0 %v1107
    %2162 = vmatprep.subr.mxu0 %v1092
    %2163 = vmatpush2.msra.mxu0 %v1091
    %2164 = vmatprep.subr.mxu0 %v1076
    %2165 = vmatpush2.msra.mxu0 %v1075
    %2166 = vmatprep.mubr.f32.mxu0 %v814
    %2167 = vmatmul.mubr.f32.gmra.mxu0 %v813
    %v2168 = vpop.f32.mrf.mxu0
    %v2169 = vadd.f32 %v1840, %v2168
    %v2170 = vpop.f32.mrf.mxu0
    %v2171 = vadd.f32 %v1844, %v2170
    %2172 = vdwg.mxu0
    %2173 = vmatprep.subr.mxu0 %v1572
    %2174 = vmatpush1.msra.mxu0 %v1571
    %2175 = vmatprep.subr.mxu0 %v1556
    %2176 = vmatpush1.msra.mxu0 %v1555
    %2177 = vmatprep.subr.mxu0 %v1540
    %2178 = vmatpush1.msra.mxu0 %v1539
    %2179 = vmatprep.subr.mxu0 %v1524
    %2180 = vmatpush1.msra.mxu0 %v1523
    %2181 = vmatprep.subr.mxu0 %v1508
    %2182 = vmatpush1.msra.mxu0 %v1507
    %2183 = vmatprep.subr.mxu0 %v1492
    %2184 = vmatpush1.msra.mxu0 %v1491
    %2185 = vmatprep.subr.mxu0 %v1476
    %2186 = vmatpush1.msra.mxu0 %v1475
    %2187 = vmatprep.subr.mxu0 %v1460
    %2188 = vmatpush1.msra.mxu0 %v1459
    %2189 = vmatprep.subr.mxu0 %v1444
    %2190 = vmatpush1.msra.mxu0 %v1443
    %2191 = vmatprep.subr.mxu0 %v1428
    %2192 = vmatpush1.msra.mxu0 %v1427
    %2193 = vmatprep.subr.mxu0 %v1412
    %2194 = vmatpush1.msra.mxu0 %v1411
    %2195 = vmatprep.subr.mxu0 %v1396
    %2196 = vmatpush1.msra.mxu0 %v1395
    %2197 = vmatprep.subr.mxu0 %v1380
    %2198 = vmatpush1.msra.mxu0 %v1379
    %2199 = vmatprep.subr.mxu0 %v1364
    %2200 = vmatpush1.msra.mxu0 %v1363
    %2201 = vmatprep.subr.mxu0 %v1348
    %2202 = vmatpush1.msra.mxu0 %v1347
    %2203 = vmatprep.subr.mxu0 %v1332
    %2204 = vmatpush1.msra.mxu0 %v1331
    %2205 = vmatprep.subr.mxu0 0.0
    %2206 = vmatpush2.msra.mxu0 0.0
    %2207 = vmatprep.subr.mxu0 %v1922
    %2208 = vmatpush2.msra.mxu0 %v1919
    %2209 = vmatprep.subr.mxu0 %v1796
    %2210 = vmatpush2.msra.mxu0 %v1795
    %2211 = vmatprep.subr.mxu0 %v1780
    %2212 = vmatpush2.msra.mxu0 %v1779
    %2213 = vmatprep.subr.mxu0 %v1764
    %2214 = vmatpush2.msra.mxu0 %v1763
    %2215 = vmatprep.subr.mxu0 %v1748
    %2216 = vmatpush2.msra.mxu0 %v1747
    %2217 = vmatprep.subr.mxu0 %v1732
    %2218 = vmatpush2.msra.mxu0 %v1731
    %2219 = vmatprep.subr.mxu0 %v1716
    %2220 = vmatpush2.msra.mxu0 %v1715
    %2221 = vmatprep.subr.mxu0 %v1700
    %2222 = vmatpush2.msra.mxu0 %v1699
    %2223 = vmatprep.subr.mxu0 %v1684
    %2224 = vmatpush2.msra.mxu0 %v1683
    %2225 = vmatprep.subr.mxu0 %v1668
    %2226 = vmatpush2.msra.mxu0 %v1667
    %2227 = vmatprep.subr.mxu0 %v1652
    %2228 = vmatpush2.msra.mxu0 %v1651
    %2229 = vmatprep.subr.mxu0 %v1636
    %2230 = vmatpush2.msra.mxu0 %v1635
    %2231 = vmatprep.subr.mxu0 %v1620
    %2232 = vmatpush2.msra.mxu0 %v1619
    %2233 = vmatprep.subr.mxu0 %v1604
    %2234 = vmatpush2.msra.mxu0 %v1603
    %2235 = vmatprep.subr.mxu0 %v1588
    %2236 = vmatpush2.msra.mxu0 %v1587
    %2237 = vmatprep.mubr.f32.mxu0 %v1910
    %2238 = vmatmul.mubr.f32.gmra.mxu0 %v815
    %v2239 = vpop.f32.mrf.mxu0
    %v2240 = vadd.f32 %v2169, %v2239
    %v2241 = vpop.f32.mrf.mxu0
    %v2242 = vadd.f32 %v2171, %v2241
    %2243 = vdwg.mxu0
    %2244 = vmatprep.subr.mxu0 %v1062
    %2245 = vmatpush1.msra.mxu0 %v1061
    %2246 = vmatprep.subr.mxu0 %v1046
    %2247 = vmatpush1.msra.mxu0 %v1045
    %2248 = vmatprep.subr.mxu0 %v1030
    %2249 = vmatpush1.msra.mxu0 %v1029
    %2250 = vmatprep.subr.mxu0 %v1014
    %2251 = vmatpush1.msra.mxu0 %v1013
    %2252 = vmatprep.subr.mxu0 %v998
    %2253 = vmatpush1.msra.mxu0 %v997
    %2254 = vmatprep.subr.mxu0 %v982
    %2255 = vmatpush1.msra.mxu0 %v981
    %2256 = vmatprep.subr.mxu0 %v966
    %2257 = vmatpush1.msra.mxu0 %v965
    %2258 = vmatprep.subr.mxu0 %v950
    %2259 = vmatpush1.msra.mxu0 %v949
    %2260 = vmatprep.subr.mxu0 %v934
    %2261 = vmatpush1.msra.mxu0 %v933
    %2262 = vmatprep.subr.mxu0 %v918
    %2263 = vmatpush1.msra.mxu0 %v917
    %2264 = vmatprep.subr.mxu0 %v902
    %2265 = vmatpush1.msra.mxu0 %v901
    %2266 = vmatprep.subr.mxu0 %v886
    %2267 = vmatpush1.msra.mxu0 %v885
    %2268 = vmatprep.subr.mxu0 %v870
    %2269 = vmatpush1.msra.mxu0 %v869
    %2270 = vmatprep.subr.mxu0 %v854
    %2271 = vmatpush1.msra.mxu0 %v853
    %2272 = vmatprep.subr.mxu0 %v838
    %2273 = vmatpush1.msra.mxu0 %v837
    %2274 = vmatprep.subr.mxu0 %v822
    %2275 = vmatpush1.msra.mxu0 %v821
    %2276 = vmatprep.subr.mxu0 %v1318
    %2277 = vmatpush2.msra.mxu0 %v1317
    %2278 = vmatprep.subr.mxu0 %v1302
    %2279 = vmatpush2.msra.mxu0 %v1301
    %2280 = vmatprep.subr.mxu0 %v1286
    %2281 = vmatpush2.msra.mxu0 %v1285
    %2282 = vmatprep.subr.mxu0 %v1270
    %2283 = vmatpush2.msra.mxu0 %v1269
    %2284 = vmatprep.subr.mxu0 %v1254
    %2285 = vmatpush2.msra.mxu0 %v1253
    %2286 = vmatprep.subr.mxu0 %v1238
    %2287 = vmatpush2.msra.mxu0 %v1237
    %2288 = vmatprep.subr.mxu0 %v1222
    %2289 = vmatpush2.msra.mxu0 %v1221
    %2290 = vmatprep.subr.mxu0 %v1206
    %2291 = vmatpush2.msra.mxu0 %v1205
    %2292 = vmatprep.subr.mxu0 %v1190
    %2293 = vmatpush2.msra.mxu0 %v1189
    %2294 = vmatprep.subr.mxu0 %v1174
    %2295 = vmatpush2.msra.mxu0 %v1173
    %2296 = vmatprep.subr.mxu0 %v1158
    %2297 = vmatpush2.msra.mxu0 %v1157
    %2298 = vmatprep.subr.mxu0 %v1142
    %2299 = vmatpush2.msra.mxu0 %v1141
    %2300 = vmatprep.subr.mxu0 %v1126
    %2301 = vmatpush2.msra.mxu0 %v1125
    %2302 = vmatprep.subr.mxu0 %v1110
    %2303 = vmatpush2.msra.mxu0 %v1109
    %2304 = vmatprep.subr.mxu0 %v1094
    %2305 = vmatpush2.msra.mxu0 %v1093
    %2306 = vmatprep.subr.mxu0 %v1078
    %2307 = vmatpush2.msra.mxu0 %v1077
    %2308 = vmatprep.mubr.f32.mxu0 %v814
    %2309 = vmatmul.mubr.f32.gmra.mxu0 %v813
    %v2310 = vpop.f32.mrf.mxu0
    %v2311 = vadd.f32 %v1848, %v2310
    %v2312 = vpop.f32.mrf.mxu0
    %v2313 = vadd.f32 %v1852, %v2312
    %2314 = vdwg.mxu0
    %2315 = vmatprep.subr.mxu0 %v1574
    %2316 = vmatpush1.msra.mxu0 %v1573
    %2317 = vmatprep.subr.mxu0 %v1558
    %2318 = vmatpush1.msra.mxu0 %v1557
    %2319 = vmatprep.subr.mxu0 %v1542
    %2320 = vmatpush1.msra.mxu0 %v1541
    %2321 = vmatprep.subr.mxu0 %v1526
    %2322 = vmatpush1.msra.mxu0 %v1525
    %2323 = vmatprep.subr.mxu0 %v1510
    %2324 = vmatpush1.msra.mxu0 %v1509
    %2325 = vmatprep.subr.mxu0 %v1494
    %2326 = vmatpush1.msra.mxu0 %v1493
    %2327 = vmatprep.subr.mxu0 %v1478
    %2328 = vmatpush1.msra.mxu0 %v1477
    %2329 = vmatprep.subr.mxu0 %v1462
    %2330 = vmatpush1.msra.mxu0 %v1461
    %2331 = vmatprep.subr.mxu0 %v1446
    %2332 = vmatpush1.msra.mxu0 %v1445
    %2333 = vmatprep.subr.mxu0 %v1430
    %2334 = vmatpush1.msra.mxu0 %v1429
    %2335 = vmatprep.subr.mxu0 %v1414
    %2336 = vmatpush1.msra.mxu0 %v1413
    %2337 = vmatprep.subr.mxu0 %v1398
    %2338 = vmatpush1.msra.mxu0 %v1397
    %2339 = vmatprep.subr.mxu0 %v1382
    %2340 = vmatpush1.msra.mxu0 %v1381
    %2341 = vmatprep.subr.mxu0 %v1366
    %2342 = vmatpush1.msra.mxu0 %v1365
    %2343 = vmatprep.subr.mxu0 %v1350
    %2344 = vmatpush1.msra.mxu0 %v1349
    %2345 = vmatprep.subr.mxu0 %v1334
    %2346 = vmatpush1.msra.mxu0 %v1333
    %2347 = vmatprep.subr.mxu0 0.0
    %2348 = vmatpush2.msra.mxu0 0.0
    %2349 = vmatprep.subr.mxu0 %v1928
    %2350 = vmatpush2.msra.mxu0 %v1925
    %2351 = vmatprep.subr.mxu0 %v1798
    %2352 = vmatpush2.msra.mxu0 %v1797
    %2353 = vmatprep.subr.mxu0 %v1782
    %2354 = vmatpush2.msra.mxu0 %v1781
    %2355 = vmatprep.subr.mxu0 %v1766
    %2356 = vmatpush2.msra.mxu0 %v1765
    %2357 = vmatprep.subr.mxu0 %v1750
    %2358 = vmatpush2.msra.mxu0 %v1749
    %2359 = vmatprep.subr.mxu0 %v1734
    %2360 = vmatpush2.msra.mxu0 %v1733
    %2361 = vmatprep.subr.mxu0 %v1718
    %2362 = vmatpush2.msra.mxu0 %v1717
    %2363 = vmatprep.subr.mxu0 %v1702
    %2364 = vmatpush2.msra.mxu0 %v1701
    %2365 = vmatprep.subr.mxu0 %v1686
    %2366 = vmatpush2.msra.mxu0 %v1685
    %2367 = vmatprep.subr.mxu0 %v1670
    %2368 = vmatpush2.msra.mxu0 %v1669
    %2369 = vmatprep.subr.mxu0 %v1654
    %2370 = vmatpush2.msra.mxu0 %v1653
    %2371 = vmatprep.subr.mxu0 %v1638
    %2372 = vmatpush2.msra.mxu0 %v1637
    %2373 = vmatprep.subr.mxu0 %v1622
    %2374 = vmatpush2.msra.mxu0 %v1621
    %2375 = vmatprep.subr.mxu0 %v1606
    %2376 = vmatpush2.msra.mxu0 %v1605
    %2377 = vmatprep.subr.mxu0 %v1590
    %2378 = vmatpush2.msra.mxu0 %v1589
    %2379 = vmatprep.mubr.f32.mxu0 %v1910
    %2380 = vmatmul.mubr.f32.gmra.mxu0 %v815
    %v2381 = vpop.f32.mrf.mxu0
    %v2382 = vadd.f32 %v2311, %v2381
    %v2383 = vpop.f32.mrf.mxu0
    %v2384 = vadd.f32 %v2313, %v2383
    %2385 = vdwg.mxu0
    %2386 = vmatprep.subr.mxu0 %v1064
    %2387 = vmatpush1.msra.mxu0 %v1063
    %2388 = vmatprep.subr.mxu0 %v1048
    %2389 = vmatpush1.msra.mxu0 %v1047
    %2390 = vmatprep.subr.mxu0 %v1032
    %2391 = vmatpush1.msra.mxu0 %v1031
    %2392 = vmatprep.subr.mxu0 %v1016
    %2393 = vmatpush1.msra.mxu0 %v1015
    %2394 = vmatprep.subr.mxu0 %v1000
    %2395 = vmatpush1.msra.mxu0 %v999
    %2396 = vmatprep.subr.mxu0 %v984
    %2397 = vmatpush1.msra.mxu0 %v983
    %2398 = vmatprep.subr.mxu0 %v968
    %2399 = vmatpush1.msra.mxu0 %v967
    %2400 = vmatprep.subr.mxu0 %v952
    %2401 = vmatpush1.msra.mxu0 %v951
    %2402 = vmatprep.subr.mxu0 %v936
    %2403 = vmatpush1.msra.mxu0 %v935
    %2404 = vmatprep.subr.mxu0 %v920
    %2405 = vmatpush1.msra.mxu0 %v919
    %2406 = vmatprep.subr.mxu0 %v904
    %2407 = vmatpush1.msra.mxu0 %v903
    %2408 = vmatprep.subr.mxu0 %v888
    %2409 = vmatpush1.msra.mxu0 %v887
    %2410 = vmatprep.subr.mxu0 %v872
    %2411 = vmatpush1.msra.mxu0 %v871
    %2412 = vmatprep.subr.mxu0 %v856
    %2413 = vmatpush1.msra.mxu0 %v855
    %2414 = vmatprep.subr.mxu0 %v840
    %2415 = vmatpush1.msra.mxu0 %v839
    %2416 = vmatprep.subr.mxu0 %v824
    %2417 = vmatpush1.msra.mxu0 %v823
    %2418 = vmatprep.subr.mxu0 %v1320
    %2419 = vmatpush2.msra.mxu0 %v1319
    %2420 = vmatprep.subr.mxu0 %v1304
    %2421 = vmatpush2.msra.mxu0 %v1303
    %2422 = vmatprep.subr.mxu0 %v1288
    %2423 = vmatpush2.msra.mxu0 %v1287
    %2424 = vmatprep.subr.mxu0 %v1272
    %2425 = vmatpush2.msra.mxu0 %v1271
    %2426 = vmatprep.subr.mxu0 %v1256
    %2427 = vmatpush2.msra.mxu0 %v1255
    %2428 = vmatprep.subr.mxu0 %v1240
    %2429 = vmatpush2.msra.mxu0 %v1239
    %2430 = vmatprep.subr.mxu0 %v1224
    %2431 = vmatpush2.msra.mxu0 %v1223
    %2432 = vmatprep.subr.mxu0 %v1208
    %2433 = vmatpush2.msra.mxu0 %v1207
    %2434 = vmatprep.subr.mxu0 %v1192
    %2435 = vmatpush2.msra.mxu0 %v1191
    %2436 = vmatprep.subr.mxu0 %v1176
    %2437 = vmatpush2.msra.mxu0 %v1175
    %2438 = vmatprep.subr.mxu0 %v1160
    %2439 = vmatpush2.msra.mxu0 %v1159
    %2440 = vmatprep.subr.mxu0 %v1144
    %2441 = vmatpush2.msra.mxu0 %v1143
    %2442 = vmatprep.subr.mxu0 %v1128
    %2443 = vmatpush2.msra.mxu0 %v1127
    %2444 = vmatprep.subr.mxu0 %v1112
    %2445 = vmatpush2.msra.mxu0 %v1111
    %2446 = vmatprep.subr.mxu0 %v1096
    %2447 = vmatpush2.msra.mxu0 %v1095
    %2448 = vmatprep.subr.mxu0 %v1080
    %2449 = vmatpush2.msra.mxu0 %v1079
    %2450 = vmatprep.mubr.f32.mxu0 %v814
    %2451 = vmatmul.mubr.f32.gmra.mxu0 %v813
    %v2452 = vpop.f32.mrf.mxu0
    %v2453 = vadd.f32 %v1856, %v2452
    %v2454 = vpop.f32.mrf.mxu0
    %v2455 = vadd.f32 %v1860, %v2454
    %2456 = vdwg.mxu0
    %2457 = vmatprep.subr.mxu0 %v1576
    %2458 = vmatpush1.msra.mxu0 %v1575
    %2459 = vmatprep.subr.mxu0 %v1560
    %2460 = vmatpush1.msra.mxu0 %v1559
    %2461 = vmatprep.subr.mxu0 %v1544
    %2462 = vmatpush1.msra.mxu0 %v1543
    %2463 = vmatprep.subr.mxu0 %v1528
    %2464 = vmatpush1.msra.mxu0 %v1527
    %2465 = vmatprep.subr.mxu0 %v1512
    %2466 = vmatpush1.msra.mxu0 %v1511
    %2467 = vmatprep.subr.mxu0 %v1496
    %2468 = vmatpush1.msra.mxu0 %v1495
    %2469 = vmatprep.subr.mxu0 %v1480
    %2470 = vmatpush1.msra.mxu0 %v1479
    %2471 = vmatprep.subr.mxu0 %v1464
    %2472 = vmatpush1.msra.mxu0 %v1463
    %2473 = vmatprep.subr.mxu0 %v1448
    %2474 = vmatpush1.msra.mxu0 %v1447
    %2475 = vmatprep.subr.mxu0 %v1432
    %2476 = vmatpush1.msra.mxu0 %v1431
    %2477 = vmatprep.subr.mxu0 %v1416
    %2478 = vmatpush1.msra.mxu0 %v1415
    %2479 = vmatprep.subr.mxu0 %v1400
    %2480 = vmatpush1.msra.mxu0 %v1399
    %2481 = vmatprep.subr.mxu0 %v1384
    %2482 = vmatpush1.msra.mxu0 %v1383
    %2483 = vmatprep.subr.mxu0 %v1368
    %2484 = vmatpush1.msra.mxu0 %v1367
    %2485 = vmatprep.subr.mxu0 %v1352
    %2486 = vmatpush1.msra.mxu0 %v1351
    %2487 = vmatprep.subr.mxu0 %v1336
    %2488 = vmatpush1.msra.mxu0 %v1335
    %2489 = vmatprep.subr.mxu0 0.0
    %2490 = vmatpush2.msra.mxu0 0.0
    %2491 = vmatprep.subr.mxu0 %v1934
    %2492 = vmatpush2.msra.mxu0 %v1931
    %2493 = vmatprep.subr.mxu0 %v1800
    %2494 = vmatpush2.msra.mxu0 %v1799
    %2495 = vmatprep.subr.mxu0 %v1784
    %2496 = vmatpush2.msra.mxu0 %v1783
    %2497 = vmatprep.subr.mxu0 %v1768
    %2498 = vmatpush2.msra.mxu0 %v1767
    %2499 = vmatprep.subr.mxu0 %v1752
    %2500 = vmatpush2.msra.mxu0 %v1751
    %2501 = vmatprep.subr.mxu0 %v1736
    %2502 = vmatpush2.msra.mxu0 %v1735
    %2503 = vmatprep.subr.mxu0 %v1720
    %2504 = vmatpush2.msra.mxu0 %v1719
    %2505 = vmatprep.subr.mxu0 %v1704
    %2506 = vmatpush2.msra.mxu0 %v1703
    %2507 = vmatprep.subr.mxu0 %v1688
    %2508 = vmatpush2.msra.mxu0 %v1687
    %2509 = vmatprep.subr.mxu0 %v1672
    %2510 = vmatpush2.msra.mxu0 %v1671
    %2511 = vmatprep.subr.mxu0 %v1656
    %2512 = vmatpush2.msra.mxu0 %v1655
    %2513 = vmatprep.subr.mxu0 %v1640
    %2514 = vmatpush2.msra.mxu0 %v1639
    %2515 = vmatprep.subr.mxu0 %v1624
    %2516 = vmatpush2.msra.mxu0 %v1623
    %2517 = vmatprep.subr.mxu0 %v1608
    %2518 = vmatpush2.msra.mxu0 %v1607
    %2519 = vmatprep.subr.mxu0 %v1592
    %2520 = vmatpush2.msra.mxu0 %v1591
    %2521 = vmatprep.mubr.f32.mxu0 %v1910
    %2522 = vmatmul.mubr.f32.gmra.mxu0 %v815
    %v2523 = vpop.f32.mrf.mxu0
    %v2524 = vadd.f32 %v2453, %v2523
    %v2525 = vpop.f32.mrf.mxu0
    %v2526 = vadd.f32 %v2455, %v2525
    %2527 = vdwg.mxu0
    %2528 = vmatprep.subr.mxu0 %v1066
    %2529 = vmatpush1.msra.mxu0 %v1065
    %2530 = vmatprep.subr.mxu0 %v1050
    %2531 = vmatpush1.msra.mxu0 %v1049
    %2532 = vmatprep.subr.mxu0 %v1034
    %2533 = vmatpush1.msra.mxu0 %v1033
    %2534 = vmatprep.subr.mxu0 %v1018
    %2535 = vmatpush1.msra.mxu0 %v1017
    %2536 = vmatprep.subr.mxu0 %v1002
    %2537 = vmatpush1.msra.mxu0 %v1001
    %2538 = vmatprep.subr.mxu0 %v986
    %2539 = vmatpush1.msra.mxu0 %v985
    %2540 = vmatprep.subr.mxu0 %v970
    %2541 = vmatpush1.msra.mxu0 %v969
    %2542 = vmatprep.subr.mxu0 %v954
    %2543 = vmatpush1.msra.mxu0 %v953
    %2544 = vmatprep.subr.mxu0 %v938
    %2545 = vmatpush1.msra.mxu0 %v937
    %2546 = vmatprep.subr.mxu0 %v922
    %2547 = vmatpush1.msra.mxu0 %v921
    %2548 = vmatprep.subr.mxu0 %v906
    %2549 = vmatpush1.msra.mxu0 %v905
    %2550 = vmatprep.subr.mxu0 %v890
    %2551 = vmatpush1.msra.mxu0 %v889
    %2552 = vmatprep.subr.mxu0 %v874
    %2553 = vmatpush1.msra.mxu0 %v873
    %2554 = vmatprep.subr.mxu0 %v858
    %2555 = vmatpush1.msra.mxu0 %v857
    %2556 = vmatprep.subr.mxu0 %v842
    %2557 = vmatpush1.msra.mxu0 %v841
    %2558 = vmatprep.subr.mxu0 %v826
    %2559 = vmatpush1.msra.mxu0 %v825
    %2560 = vmatprep.subr.mxu0 %v1322
    %2561 = vmatpush2.msra.mxu0 %v1321
    %2562 = vmatprep.subr.mxu0 %v1306
    %2563 = vmatpush2.msra.mxu0 %v1305
    %2564 = vmatprep.subr.mxu0 %v1290
    %2565 = vmatpush2.msra.mxu0 %v1289
    %2566 = vmatprep.subr.mxu0 %v1274
    %2567 = vmatpush2.msra.mxu0 %v1273
    %2568 = vmatprep.subr.mxu0 %v1258
    %2569 = vmatpush2.msra.mxu0 %v1257
    %2570 = vmatprep.subr.mxu0 %v1242
    %2571 = vmatpush2.msra.mxu0 %v1241
    %2572 = vmatprep.subr.mxu0 %v1226
    %2573 = vmatpush2.msra.mxu0 %v1225
    %2574 = vmatprep.subr.mxu0 %v1210
    %2575 = vmatpush2.msra.mxu0 %v1209
    %2576 = vmatprep.subr.mxu0 %v1194
    %2577 = vmatpush2.msra.mxu0 %v1193
    %2578 = vmatprep.subr.mxu0 %v1178
    %2579 = vmatpush2.msra.mxu0 %v1177
    %2580 = vmatprep.subr.mxu0 %v1162
    %2581 = vmatpush2.msra.mxu0 %v1161
    %2582 = vmatprep.subr.mxu0 %v1146
    %2583 = vmatpush2.msra.mxu0 %v1145
    %2584 = vmatprep.subr.mxu0 %v1130
    %2585 = vmatpush2.msra.mxu0 %v1129
    %2586 = vmatprep.subr.mxu0 %v1114
    %2587 = vmatpush2.msra.mxu0 %v1113
    %2588 = vmatprep.subr.mxu0 %v1098
    %2589 = vmatpush2.msra.mxu0 %v1097
    %2590 = vmatprep.subr.mxu0 %v1082
    %2591 = vmatpush2.msra.mxu0 %v1081
    %2592 = vmatprep.mubr.f32.mxu0 %v814
    %2593 = vmatmul.mubr.f32.gmra.mxu0 %v813
    %v2594 = vpop.f32.mrf.mxu0
    %v2595 = vadd.f32 %v1864, %v2594
    %v2596 = vpop.f32.mrf.mxu0
    %v2597 = vadd.f32 %v1868, %v2596
    %2598 = vdwg.mxu0
    %2599 = vmatprep.subr.mxu0 %v1578
    %2600 = vmatpush1.msra.mxu0 %v1577
    %2601 = vmatprep.subr.mxu0 %v1562
    %2602 = vmatpush1.msra.mxu0 %v1561
    %2603 = vmatprep.subr.mxu0 %v1546
    %2604 = vmatpush1.msra.mxu0 %v1545
    %2605 = vmatprep.subr.mxu0 %v1530
    %2606 = vmatpush1.msra.mxu0 %v1529
    %2607 = vmatprep.subr.mxu0 %v1514
    %2608 = vmatpush1.msra.mxu0 %v1513
    %2609 = vmatprep.subr.mxu0 %v1498
    %2610 = vmatpush1.msra.mxu0 %v1497
    %2611 = vmatprep.subr.mxu0 %v1482
    %2612 = vmatpush1.msra.mxu0 %v1481
    %2613 = vmatprep.subr.mxu0 %v1466
    %2614 = vmatpush1.msra.mxu0 %v1465
    %2615 = vmatprep.subr.mxu0 %v1450
    %2616 = vmatpush1.msra.mxu0 %v1449
    %2617 = vmatprep.subr.mxu0 %v1434
    %2618 = vmatpush1.msra.mxu0 %v1433
    %2619 = vmatprep.subr.mxu0 %v1418
    %2620 = vmatpush1.msra.mxu0 %v1417
    %2621 = vmatprep.subr.mxu0 %v1402
    %2622 = vmatpush1.msra.mxu0 %v1401
    %2623 = vmatprep.subr.mxu0 %v1386
    %2624 = vmatpush1.msra.mxu0 %v1385
    %2625 = vmatprep.subr.mxu0 %v1370
    %2626 = vmatpush1.msra.mxu0 %v1369
    %2627 = vmatprep.subr.mxu0 %v1354
    %2628 = vmatpush1.msra.mxu0 %v1353
    %2629 = vmatprep.subr.mxu0 %v1338
    %2630 = vmatpush1.msra.mxu0 %v1337
    %2631 = vmatprep.subr.mxu0 0.0
    %2632 = vmatpush2.msra.mxu0 0.0
    %2633 = vmatprep.subr.mxu0 %v1940
    %2634 = vmatpush2.msra.mxu0 %v1937
    %2635 = vmatprep.subr.mxu0 %v1802
    %2636 = vmatpush2.msra.mxu0 %v1801
    %2637 = vmatprep.subr.mxu0 %v1786
    %2638 = vmatpush2.msra.mxu0 %v1785
    %2639 = vmatprep.subr.mxu0 %v1770
    %2640 = vmatpush2.msra.mxu0 %v1769
    %2641 = vmatprep.subr.mxu0 %v1754
    %2642 = vmatpush2.msra.mxu0 %v1753
    %2643 = vmatprep.subr.mxu0 %v1738
    %2644 = vmatpush2.msra.mxu0 %v1737
    %2645 = vmatprep.subr.mxu0 %v1722
    %2646 = vmatpush2.msra.mxu0 %v1721
    %2647 = vmatprep.subr.mxu0 %v1706
    %2648 = vmatpush2.msra.mxu0 %v1705
    %2649 = vmatprep.subr.mxu0 %v1690
    %2650 = vmatpush2.msra.mxu0 %v1689
    %2651 = vmatprep.subr.mxu0 %v1674
    %2652 = vmatpush2.msra.mxu0 %v1673
    %2653 = vmatprep.subr.mxu0 %v1658
    %2654 = vmatpush2.msra.mxu0 %v1657
    %2655 = vmatprep.subr.mxu0 %v1642
    %2656 = vmatpush2.msra.mxu0 %v1641
    %2657 = vmatprep.subr.mxu0 %v1626
    %2658 = vmatpush2.msra.mxu0 %v1625
    %2659 = vmatprep.subr.mxu0 %v1610
    %2660 = vmatpush2.msra.mxu0 %v1609
    %2661 = vmatprep.subr.mxu0 %v1594
    %2662 = vmatpush2.msra.mxu0 %v1593
    %2663 = vmatprep.mubr.f32.mxu0 %v1910
    %2664 = vmatmul.mubr.f32.gmra.mxu0 %v815
    %v2665 = vpop.f32.mrf.mxu0
    %v2666 = vadd.f32 %v2595, %v2665
    %v2667 = vpop.f32.mrf.mxu0
    %v2668 = vadd.f32 %v2597, %v2667
    %2669 = vdwg.mxu0
    %2670 = vmatprep.subr.mxu0 %v1068
    %2671 = vmatpush1.msra.mxu0 %v1067
    %2672 = vmatprep.subr.mxu0 %v1052
    %2673 = vmatpush1.msra.mxu0 %v1051
    %2674 = vmatprep.subr.mxu0 %v1036
    %2675 = vmatpush1.msra.mxu0 %v1035
    %2676 = vmatprep.subr.mxu0 %v1020
    %2677 = vmatpush1.msra.mxu0 %v1019
    %2678 = vmatprep.subr.mxu0 %v1004
    %2679 = vmatpush1.msra.mxu0 %v1003
    %2680 = vmatprep.subr.mxu0 %v988
    %2681 = vmatpush1.msra.mxu0 %v987
    %2682 = vmatprep.subr.mxu0 %v972
    %2683 = vmatpush1.msra.mxu0 %v971
    %2684 = vmatprep.subr.mxu0 %v956
    %2685 = vmatpush1.msra.mxu0 %v955
    %2686 = vmatprep.subr.mxu0 %v940
    %2687 = vmatpush1.msra.mxu0 %v939
    %2688 = vmatprep.subr.mxu0 %v924
    %2689 = vmatpush1.msra.mxu0 %v923
    %2690 = vmatprep.subr.mxu0 %v908
    %2691 = vmatpush1.msra.mxu0 %v907
    %2692 = vmatprep.subr.mxu0 %v892
    %2693 = vmatpush1.msra.mxu0 %v891
    %2694 = vmatprep.subr.mxu0 %v876
    %2695 = vmatpush1.msra.mxu0 %v875
    %2696 = vmatprep.subr.mxu0 %v860
    %2697 = vmatpush1.msra.mxu0 %v859
    %2698 = vmatprep.subr.mxu0 %v844
    %2699 = vmatpush1.msra.mxu0 %v843
    %2700 = vmatprep.subr.mxu0 %v828
    %2701 = vmatpush1.msra.mxu0 %v827
    %2702 = vmatprep.subr.mxu0 %v1324
    %2703 = vmatpush2.msra.mxu0 %v1323
    %2704 = vmatprep.subr.mxu0 %v1308
    %2705 = vmatpush2.msra.mxu0 %v1307
    %2706 = vmatprep.subr.mxu0 %v1292
    %2707 = vmatpush2.msra.mxu0 %v1291
    %2708 = vmatprep.subr.mxu0 %v1276
    %2709 = vmatpush2.msra.mxu0 %v1275
    %2710 = vmatprep.subr.mxu0 %v1260
    %2711 = vmatpush2.msra.mxu0 %v1259
    %2712 = vmatprep.subr.mxu0 %v1244
    %2713 = vmatpush2.msra.mxu0 %v1243
    %2714 = vmatprep.subr.mxu0 %v1228
    %2715 = vmatpush2.msra.mxu0 %v1227
    %2716 = vmatprep.subr.mxu0 %v1212
    %2717 = vmatpush2.msra.mxu0 %v1211
    %2718 = vmatprep.subr.mxu0 %v1196
    %2719 = vmatpush2.msra.mxu0 %v1195
    %2720 = vmatprep.subr.mxu0 %v1180
    %2721 = vmatpush2.msra.mxu0 %v1179
    %2722 = vmatprep.subr.mxu0 %v1164
    %2723 = vmatpush2.msra.mxu0 %v1163
    %2724 = vmatprep.subr.mxu0 %v1148
    %2725 = vmatpush2.msra.mxu0 %v1147
    %2726 = vmatprep.subr.mxu0 %v1132
    %2727 = vmatpush2.msra.mxu0 %v1131
    %2728 = vmatprep.subr.mxu0 %v1116
    %2729 = vmatpush2.msra.mxu0 %v1115
    %2730 = vmatprep.subr.mxu0 %v1100
    %2731 = vmatpush2.msra.mxu0 %v1099
    %2732 = vmatprep.subr.mxu0 %v1084
    %2733 = vmatpush2.msra.mxu0 %v1083
    %2734 = vmatprep.mubr.f32.mxu0 %v814
    %2735 = vmatmul.mubr.f32.gmra.mxu0 %v813
    %v2736 = vpop.f32.mrf.mxu0
    %v2737 = vadd.f32 %v1872, %v2736
    %v2738 = vpop.f32.mrf.mxu0
    %v2739 = vadd.f32 %v1876, %v2738
    %2740 = vdwg.mxu0
    %2741 = vmatprep.subr.mxu0 %v1580
    %2742 = vmatpush1.msra.mxu0 %v1579
    %2743 = vmatprep.subr.mxu0 %v1564
    %2744 = vmatpush1.msra.mxu0 %v1563
    %2745 = vmatprep.subr.mxu0 %v1548
    %2746 = vmatpush1.msra.mxu0 %v1547
    %2747 = vmatprep.subr.mxu0 %v1532
    %2748 = vmatpush1.msra.mxu0 %v1531
    %2749 = vmatprep.subr.mxu0 %v1516
    %2750 = vmatpush1.msra.mxu0 %v1515
    %2751 = vmatprep.subr.mxu0 %v1500
    %2752 = vmatpush1.msra.mxu0 %v1499
    %2753 = vmatprep.subr.mxu0 %v1484
    %2754 = vmatpush1.msra.mxu0 %v1483
    %2755 = vmatprep.subr.mxu0 %v1468
    %2756 = vmatpush1.msra.mxu0 %v1467
    %2757 = vmatprep.subr.mxu0 %v1452
    %2758 = vmatpush1.msra.mxu0 %v1451
    %2759 = vmatprep.subr.mxu0 %v1436
    %2760 = vmatpush1.msra.mxu0 %v1435
    %2761 = vmatprep.subr.mxu0 %v1420
    %2762 = vmatpush1.msra.mxu0 %v1419
    %2763 = vmatprep.subr.mxu0 %v1404
    %2764 = vmatpush1.msra.mxu0 %v1403
    %2765 = vmatprep.subr.mxu0 %v1388
    %2766 = vmatpush1.msra.mxu0 %v1387
    %2767 = vmatprep.subr.mxu0 %v1372
    %2768 = vmatpush1.msra.mxu0 %v1371
    %2769 = vmatprep.subr.mxu0 %v1356
    %2770 = vmatpush1.msra.mxu0 %v1355
    %2771 = vmatprep.subr.mxu0 %v1340
    %2772 = vmatpush1.msra.mxu0 %v1339
    %2773 = vmatprep.subr.mxu0 0.0
    %2774 = vmatpush2.msra.mxu0 0.0
    %2775 = vmatprep.subr.mxu0 %v1946
    %2776 = vmatpush2.msra.mxu0 %v1943
    %2777 = vmatprep.subr.mxu0 %v1804
    %2778 = vmatpush2.msra.mxu0 %v1803
    %2779 = vmatprep.subr.mxu0 %v1788
    %2780 = vmatpush2.msra.mxu0 %v1787
    %2781 = vmatprep.subr.mxu0 %v1772
    %2782 = vmatpush2.msra.mxu0 %v1771
    %2783 = vmatprep.subr.mxu0 %v1756
    %2784 = vmatpush2.msra.mxu0 %v1755
    %2785 = vmatprep.subr.mxu0 %v1740
    %2786 = vmatpush2.msra.mxu0 %v1739
    %2787 = vmatprep.subr.mxu0 %v1724
    %2788 = vmatpush2.msra.mxu0 %v1723
    %2789 = vmatprep.subr.mxu0 %v1708
    %2790 = vmatpush2.msra.mxu0 %v1707
    %2791 = vmatprep.subr.mxu0 %v1692
    %2792 = vmatpush2.msra.mxu0 %v1691
    %2793 = vmatprep.subr.mxu0 %v1676
    %2794 = vmatpush2.msra.mxu0 %v1675
    %2795 = vmatprep.subr.mxu0 %v1660
    %2796 = vmatpush2.msra.mxu0 %v1659
    %2797 = vmatprep.subr.mxu0 %v1644
    %2798 = vmatpush2.msra.mxu0 %v1643
    %2799 = vmatprep.subr.mxu0 %v1628
    %2800 = vmatpush2.msra.mxu0 %v1627
    %2801 = vmatprep.subr.mxu0 %v1612
    %2802 = vmatpush2.msra.mxu0 %v1611
    %2803 = vmatprep.subr.mxu0 %v1596
    %2804 = vmatpush2.msra.mxu0 %v1595
    %2805 = vmatprep.mubr.f32.mxu0 %v1910
    %2806 = vmatmul.mubr.f32.gmra.mxu0 %v815
    %v2807 = vpop.f32.mrf.mxu0
    %v2808 = vadd.f32 %v2737, %v2807
    %v2809 = vpop.f32.mrf.mxu0
    %v2810 = vadd.f32 %v2739, %v2809
    %2811 = vdwg.mxu0
    %2812 = vmatprep.subr.mxu0 %v1070
    %2813 = vmatpush1.msra.mxu0 %v1069
    %2814 = vmatprep.subr.mxu0 %v1054
    %2815 = vmatpush1.msra.mxu0 %v1053
    %2816 = vmatprep.subr.mxu0 %v1038
    %2817 = vmatpush1.msra.mxu0 %v1037
    %2818 = vmatprep.subr.mxu0 %v1022
    %2819 = vmatpush1.msra.mxu0 %v1021
    %2820 = vmatprep.subr.mxu0 %v1006
    %2821 = vmatpush1.msra.mxu0 %v1005
    %2822 = vmatprep.subr.mxu0 %v990
    %2823 = vmatpush1.msra.mxu0 %v989
    %2824 = vmatprep.subr.mxu0 %v974
    %2825 = vmatpush1.msra.mxu0 %v973
    %2826 = vmatprep.subr.mxu0 %v958
    %2827 = vmatpush1.msra.mxu0 %v957
    %2828 = vmatprep.subr.mxu0 %v942
    %2829 = vmatpush1.msra.mxu0 %v941
    %2830 = vmatprep.subr.mxu0 %v926
    %2831 = vmatpush1.msra.mxu0 %v925
    %2832 = vmatprep.subr.mxu0 %v910
    %2833 = vmatpush1.msra.mxu0 %v909
    %2834 = vmatprep.subr.mxu0 %v894
    %2835 = vmatpush1.msra.mxu0 %v893
    %2836 = vmatprep.subr.mxu0 %v878
    %2837 = vmatpush1.msra.mxu0 %v877
    %2838 = vmatprep.subr.mxu0 %v862
    %2839 = vmatpush1.msra.mxu0 %v861
    %2840 = vmatprep.subr.mxu0 %v846
    %2841 = vmatpush1.msra.mxu0 %v845
    %2842 = vmatprep.subr.mxu0 %v830
    %2843 = vmatpush1.msra.mxu0 %v829
    %2844 = vmatprep.subr.mxu0 %v1326
    %2845 = vmatpush2.msra.mxu0 %v1325
    %2846 = vmatprep.subr.mxu0 %v1310
    %2847 = vmatpush2.msra.mxu0 %v1309
    %2848 = vmatprep.subr.mxu0 %v1294
    %2849 = vmatpush2.msra.mxu0 %v1293
    %2850 = vmatprep.subr.mxu0 %v1278
    %2851 = vmatpush2.msra.mxu0 %v1277
    %2852 = vmatprep.subr.mxu0 %v1262
    %2853 = vmatpush2.msra.mxu0 %v1261
    %2854 = vmatprep.subr.mxu0 %v1246
    %2855 = vmatpush2.msra.mxu0 %v1245
    %2856 = vmatprep.subr.mxu0 %v1230
    %2857 = vmatpush2.msra.mxu0 %v1229
    %2858 = vmatprep.subr.mxu0 %v1214
    %2859 = vmatpush2.msra.mxu0 %v1213
    %2860 = vmatprep.subr.mxu0 %v1198
    %2861 = vmatpush2.msra.mxu0 %v1197
    %2862 = vmatprep.subr.mxu0 %v1182
    %2863 = vmatpush2.msra.mxu0 %v1181
    %2864 = vmatprep.subr.mxu0 %v1166
    %2865 = vmatpush2.msra.mxu0 %v1165
    %2866 = vmatprep.subr.mxu0 %v1150
    %2867 = vmatpush2.msra.mxu0 %v1149
    %2868 = vmatprep.subr.mxu0 %v1134
    %2869 = vmatpush2.msra.mxu0 %v1133
    %2870 = vmatprep.subr.mxu0 %v1118
    %2871 = vmatpush2.msra.mxu0 %v1117
    %2872 = vmatprep.subr.mxu0 %v1102
    %2873 = vmatpush2.msra.mxu0 %v1101
    %2874 = vmatprep.subr.mxu0 %v1086
    %2875 = vmatpush2.msra.mxu0 %v1085
    %2876 = vmatprep.mubr.f32.mxu0 %v814
    %2877 = vmatmul.mubr.f32.gmra.mxu0 %v813
    %v2878 = vpop.f32.mrf.mxu0
    %v2879 = vadd.f32 %v1880, %v2878
    %v2880 = vpop.f32.mrf.mxu0
    %v2881 = vadd.f32 %v1884, %v2880
    %2882 = vdwg.mxu0
    %2883 = vmatprep.subr.mxu0 %v1582
    %2884 = vmatpush1.msra.mxu0 %v1581
    %2885 = vmatprep.subr.mxu0 %v1566
    %2886 = vmatpush1.msra.mxu0 %v1565
    %2887 = vmatprep.subr.mxu0 %v1550
    %2888 = vmatpush1.msra.mxu0 %v1549
    %2889 = vmatprep.subr.mxu0 %v1534
    %2890 = vmatpush1.msra.mxu0 %v1533
    %2891 = vmatprep.subr.mxu0 %v1518
    %2892 = vmatpush1.msra.mxu0 %v1517
    %2893 = vmatprep.subr.mxu0 %v1502
    %2894 = vmatpush1.msra.mxu0 %v1501
    %2895 = vmatprep.subr.mxu0 %v1486
    %2896 = vmatpush1.msra.mxu0 %v1485
    %2897 = vmatprep.subr.mxu0 %v1470
    %2898 = vmatpush1.msra.mxu0 %v1469
    %2899 = vmatprep.subr.mxu0 %v1454
    %2900 = vmatpush1.msra.mxu0 %v1453
    %2901 = vmatprep.subr.mxu0 %v1438
    %2902 = vmatpush1.msra.mxu0 %v1437
    %2903 = vmatprep.subr.mxu0 %v1422
    %2904 = vmatpush1.msra.mxu0 %v1421
    %2905 = vmatprep.subr.mxu0 %v1406
    %2906 = vmatpush1.msra.mxu0 %v1405
    %2907 = vmatprep.subr.mxu0 %v1390
    %2908 = vmatpush1.msra.mxu0 %v1389
    %2909 = vmatprep.subr.mxu0 %v1374
    %2910 = vmatpush1.msra.mxu0 %v1373
    %2911 = vmatprep.subr.mxu0 %v1358
    %2912 = vmatpush1.msra.mxu0 %v1357
    %2913 = vmatprep.subr.mxu0 %v1342
    %2914 = vmatpush1.msra.mxu0 %v1341
    %2915 = vmatprep.subr.mxu0 0.0
    %2916 = vmatpush2.msra.mxu0 0.0
    %2917 = vmatprep.subr.mxu0 %v1952
    %2918 = vmatpush2.msra.mxu0 %v1949
    %2919 = vmatprep.subr.mxu0 %v1806
    %2920 = vmatpush2.msra.mxu0 %v1805
    %2921 = vmatprep.subr.mxu0 %v1790
    %2922 = vmatpush2.msra.mxu0 %v1789
    %2923 = vmatprep.subr.mxu0 %v1774
    %2924 = vmatpush2.msra.mxu0 %v1773
    %2925 = vmatprep.subr.mxu0 %v1758
    %2926 = vmatpush2.msra.mxu0 %v1757
    %2927 = vmatprep.subr.mxu0 %v1742
    %2928 = vmatpush2.msra.mxu0 %v1741
    %2929 = vmatprep.subr.mxu0 %v1726
    %2930 = vmatpush2.msra.mxu0 %v1725
    %2931 = vmatprep.subr.mxu0 %v1710
    %2932 = vmatpush2.msra.mxu0 %v1709
    %2933 = vmatprep.subr.mxu0 %v1694
    %2934 = vmatpush2.msra.mxu0 %v1693
    %2935 = vmatprep.subr.mxu0 %v1678
    %2936 = vmatpush2.msra.mxu0 %v1677
    %2937 = vmatprep.subr.mxu0 %v1662
    %2938 = vmatpush2.msra.mxu0 %v1661
    %2939 = vmatprep.subr.mxu0 %v1646
    %2940 = vmatpush2.msra.mxu0 %v1645
    %2941 = vmatprep.subr.mxu0 %v1630
    %2942 = vmatpush2.msra.mxu0 %v1629
    %2943 = vmatprep.subr.mxu0 %v1614
    %2944 = vmatpush2.msra.mxu0 %v1613
    %2945 = vmatprep.subr.mxu0 %v1598
    %2946 = vmatpush2.msra.mxu0 %v1597
    %2947 = vmatprep.mubr.f32.mxu0 %v1910
    %2948 = vmatmul.mubr.f32.gmra.mxu0 %v815
    %v2949 = vpop.f32.mrf.mxu0
    %v2950 = vadd.f32 %v2879, %v2949
    %v2951 = vpop.f32.mrf.mxu0
    %v2952 = vadd.f32 %v2881, %v2951
    %2953 = vdwg.mxu0
    %2954 = vmatprep.subr.mxu0 %v1072
    %2955 = vmatpush1.msra.mxu0 %v1071
    %2956 = vmatprep.subr.mxu0 %v1056
    %2957 = vmatpush1.msra.mxu0 %v1055
    %2958 = vmatprep.subr.mxu0 %v1040
    %2959 = vmatpush1.msra.mxu0 %v1039
    %2960 = vmatprep.subr.mxu0 %v1024
    %2961 = vmatpush1.msra.mxu0 %v1023
    %2962 = vmatprep.subr.mxu0 %v1008
    %2963 = vmatpush1.msra.mxu0 %v1007
    %2964 = vmatprep.subr.mxu0 %v992
    %2965 = vmatpush1.msra.mxu0 %v991
    %2966 = vmatprep.subr.mxu0 %v976
    %2967 = vmatpush1.msra.mxu0 %v975
    %2968 = vmatprep.subr.mxu0 %v960
    %2969 = vmatpush1.msra.mxu0 %v959
    %2970 = vmatprep.subr.mxu0 %v944
    %2971 = vmatpush1.msra.mxu0 %v943
    %2972 = vmatprep.subr.mxu0 %v928
    %2973 = vmatpush1.msra.mxu0 %v927
    %2974 = vmatprep.subr.mxu0 %v912
    %2975 = vmatpush1.msra.mxu0 %v911
    %2976 = vmatprep.subr.mxu0 %v896
    %2977 = vmatpush1.msra.mxu0 %v895
    %2978 = vmatprep.subr.mxu0 %v880
    %2979 = vmatpush1.msra.mxu0 %v879
    %2980 = vmatprep.subr.mxu0 %v864
    %2981 = vmatpush1.msra.mxu0 %v863
    %2982 = vmatprep.subr.mxu0 %v848
    %2983 = vmatpush1.msra.mxu0 %v847
    %2984 = vmatprep.subr.mxu0 %v832
    %2985 = vmatpush1.msra.mxu0 %v831
    %2986 = vmatprep.subr.mxu0 %v1328
    %2987 = vmatpush2.msra.mxu0 %v1327
    %2988 = vmatprep.subr.mxu0 %v1312
    %2989 = vmatpush2.msra.mxu0 %v1311
    %2990 = vmatprep.subr.mxu0 %v1296
    %2991 = vmatpush2.msra.mxu0 %v1295
    %2992 = vmatprep.subr.mxu0 %v1280
    %2993 = vmatpush2.msra.mxu0 %v1279
    %2994 = vmatprep.subr.mxu0 %v1264
    %2995 = vmatpush2.msra.mxu0 %v1263
    %2996 = vmatprep.subr.mxu0 %v1248
    %2997 = vmatpush2.msra.mxu0 %v1247
    %2998 = vmatprep.subr.mxu0 %v1232
    %2999 = vmatpush2.msra.mxu0 %v1231
    %3000 = vmatprep.subr.mxu0 %v1216
    %3001 = vmatpush2.msra.mxu0 %v1215
    %3002 = vmatprep.subr.mxu0 %v1200
    %3003 = vmatpush2.msra.mxu0 %v1199
    %3004 = vmatprep.subr.mxu0 %v1184
    %3005 = vmatpush2.msra.mxu0 %v1183
    %3006 = vmatprep.subr.mxu0 %v1168
    %3007 = vmatpush2.msra.mxu0 %v1167
    %3008 = vmatprep.subr.mxu0 %v1152
    %3009 = vmatpush2.msra.mxu0 %v1151
    %3010 = vmatprep.subr.mxu0 %v1136
    %3011 = vmatpush2.msra.mxu0 %v1135
    %3012 = vmatprep.subr.mxu0 %v1120
    %3013 = vmatpush2.msra.mxu0 %v1119
    %3014 = vmatprep.subr.mxu0 %v1104
    %3015 = vmatpush2.msra.mxu0 %v1103
    %3016 = vmatprep.subr.mxu0 %v1088
    %3017 = vmatpush2.msra.mxu0 %v1087
    %3018 = vmatprep.mubr.f32.mxu0 %v814
    %3019 = vmatmul.mubr.f32.gmra.mxu0 %v813
    %v3020 = vpop.f32.mrf.mxu0
    %v3021 = vadd.f32 %v1888, %v3020
    %v3022 = vpop.f32.mrf.mxu0
    %v3023 = vadd.f32 %v1892, %v3022
    %3024 = vdwg.mxu0
    %3025 = vmatprep.subr.mxu0 %v1584
    %3026 = vmatpush1.msra.mxu0 %v1583
    %3027 = vmatprep.subr.mxu0 %v1568
    %3028 = vmatpush1.msra.mxu0 %v1567
    %3029 = vmatprep.subr.mxu0 %v1552
    %3030 = vmatpush1.msra.mxu0 %v1551
    %3031 = vmatprep.subr.mxu0 %v1536
    %3032 = vmatpush1.msra.mxu0 %v1535
    %3033 = vmatprep.subr.mxu0 %v1520
    %3034 = vmatpush1.msra.mxu0 %v1519
    %3035 = vmatprep.subr.mxu0 %v1504
    %3036 = vmatpush1.msra.mxu0 %v1503
    %3037 = vmatprep.subr.mxu0 %v1488
    %3038 = vmatpush1.msra.mxu0 %v1487
    %3039 = vmatprep.subr.mxu0 %v1472
    %3040 = vmatpush1.msra.mxu0 %v1471
    %3041 = vmatprep.subr.mxu0 %v1456
    %3042 = vmatpush1.msra.mxu0 %v1455
    %3043 = vmatprep.subr.mxu0 %v1440
    %3044 = vmatpush1.msra.mxu0 %v1439
    %3045 = vmatprep.subr.mxu0 %v1424
    %3046 = vmatpush1.msra.mxu0 %v1423
    %3047 = vmatprep.subr.mxu0 %v1408
    %3048 = vmatpush1.msra.mxu0 %v1407
    %3049 = vmatprep.subr.mxu0 %v1392
    %3050 = vmatpush1.msra.mxu0 %v1391
    %3051 = vmatprep.subr.mxu0 %v1376
    %3052 = vmatpush1.msra.mxu0 %v1375
    %3053 = vmatprep.subr.mxu0 %v1360
    %3054 = vmatpush1.msra.mxu0 %v1359
    %3055 = vmatprep.subr.mxu0 %v1344
    %3056 = vmatpush1.msra.mxu0 %v1343
    %3057 = vmatprep.subr.mxu0 0.0
    %3058 = vmatpush2.msra.mxu0 0.0
    %3059 = vmatprep.subr.mxu0 %v1958
    %3060 = vmatpush2.msra.mxu0 %v1955
    %3061 = vmatprep.subr.mxu0 %v1808
    %3062 = vmatpush2.msra.mxu0 %v1807
    %3063 = vmatprep.subr.mxu0 %v1792
    %3064 = vmatpush2.msra.mxu0 %v1791
    %3065 = vmatprep.subr.mxu0 %v1776
    %3066 = vmatpush2.msra.mxu0 %v1775
    %3067 = vmatprep.subr.mxu0 %v1760
    %3068 = vmatpush2.msra.mxu0 %v1759
    %3069 = vmatprep.subr.mxu0 %v1744
    %3070 = vmatpush2.msra.mxu0 %v1743
    %3071 = vmatprep.subr.mxu0 %v1728
    %3072 = vmatpush2.msra.mxu0 %v1727
    %3073 = vmatprep.subr.mxu0 %v1712
    %3074 = vmatpush2.msra.mxu0 %v1711
    %3075 = vmatprep.subr.mxu0 %v1696
    %3076 = vmatpush2.msra.mxu0 %v1695
    %3077 = vmatprep.subr.mxu0 %v1680
    %3078 = vmatpush2.msra.mxu0 %v1679
    %3079 = vmatprep.subr.mxu0 %v1664
    %3080 = vmatpush2.msra.mxu0 %v1663
    %3081 = vmatprep.subr.mxu0 %v1648
    %3082 = vmatpush2.msra.mxu0 %v1647
    %3083 = vmatprep.subr.mxu0 %v1632
    %3084 = vmatpush2.msra.mxu0 %v1631
    %3085 = vmatprep.subr.mxu0 %v1616
    %3086 = vmatpush2.msra.mxu0 %v1615
    %3087 = vmatprep.subr.mxu0 %v1600
    %3088 = vmatpush2.msra.mxu0 %v1599
    %3089 = vmatprep.mubr.f32.mxu0 %v1910
    %3090 = vmatmul.mubr.f32.gmra.mxu0 %v815
    %v3091 = vpop.f32.mrf.mxu0
    %v3092 = vadd.f32 %v3021, %v3091
    %v3093 = vpop.f32.mrf.mxu0
    %v3094 = vadd.f32 %v3023, %v3093
    %3095 = vdwg.mxu0
    %v3096 = vmax.f32 %v2098, 0.0
    %v3097 = vmax.f32 %v2100, 0.0
    %v3098 = vmax.f32 %v2240, 0.0
    %v3099 = vmax.f32 %v2242, 0.0
    %v3100 = vmax.f32 %v2382, 0.0
    %v3101 = vmax.f32 %v2384, 0.0
    %v3102 = vmax.f32 %v2524, 0.0
    %v3103 = vmax.f32 %v2526, 0.0
    %v3104 = vmax.f32 %v2666, 0.0
    %v3105 = vmax.f32 %v2668, 0.0
    %v3106 = vmax.f32 %v2808, 0.0
    %v3107 = vmax.f32 %v2810, 0.0
    %v3108 = vmax.f32 %v2950, 0.0
    %v3109 = vmax.f32 %v2952, 0.0
    %v3110 = vmax.f32 %v3092, 0.0
    %v3111 = vmax.f32 %v3094, 0.0
    %v3112 = vld [vmem:[%s7] sm:$0xff]
    %v3113 = vld [vmem:[%s7 + $0x8] sm:$0xff]
    %v3114 = vld [vmem:[%s7 + $0x10] sm:$0xff]
    %v3115 = vld [vmem:[%s7 + $0x18] sm:$0xff]
    %v3116 = vld [vmem:[%s7 + $0x20] sm:$0xff]
    %v3117 = vld [vmem:[%s7 + $0x28] sm:$0xff]
    %v3118 = vld [vmem:[%s7 + $0x30] sm:$0xff]
    %v3119 = vld [vmem:[%s7 + $0x38] sm:$0xff]
    %v3120 = vld [vmem:[%s7 + $0x40] sm:$0xff]
    %v3121 = vld [vmem:[%s7 + $0x48] sm:$0xff]
    %v3122 = vld [vmem:[%s7 + $0x50] sm:$0xff]
    %v3123 = vld [vmem:[%s7 + $0x58] sm:$0xff]
    %v3124 = vld [vmem:[%s7 + $0x60] sm:$0xff]
    %v3125 = vld [vmem:[%s7 + $0x68] sm:$0xff]
    %v3126 = vld [vmem:[%s7 + $0x70] sm:$0xff]
    %v3127 = vld [vmem:[%s7 + $0x78] sm:$0xff]
    %v3128 = vld [vmem:[%s7 + $0x80] sm:$0xff]
    %v3129 = vld [vmem:[%s7 + $0x88] sm:$0xff]
    %v3130 = vld [vmem:[%s7 + $0x90] sm:$0xff]
    %v3131 = vld [vmem:[%s7 + $0x98] sm:$0xff]
    %v3132 = vld [vmem:[%s7 + $0xa0] sm:$0xff]
    %v3133 = vld [vmem:[%s7 + $0xa8] sm:$0xff]
    %v3134 = vld [vmem:[%s7 + $0xb0] sm:$0xff]
    %v3135 = vld [vmem:[%s7 + $0xb8] sm:$0xff]
    %v3136 = vld [vmem:[%s7 + $0xc0] sm:$0xff]
    %v3137 = vld [vmem:[%s7 + $0xc8] sm:$0xff]
    %v3138 = vld [vmem:[%s7 + $0xd0] sm:$0xff]
    %v3139 = vld [vmem:[%s7 + $0xd8] sm:$0xff]
    %v3140 = vld [vmem:[%s7 + $0xe0] sm:$0xff]
    %v3141 = vld [vmem:[%s7 + $0xe8] sm:$0xff]
    %v3142 = vld [vmem:[%s7 + $0xf0] sm:$0xff]
    %v3143 = vld [vmem:[%s7 + $0xf8] sm:$0xff]
    %v3144 = vld [vmem:[%s7 + $0x100] sm:$0xff]
    %v3145 = vld [vmem:[%s7 + $0x108] sm:$0xff]
    %v3146 = vld [vmem:[%s7 + $0x110] sm:$0xff]
    %v3147 = vld [vmem:[%s7 + $0x118] sm:$0xff]
    %v3148 = vld [vmem:[%s7 + $0x120] sm:$0xff]
    %v3149 = vld [vmem:[%s7 + $0x128] sm:$0xff]
    %v3150 = vld [vmem:[%s7 + $0x130] sm:$0xff]
    %v3151 = vld [vmem:[%s7 + $0x138] sm:$0xff]
    %v3152 = vld [vmem:[%s7 + $0x140] sm:$0xff]
    %v3153 = vld [vmem:[%s7 + $0x148] sm:$0xff]
    %v3154 = vld [vmem:[%s7 + $0x150] sm:$0xff]
    %v3155 = vld [vmem:[%s7 + $0x158] sm:$0xff]
    %v3156 = vld [vmem:[%s7 + $0x160] sm:$0xff]
    %v3157 = vld [vmem:[%s7 + $0x168] sm:$0xff]
    %v3158 = vld [vmem:[%s7 + $0x170] sm:$0xff]
    %v3159 = vld [vmem:[%s7 + $0x178] sm:$0xff]
    %v3160 = vld [vmem:[%s7 + $0x180] sm:$0xff]
    %v3161 = vld [vmem:[%s7 + $0x188] sm:$0xff]
    %v3162 = vld [vmem:[%s7 + $0x190] sm:$0xff]
    %v3163 = vld [vmem:[%s7 + $0x198] sm:$0xff]
    %v3164 = vld [vmem:[%s7 + $0x1a0] sm:$0xff]
    %v3165 = vld [vmem:[%s7 + $0x1a8] sm:$0xff]
    %v3166 = vld [vmem:[%s7 + $0x1b0] sm:$0xff]
    %v3167 = vld [vmem:[%s7 + $0x1b8] sm:$0xff]
    %v3168 = vld [vmem:[%s7 + $0x1c0] sm:$0xff]
    %v3169 = vld [vmem:[%s7 + $0x1c8] sm:$0xff]
    %v3170 = vld [vmem:[%s7 + $0x1d0] sm:$0xff]
    %v3171 = vld [vmem:[%s7 + $0x1d8] sm:$0xff]
    %v3172 = vld [vmem:[%s7 + $0x1e0] sm:$0xff]
    %v3173 = vld [vmem:[%s7 + $0x1e8] sm:$0xff]
    %v3174 = vld [vmem:[%s7 + $0x1f0] sm:$0xff]
    %v3175 = vld [vmem:[%s7 + $0x1f8] sm:$0xff]
    %v3176 = vld [vmem:[%s7 + $0x200] sm:$0xff]
    %v3177 = vld [vmem:[%s7 + $0x208] sm:$0xff]
    %v3178 = vld [vmem:[%s7 + $0x210] sm:$0xff]
    %v3179 = vld [vmem:[%s7 + $0x218] sm:$0xff]
    %v3180 = vld [vmem:[%s7 + $0x220] sm:$0xff]
    %v3181 = vld [vmem:[%s7 + $0x228] sm:$0xff]
    %v3182 = vld [vmem:[%s7 + $0x230] sm:$0xff]
    %v3183 = vld [vmem:[%s7 + $0x238] sm:$0xff]
    %v3184 = vld [vmem:[%s7 + $0x240] sm:$0xff]
    %v3185 = vld [vmem:[%s7 + $0x248] sm:$0xff]
    %v3186 = vld [vmem:[%s7 + $0x250] sm:$0xff]
    %v3187 = vld [vmem:[%s7 + $0x258] sm:$0xff]
    %v3188 = vld [vmem:[%s7 + $0x260] sm:$0xff]
    %v3189 = vld [vmem:[%s7 + $0x268] sm:$0xff]
    %v3190 = vld [vmem:[%s7 + $0x270] sm:$0xff]
    %v3191 = vld [vmem:[%s7 + $0x278] sm:$0xff]
    %v3192 = vld [vmem:[%s7 + $0x280] sm:$0xff]
    %v3193 = vld [vmem:[%s7 + $0x288] sm:$0xff]
    %v3194 = vld [vmem:[%s7 + $0x290] sm:$0xff]
    %v3195 = vld [vmem:[%s7 + $0x298] sm:$0xff]
    %v3196 = vld [vmem:[%s7 + $0x2a0] sm:$0xff]
    %v3197 = vld [vmem:[%s7 + $0x2a8] sm:$0xff]
    %v3198 = vld [vmem:[%s7 + $0x2b0] sm:$0xff]
    %v3199 = vld [vmem:[%s7 + $0x2b8] sm:$0xff]
    %v3200 = vld [vmem:[%s7 + $0x2c0] sm:$0xff]
    %v3201 = vld [vmem:[%s7 + $0x2c8] sm:$0xff]
    %v3202 = vld [vmem:[%s7 + $0x2d0] sm:$0xff]
    %v3203 = vld [vmem:[%s7 + $0x2d8] sm:$0xff]
    %v3204 = vld [vmem:[%s7 + $0x2e0] sm:$0xff]
    %v3205 = vld [vmem:[%s7 + $0x2e8] sm:$0xff]
    %v3206 = vld [vmem:[%s7 + $0x2f0] sm:$0xff]
    %v3207 = vld [vmem:[%s7 + $0x2f8] sm:$0xff]
    %v3208 = vld [vmem:[%s7 + $0x300] sm:$0xff]
    %v3209 = vld [vmem:[%s7 + $0x308] sm:$0xff]
    %v3210 = vld [vmem:[%s7 + $0x310] sm:$0xff]
    %v3211 = vld [vmem:[%s7 + $0x318] sm:$0xff]
    %v3212 = vld [vmem:[%s7 + $0x320] sm:$0xff]
    %v3213 = vld [vmem:[%s7 + $0x328] sm:$0xff]
    %v3214 = vld [vmem:[%s7 + $0x330] sm:$0xff]
    %v3215 = vld [vmem:[%s7 + $0x338] sm:$0xff]
    %v3216 = vld [vmem:[%s7 + $0x340] sm:$0xff]
    %v3217 = vld [vmem:[%s7 + $0x348] sm:$0xff]
    %v3218 = vld [vmem:[%s7 + $0x350] sm:$0xff]
    %v3219 = vld [vmem:[%s7 + $0x358] sm:$0xff]
    %v3220 = vld [vmem:[%s7 + $0x360] sm:$0xff]
    %v3221 = vld [vmem:[%s7 + $0x368] sm:$0xff]
    %v3222 = vld [vmem:[%s7 + $0x370] sm:$0xff]
    %v3223 = vld [vmem:[%s7 + $0x378] sm:$0xff]
    %v3224 = vld [vmem:[%s7 + $0x380] sm:$0xff]
    %v3225 = vld [vmem:[%s7 + $0x388] sm:$0xff]
    %v3226 = vld [vmem:[%s7 + $0x390] sm:$0xff]
    %v3227 = vld [vmem:[%s7 + $0x398] sm:$0xff]
    %v3228 = vld [vmem:[%s7 + $0x3a0] sm:$0xff]
    %v3229 = vld [vmem:[%s7 + $0x3a8] sm:$0xff]
    %v3230 = vld [vmem:[%s7 + $0x3b0] sm:$0xff]
    %v3231 = vld [vmem:[%s7 + $0x3b8] sm:$0xff]
    %v3232 = vld [vmem:[%s7 + $0x3c0] sm:$0xff]
    %v3233 = vld [vmem:[%s7 + $0x3c8] sm:$0xff]
    %v3234 = vld [vmem:[%s7 + $0x3d0] sm:$0xff]
    %v3235 = vld [vmem:[%s7 + $0x3d8] sm:$0xff]
    %v3236 = vld [vmem:[%s7 + $0x3e0] sm:$0xff]
    %v3237 = vld [vmem:[%s7 + $0x3e8] sm:$0xff]
    %v3238 = vld [vmem:[%s7 + $0x3f0] sm:$0xff]
    %v3239 = vld [vmem:[%s7 + $0x3f8] sm:$0xff]
    %v3240 = vld [vmem:[%s7 + $0x400] sm:$0xff]
    %v3241 = vld [vmem:[%s7 + $0x408] sm:$0xff]
    %v3242 = vld [vmem:[%s7 + $0x410] sm:$0xff]
    %v3243 = vld [vmem:[%s7 + $0x418] sm:$0xff]
    %v3244 = vld [vmem:[%s7 + $0x420] sm:$0xff]
    %v3245 = vld [vmem:[%s7 + $0x428] sm:$0xff]
    %v3246 = vld [vmem:[%s7 + $0x430] sm:$0xff]
    %v3247 = vld [vmem:[%s7 + $0x438] sm:$0xff]
    %v3248 = vld [vmem:[%s7 + $0x440] sm:$0xff]
    %v3249 = vld [vmem:[%s7 + $0x448] sm:$0xff]
    %v3250 = vld [vmem:[%s7 + $0x450] sm:$0xff]
    %v3251 = vld [vmem:[%s7 + $0x458] sm:$0xff]
    %v3252 = vld [vmem:[%s7 + $0x460] sm:$0xff]
    %v3253 = vld [vmem:[%s7 + $0x468] sm:$0xff]
    %v3254 = vld [vmem:[%s7 + $0x470] sm:$0xff]
    %v3255 = vld [vmem:[%s7 + $0x478] sm:$0xff]
    %v3256 = vld [vmem:[%s7 + $0x480] sm:$0xff]
    %v3257 = vld [vmem:[%s7 + $0x488] sm:$0xff]
    %v3258 = vld [vmem:[%s7 + $0x490] sm:$0xff]
    %v3259 = vld [vmem:[%s7 + $0x498] sm:$0xff]
    %v3260 = vld [vmem:[%s7 + $0x4a0] sm:$0xff]
    %v3261 = vld [vmem:[%s7 + $0x4a8] sm:$0xff]
    %v3262 = vld [vmem:[%s7 + $0x4b0] sm:$0xff]
    %v3263 = vld [vmem:[%s7 + $0x4b8] sm:$0xff]
    %v3264 = vld [vmem:[%s7 + $0x4c0] sm:$0xff]
    %v3265 = vld [vmem:[%s7 + $0x4c8] sm:$0xff]
    %v3266 = vld [vmem:[%s7 + $0x4d0] sm:$0xff]
    %v3267 = vld [vmem:[%s7 + $0x4d8] sm:$0xff]
    %v3268 = vld [vmem:[%s7 + $0x4e0] sm:$0xff]
    %v3269 = vld [vmem:[%s7 + $0x4e8] sm:$0xff]
    %v3270 = vld [vmem:[%s7 + $0x4f0] sm:$0xff]
    %v3271 = vld [vmem:[%s7 + $0x4f8] sm:$0xff]
    %v3272 = vld [vmem:[%s7 + $0x500] sm:$0xff]
    %v3273 = vld [vmem:[%s7 + $0x508] sm:$0xff]
    %v3274 = vld [vmem:[%s7 + $0x510] sm:$0xff]
    %v3275 = vld [vmem:[%s7 + $0x518] sm:$0xff]
    %v3276 = vld [vmem:[%s7 + $0x520] sm:$0xff]
    %v3277 = vld [vmem:[%s7 + $0x528] sm:$0xff]
    %v3278 = vld [vmem:[%s7 + $0x530] sm:$0xff]
    %v3279 = vld [vmem:[%s7 + $0x538] sm:$0xff]
    %v3280 = vld [vmem:[%s7 + $0x540] sm:$0xff]
    %v3281 = vld [vmem:[%s7 + $0x548] sm:$0xff]
    %v3282 = vld [vmem:[%s7 + $0x550] sm:$0xff]
    %v3283 = vld [vmem:[%s7 + $0x558] sm:$0xff]
    %v3284 = vld [vmem:[%s7 + $0x560] sm:$0xff]
    %v3285 = vld [vmem:[%s7 + $0x568] sm:$0xff]
    %v3286 = vld [vmem:[%s7 + $0x570] sm:$0xff]
    %v3287 = vld [vmem:[%s7 + $0x578] sm:$0xff]
    %v3288 = vld [vmem:[%s7 + $0x580] sm:$0xff]
    %v3289 = vld [vmem:[%s7 + $0x588] sm:$0xff]
    %v3290 = vld [vmem:[%s7 + $0x590] sm:$0xff]
    %v3291 = vld [vmem:[%s7 + $0x598] sm:$0xff]
    %v3292 = vld [vmem:[%s7 + $0x5a0] sm:$0xff]
    %v3293 = vld [vmem:[%s7 + $0x5a8] sm:$0xff]
    %v3294 = vld [vmem:[%s7 + $0x5b0] sm:$0xff]
    %v3295 = vld [vmem:[%s7 + $0x5b8] sm:$0xff]
    %v3296 = vld [vmem:[%s7 + $0x5c0] sm:$0xff]
    %v3297 = vld [vmem:[%s7 + $0x5c8] sm:$0xff]
    %v3298 = vld [vmem:[%s7 + $0x5d0] sm:$0xff]
    %v3299 = vld [vmem:[%s7 + $0x5d8] sm:$0xff]
    %v3300 = vld [vmem:[%s7 + $0x5e0] sm:$0xff]
    %v3301 = vld [vmem:[%s7 + $0x5e8] sm:$0xff]
    %v3302 = vld [vmem:[%s7 + $0x5f0] sm:$0xff]
    %v3303 = vld [vmem:[%s7 + $0x5f8] sm:$0xff]
    %v3304 = vld [vmem:[%s7 + $0x600] sm:$0xff]
    %v3305 = vld [vmem:[%s7 + $0x608] sm:$0xff]
    %v3306 = vld [vmem:[%s7 + $0x610] sm:$0xff]
    %v3307 = vld [vmem:[%s7 + $0x618] sm:$0xff]
    %v3308 = vld [vmem:[%s7 + $0x620] sm:$0xff]
    %v3309 = vld [vmem:[%s7 + $0x628] sm:$0xff]
    %v3310 = vld [vmem:[%s7 + $0x630] sm:$0xff]
    %v3311 = vld [vmem:[%s7 + $0x638] sm:$0xff]
    %v3312 = vld [vmem:[%s7 + $0x640] sm:$0xff]
    %v3313 = vld [vmem:[%s7 + $0x648] sm:$0xff]
    %v3314 = vld [vmem:[%s7 + $0x650] sm:$0xff]
    %v3315 = vld [vmem:[%s7 + $0x658] sm:$0xff]
    %v3316 = vld [vmem:[%s7 + $0x660] sm:$0xff]
    %v3317 = vld [vmem:[%s7 + $0x668] sm:$0xff]
    %v3318 = vld [vmem:[%s7 + $0x670] sm:$0xff]
    %v3319 = vld [vmem:[%s7 + $0x678] sm:$0xff]
    %v3320 = vld [vmem:[%s7 + $0x680] sm:$0xff]
    %v3321 = vld [vmem:[%s7 + $0x688] sm:$0xff]
    %v3322 = vld [vmem:[%s7 + $0x690] sm:$0xff]
    %v3323 = vld [vmem:[%s7 + $0x698] sm:$0xff]
    %v3324 = vld [vmem:[%s7 + $0x6a0] sm:$0xff]
    %v3325 = vld [vmem:[%s7 + $0x6a8] sm:$0xff]
    %v3326 = vld [vmem:[%s7 + $0x6b0] sm:$0xff]
    %v3327 = vld [vmem:[%s7 + $0x6b8] sm:$0xff]
    %v3328 = vld [vmem:[%s7 + $0x6c0] sm:$0xff]
    %v3329 = vld [vmem:[%s7 + $0x6c8] sm:$0xff]
    %v3330 = vld [vmem:[%s7 + $0x6d0] sm:$0xff]
    %v3331 = vld [vmem:[%s7 + $0x6d8] sm:$0xff]
    %v3332 = vld [vmem:[%s7 + $0x6e0] sm:$0xff]
    %v3333 = vld [vmem:[%s7 + $0x6e8] sm:$0xff]
    %v3334 = vld [vmem:[%s7 + $0x6f0] sm:$0xff]
    %v3335 = vld [vmem:[%s7 + $0x6f8] sm:$0xff]
    %v3336 = vld [vmem:[%s7 + $0x700] sm:$0xff]
    %v3337 = vld [vmem:[%s7 + $0x708] sm:$0xff]
    %v3338 = vld [vmem:[%s7 + $0x710] sm:$0xff]
    %v3339 = vld [vmem:[%s7 + $0x718] sm:$0xff]
    %v3340 = vld [vmem:[%s7 + $0x720] sm:$0xff]
    %v3341 = vld [vmem:[%s7 + $0x728] sm:$0xff]
    %v3342 = vld [vmem:[%s7 + $0x730] sm:$0xff]
    %v3343 = vld [vmem:[%s7 + $0x738] sm:$0xff]
    %v3344 = vld [vmem:[%s7 + $0x740] sm:$0xff]
    %v3345 = vld [vmem:[%s7 + $0x748] sm:$0xff]
    %v3346 = vld [vmem:[%s7 + $0x750] sm:$0xff]
    %v3347 = vld [vmem:[%s7 + $0x758] sm:$0xff]
    %v3348 = vld [vmem:[%s7 + $0x760] sm:$0xff]
    %v3349 = vld [vmem:[%s7 + $0x768] sm:$0xff]
    %v3350 = vld [vmem:[%s7 + $0x770] sm:$0xff]
    %v3351 = vld [vmem:[%s7 + $0x778] sm:$0xff]
    %v3352 = vld [vmem:[%s7 + $0x780] sm:$0xff]
    %v3353 = vld [vmem:[%s7 + $0x788] sm:$0xff]
    %v3354 = vld [vmem:[%s7 + $0x790] sm:$0xff]
    %v3355 = vld [vmem:[%s7 + $0x798] sm:$0xff]
    %v3356 = vld [vmem:[%s7 + $0x7a0] sm:$0xff]
    %v3357 = vld [vmem:[%s7 + $0x7a8] sm:$0xff]
    %v3358 = vld [vmem:[%s7 + $0x7b0] sm:$0xff]
    %v3359 = vld [vmem:[%s7 + $0x7b8] sm:$0xff]
    %v3360 = vld [vmem:[%s7 + $0x7c0] sm:$0xff]
    %v3361 = vld [vmem:[%s7 + $0x7c8] sm:$0xff]
    %v3362 = vld [vmem:[%s8] sm:$0x1]
    %v3364 = vlaneseq
    %v3365 = vshrl.u32 %v3364, 7
    %v3366 = vsub.s32 0, %v3365
    %v3367 = vrot.slane %v3362, %v3366
    %vm3369 = vcmask 654336
    %v3371 = vsel %vm3369, %v3111, 0
    %3373 = vmatprep.subr.mxu0 0.0
    %3374 = vmatpush1.msra.mxu0 %v3127
    %3375 = vmatprep.subr.mxu0 0.0
    %3376 = vmatpush1.msra.mxu0 %v3126
    %3377 = vmatprep.subr.mxu0 0.0
    %3378 = vmatpush1.msra.mxu0 %v3125
    %3379 = vmatprep.subr.mxu0 0.0
    %3380 = vmatpush1.msra.mxu0 %v3124
    %3381 = vmatprep.subr.mxu0 0.0
    %3382 = vmatpush1.msra.mxu0 %v3123
    %3383 = vmatprep.subr.mxu0 0.0
    %3384 = vmatpush1.msra.mxu0 %v3122
    %3385 = vmatprep.subr.mxu0 0.0
    %3386 = vmatpush1.msra.mxu0 %v3121
    %3387 = vmatprep.subr.mxu0 0.0
    %3388 = vmatpush1.msra.mxu0 %v3120
    %3389 = vmatprep.subr.mxu0 0.0
    %3390 = vmatpush1.msra.mxu0 %v3119
    %3391 = vmatprep.subr.mxu0 0.0
    %3392 = vmatpush1.msra.mxu0 %v3118
    %3393 = vmatprep.subr.mxu0 0.0
    %3394 = vmatpush1.msra.mxu0 %v3117
    %3395 = vmatprep.subr.mxu0 0.0
    %3396 = vmatpush1.msra.mxu0 %v3116
    %3397 = vmatprep.subr.mxu0 0.0
    %3398 = vmatpush1.msra.mxu0 %v3115
    %3399 = vmatprep.subr.mxu0 0.0
    %3400 = vmatpush1.msra.mxu0 %v3114
    %3401 = vmatprep.subr.mxu0 0.0
    %3402 = vmatpush1.msra.mxu0 %v3113
    %3403 = vmatprep.subr.mxu0 0.0
    %3404 = vmatpush1.msra.mxu0 %v3112
    %3405 = vmatprep.subr.mxu0 0.0
    %3406 = vmatpush2.msra.mxu0 %v3143
    %3407 = vmatprep.subr.mxu0 0.0
    %3408 = vmatpush2.msra.mxu0 %v3142
    %3409 = vmatprep.subr.mxu0 0.0
    %3410 = vmatpush2.msra.mxu0 %v3141
    %3411 = vmatprep.subr.mxu0 0.0
    %3412 = vmatpush2.msra.mxu0 %v3140
    %3413 = vmatprep.subr.mxu0 0.0
    %3414 = vmatpush2.msra.mxu0 %v3139
    %3415 = vmatprep.subr.mxu0 0.0
    %3416 = vmatpush2.msra.mxu0 %v3138
    %3417 = vmatprep.subr.mxu0 0.0
    %3418 = vmatpush2.msra.mxu0 %v3137
    %3419 = vmatprep.subr.mxu0 0.0
    %3420 = vmatpush2.msra.mxu0 %v3136
    %3421 = vmatprep.subr.mxu0 0.0
    %3422 = vmatpush2.msra.mxu0 %v3135
    %3423 = vmatprep.subr.mxu0 0.0
    %3424 = vmatpush2.msra.mxu0 %v3134
    %3425 = vmatprep.subr.mxu0 0.0
    %3426 = vmatpush2.msra.mxu0 %v3133
    %3427 = vmatprep.subr.mxu0 0.0
    %3428 = vmatpush2.msra.mxu0 %v3132
    %3429 = vmatprep.subr.mxu0 0.0
    %3430 = vmatpush2.msra.mxu0 %v3131
    %3431 = vmatprep.subr.mxu0 0.0
    %3432 = vmatpush2.msra.mxu0 %v3130
    %3433 = vmatprep.subr.mxu0 0.0
    %3434 = vmatpush2.msra.mxu0 %v3129
    %3435 = vmatprep.subr.mxu0 0.0
    %3436 = vmatpush2.msra.mxu0 %v3128
    %3437 = vmatprep.mubr.f32.mxu0 %v3097
    %3438 = vmatmul.mubr.f32.gmra.mxu0 %v3096
    %v3439 = vpop.f32.mrf.mxu0
    %v3440 = vadd.f32 %v3367, %v3439
    %v3441 = vpop.f32.mrf.mxu0
    %3442 = vdwg.mxu0
    %3443 = vmatprep.subr.mxu0 0.0
    %3444 = vmatpush1.msra.mxu0 %v3159
    %3445 = vmatprep.subr.mxu0 0.0
    %3446 = vmatpush1.msra.mxu0 %v3158
    %3447 = vmatprep.subr.mxu0 0.0
    %3448 = vmatpush1.msra.mxu0 %v3157
    %3449 = vmatprep.subr.mxu0 0.0
    %3450 = vmatpush1.msra.mxu0 %v3156
    %3451 = vmatprep.subr.mxu0 0.0
    %3452 = vmatpush1.msra.mxu0 %v3155
    %3453 = vmatprep.subr.mxu0 0.0
    %3454 = vmatpush1.msra.mxu0 %v3154
    %3455 = vmatprep.subr.mxu0 0.0
    %3456 = vmatpush1.msra.mxu0 %v3153
    %3457 = vmatprep.subr.mxu0 0.0
    %3458 = vmatpush1.msra.mxu0 %v3152
    %3459 = vmatprep.subr.mxu0 0.0
    %3460 = vmatpush1.msra.mxu0 %v3151
    %3461 = vmatprep.subr.mxu0 0.0
    %3462 = vmatpush1.msra.mxu0 %v3150
    %3463 = vmatprep.subr.mxu0 0.0
    %3464 = vmatpush1.msra.mxu0 %v3149
    %3465 = vmatprep.subr.mxu0 0.0
    %3466 = vmatpush1.msra.mxu0 %v3148
    %3467 = vmatprep.subr.mxu0 0.0
    %3468 = vmatpush1.msra.mxu0 %v3147
    %3469 = vmatprep.subr.mxu0 0.0
    %3470 = vmatpush1.msra.mxu0 %v3146
    %3471 = vmatprep.subr.mxu0 0.0
    %3472 = vmatpush1.msra.mxu0 %v3145
    %3473 = vmatprep.subr.mxu0 0.0
    %3474 = vmatpush1.msra.mxu0 %v3144
    %3475 = vmatprep.subr.mxu0 0.0
    %3476 = vmatpush2.msra.mxu0 %v3175
    %3477 = vmatprep.subr.mxu0 0.0
    %3478 = vmatpush2.msra.mxu0 %v3174
    %3479 = vmatprep.subr.mxu0 0.0
    %3480 = vmatpush2.msra.mxu0 %v3173
    %3481 = vmatprep.subr.mxu0 0.0
    %3482 = vmatpush2.msra.mxu0 %v3172
    %3483 = vmatprep.subr.mxu0 0.0
    %3484 = vmatpush2.msra.mxu0 %v3171
    %3485 = vmatprep.subr.mxu0 0.0
    %3486 = vmatpush2.msra.mxu0 %v3170
    %3487 = vmatprep.subr.mxu0 0.0
    %3488 = vmatpush2.msra.mxu0 %v3169
    %3489 = vmatprep.subr.mxu0 0.0
    %3490 = vmatpush2.msra.mxu0 %v3168
    %3491 = vmatprep.subr.mxu0 0.0
    %3492 = vmatpush2.msra.mxu0 %v3167
    %3493 = vmatprep.subr.mxu0 0.0
    %3494 = vmatpush2.msra.mxu0 %v3166
    %3495 = vmatprep.subr.mxu0 0.0
    %3496 = vmatpush2.msra.mxu0 %v3165
    %3497 = vmatprep.subr.mxu0 0.0
    %3498 = vmatpush2.msra.mxu0 %v3164
    %3499 = vmatprep.subr.mxu0 0.0
    %3500 = vmatpush2.msra.mxu0 %v3163
    %3501 = vmatprep.subr.mxu0 0.0
    %3502 = vmatpush2.msra.mxu0 %v3162
    %3503 = vmatprep.subr.mxu0 0.0
    %3504 = vmatpush2.msra.mxu0 %v3161
    %3505 = vmatprep.subr.mxu0 0.0
    %3506 = vmatpush2.msra.mxu0 %v3160
    %3507 = vmatprep.mubr.f32.mxu0 %v3099
    %3508 = vmatmul.mubr.f32.gmra.mxu0 %v3098
    %v3509 = vpop.f32.mrf.mxu0
    %v3510 = vadd.f32 %v3440, %v3509
    %v3511 = vpop.f32.mrf.mxu0
    %3512 = vdwg.mxu0
    %3513 = vmatprep.subr.mxu0 0.0
    %3514 = vmatpush1.msra.mxu0 %v3191
    %3515 = vmatprep.subr.mxu0 0.0
    %3516 = vmatpush1.msra.mxu0 %v3190
    %3517 = vmatprep.subr.mxu0 0.0
    %3518 = vmatpush1.msra.mxu0 %v3189
    %3519 = vmatprep.subr.mxu0 0.0
    %3520 = vmatpush1.msra.mxu0 %v3188
    %3521 = vmatprep.subr.mxu0 0.0
    %3522 = vmatpush1.msra.mxu0 %v3187
    %3523 = vmatprep.subr.mxu0 0.0
    %3524 = vmatpush1.msra.mxu0 %v3186
    %3525 = vmatprep.subr.mxu0 0.0
    %3526 = vmatpush1.msra.mxu0 %v3185
    %3527 = vmatprep.subr.mxu0 0.0
    %3528 = vmatpush1.msra.mxu0 %v3184
    %3529 = vmatprep.subr.mxu0 0.0
    %3530 = vmatpush1.msra.mxu0 %v3183
    %3531 = vmatprep.subr.mxu0 0.0
    %3532 = vmatpush1.msra.mxu0 %v3182
    %3533 = vmatprep.subr.mxu0 0.0
    %3534 = vmatpush1.msra.mxu0 %v3181
    %3535 = vmatprep.subr.mxu0 0.0
    %3536 = vmatpush1.msra.mxu0 %v3180
    %3537 = vmatprep.subr.mxu0 0.0
    %3538 = vmatpush1.msra.mxu0 %v3179
    %3539 = vmatprep.subr.mxu0 0.0
    %3540 = vmatpush1.msra.mxu0 %v3178
    %3541 = vmatprep.subr.mxu0 0.0
    %3542 = vmatpush1.msra.mxu0 %v3177
    %3543 = vmatprep.subr.mxu0 0.0
    %3544 = vmatpush1.msra.mxu0 %v3176
    %3545 = vmatprep.subr.mxu0 0.0
    %3546 = vmatpush2.msra.mxu0 %v3207
    %3547 = vmatprep.subr.mxu0 0.0
    %3548 = vmatpush2.msra.mxu0 %v3206
    %3549 = vmatprep.subr.mxu0 0.0
    %3550 = vmatpush2.msra.mxu0 %v3205
    %3551 = vmatprep.subr.mxu0 0.0
    %3552 = vmatpush2.msra.mxu0 %v3204
    %3553 = vmatprep.subr.mxu0 0.0
    %3554 = vmatpush2.msra.mxu0 %v3203
    %3555 = vmatprep.subr.mxu0 0.0
    %3556 = vmatpush2.msra.mxu0 %v3202
    %3557 = vmatprep.subr.mxu0 0.0
    %3558 = vmatpush2.msra.mxu0 %v3201
    %3559 = vmatprep.subr.mxu0 0.0
    %3560 = vmatpush2.msra.mxu0 %v3200
    %3561 = vmatprep.subr.mxu0 0.0
    %3562 = vmatpush2.msra.mxu0 %v3199
    %3563 = vmatprep.subr.mxu0 0.0
    %3564 = vmatpush2.msra.mxu0 %v3198
    %3565 = vmatprep.subr.mxu0 0.0
    %3566 = vmatpush2.msra.mxu0 %v3197
    %3567 = vmatprep.subr.mxu0 0.0
    %3568 = vmatpush2.msra.mxu0 %v3196
    %3569 = vmatprep.subr.mxu0 0.0
    %3570 = vmatpush2.msra.mxu0 %v3195
    %3571 = vmatprep.subr.mxu0 0.0
    %3572 = vmatpush2.msra.mxu0 %v3194
    %3573 = vmatprep.subr.mxu0 0.0
    %3574 = vmatpush2.msra.mxu0 %v3193
    %3575 = vmatprep.subr.mxu0 0.0
    %3576 = vmatpush2.msra.mxu0 %v3192
    %3577 = vmatprep.mubr.f32.mxu0 %v3101
    %3578 = vmatmul.mubr.f32.gmra.mxu0 %v3100
    %v3579 = vpop.f32.mrf.mxu0
    %v3580 = vadd.f32 %v3510, %v3579
    %v3581 = vpop.f32.mrf.mxu0
    %3582 = vdwg.mxu0
    %3583 = vmatprep.subr.mxu0 0.0
    %3584 = vmatpush1.msra.mxu0 %v3223
    %3585 = vmatprep.subr.mxu0 0.0
    %3586 = vmatpush1.msra.mxu0 %v3222
    %3587 = vmatprep.subr.mxu0 0.0
    %3588 = vmatpush1.msra.mxu0 %v3221
    %3589 = vmatprep.subr.mxu0 0.0
    %3590 = vmatpush1.msra.mxu0 %v3220
    %3591 = vmatprep.subr.mxu0 0.0
    %3592 = vmatpush1.msra.mxu0 %v3219
    %3593 = vmatprep.subr.mxu0 0.0
    %3594 = vmatpush1.msra.mxu0 %v3218
    %3595 = vmatprep.subr.mxu0 0.0
    %3596 = vmatpush1.msra.mxu0 %v3217
    %3597 = vmatprep.subr.mxu0 0.0
    %3598 = vmatpush1.msra.mxu0 %v3216
    %3599 = vmatprep.subr.mxu0 0.0
    %3600 = vmatpush1.msra.mxu0 %v3215
    %3601 = vmatprep.subr.mxu0 0.0
    %3602 = vmatpush1.msra.mxu0 %v3214
    %3603 = vmatprep.subr.mxu0 0.0
    %3604 = vmatpush1.msra.mxu0 %v3213
    %3605 = vmatprep.subr.mxu0 0.0
    %3606 = vmatpush1.msra.mxu0 %v3212
    %3607 = vmatprep.subr.mxu0 0.0
    %3608 = vmatpush1.msra.mxu0 %v3211
    %3609 = vmatprep.subr.mxu0 0.0
    %3610 = vmatpush1.msra.mxu0 %v3210
    %3611 = vmatprep.subr.mxu0 0.0
    %3612 = vmatpush1.msra.mxu0 %v3209
    %3613 = vmatprep.subr.mxu0 0.0
    %3614 = vmatpush1.msra.mxu0 %v3208
    %3615 = vmatprep.subr.mxu0 0.0
    %3616 = vmatpush2.msra.mxu0 %v3239
    %3617 = vmatprep.subr.mxu0 0.0
    %3618 = vmatpush2.msra.mxu0 %v3238
    %3619 = vmatprep.subr.mxu0 0.0
    %3620 = vmatpush2.msra.mxu0 %v3237
    %3621 = vmatprep.subr.mxu0 0.0
    %3622 = vmatpush2.msra.mxu0 %v3236
    %3623 = vmatprep.subr.mxu0 0.0
    %3624 = vmatpush2.msra.mxu0 %v3235
    %3625 = vmatprep.subr.mxu0 0.0
    %3626 = vmatpush2.msra.mxu0 %v3234
    %3627 = vmatprep.subr.mxu0 0.0
    %3628 = vmatpush2.msra.mxu0 %v3233
    %3629 = vmatprep.subr.mxu0 0.0
    %3630 = vmatpush2.msra.mxu0 %v3232
    %3631 = vmatprep.subr.mxu0 0.0
    %3632 = vmatpush2.msra.mxu0 %v3231
    %3633 = vmatprep.subr.mxu0 0.0
    %3634 = vmatpush2.msra.mxu0 %v3230
    %3635 = vmatprep.subr.mxu0 0.0
    %3636 = vmatpush2.msra.mxu0 %v3229
    %3637 = vmatprep.subr.mxu0 0.0
    %3638 = vmatpush2.msra.mxu0 %v3228
    %3639 = vmatprep.subr.mxu0 0.0
    %3640 = vmatpush2.msra.mxu0 %v3227
    %3641 = vmatprep.subr.mxu0 0.0
    %3642 = vmatpush2.msra.mxu0 %v3226
    %3643 = vmatprep.subr.mxu0 0.0
    %3644 = vmatpush2.msra.mxu0 %v3225
    %3645 = vmatprep.subr.mxu0 0.0
    %3646 = vmatpush2.msra.mxu0 %v3224
    %3647 = vmatprep.mubr.f32.mxu0 %v3103
    %3648 = vmatmul.mubr.f32.gmra.mxu0 %v3102
    %v3649 = vpop.f32.mrf.mxu0
    %v3650 = vadd.f32 %v3580, %v3649
    %v3651 = vpop.f32.mrf.mxu0
    %3652 = vdwg.mxu0
    %3653 = vmatprep.subr.mxu0 0.0
    %3654 = vmatpush1.msra.mxu0 %v3255
    %3655 = vmatprep.subr.mxu0 0.0
    %3656 = vmatpush1.msra.mxu0 %v3254
    %3657 = vmatprep.subr.mxu0 0.0
    %3658 = vmatpush1.msra.mxu0 %v3253
    %3659 = vmatprep.subr.mxu0 0.0
    %3660 = vmatpush1.msra.mxu0 %v3252
    %3661 = vmatprep.subr.mxu0 0.0
    %3662 = vmatpush1.msra.mxu0 %v3251
    %3663 = vmatprep.subr.mxu0 0.0
    %3664 = vmatpush1.msra.mxu0 %v3250
    %3665 = vmatprep.subr.mxu0 0.0
    %3666 = vmatpush1.msra.mxu0 %v3249
    %3667 = vmatprep.subr.mxu0 0.0
    %3668 = vmatpush1.msra.mxu0 %v3248
    %3669 = vmatprep.subr.mxu0 0.0
    %3670 = vmatpush1.msra.mxu0 %v3247
    %3671 = vmatprep.subr.mxu0 0.0
    %3672 = vmatpush1.msra.mxu0 %v3246
    %3673 = vmatprep.subr.mxu0 0.0
    %3674 = vmatpush1.msra.mxu0 %v3245
    %3675 = vmatprep.subr.mxu0 0.0
    %3676 = vmatpush1.msra.mxu0 %v3244
    %3677 = vmatprep.subr.mxu0 0.0
    %3678 = vmatpush1.msra.mxu0 %v3243
    %3679 = vmatprep.subr.mxu0 0.0
    %3680 = vmatpush1.msra.mxu0 %v3242
    %3681 = vmatprep.subr.mxu0 0.0
    %3682 = vmatpush1.msra.mxu0 %v3241
    %3683 = vmatprep.subr.mxu0 0.0
    %3684 = vmatpush1.msra.mxu0 %v3240
    %3685 = vmatprep.subr.mxu0 0.0
    %3686 = vmatpush2.msra.mxu0 %v3271
    %3687 = vmatprep.subr.mxu0 0.0
    %3688 = vmatpush2.msra.mxu0 %v3270
    %3689 = vmatprep.subr.mxu0 0.0
    %3690 = vmatpush2.msra.mxu0 %v3269
    %3691 = vmatprep.subr.mxu0 0.0
    %3692 = vmatpush2.msra.mxu0 %v3268
    %3693 = vmatprep.subr.mxu0 0.0
    %3694 = vmatpush2.msra.mxu0 %v3267
    %3695 = vmatprep.subr.mxu0 0.0
    %3696 = vmatpush2.msra.mxu0 %v3266
    %3697 = vmatprep.subr.mxu0 0.0
    %3698 = vmatpush2.msra.mxu0 %v3265
    %3699 = vmatprep.subr.mxu0 0.0
    %3700 = vmatpush2.msra.mxu0 %v3264
    %3701 = vmatprep.subr.mxu0 0.0
    %3702 = vmatpush2.msra.mxu0 %v3263
    %3703 = vmatprep.subr.mxu0 0.0
    %3704 = vmatpush2.msra.mxu0 %v3262
    %3705 = vmatprep.subr.mxu0 0.0
    %3706 = vmatpush2.msra.mxu0 %v3261
    %3707 = vmatprep.subr.mxu0 0.0
    %3708 = vmatpush2.msra.mxu0 %v3260
    %3709 = vmatprep.subr.mxu0 0.0
    %3710 = vmatpush2.msra.mxu0 %v3259
    %3711 = vmatprep.subr.mxu0 0.0
    %3712 = vmatpush2.msra.mxu0 %v3258
    %3713 = vmatprep.subr.mxu0 0.0
    %3714 = vmatpush2.msra.mxu0 %v3257
    %3715 = vmatprep.subr.mxu0 0.0
    %3716 = vmatpush2.msra.mxu0 %v3256
    %3717 = vmatprep.mubr.f32.mxu0 %v3105
    %3718 = vmatmul.mubr.f32.gmra.mxu0 %v3104
    %v3719 = vpop.f32.mrf.mxu0
    %v3720 = vadd.f32 %v3650, %v3719
    %v3721 = vpop.f32.mrf.mxu0
    %3722 = vdwg.mxu0
    %3723 = vmatprep.subr.mxu0 0.0
    %3724 = vmatpush1.msra.mxu0 %v3287
    %3725 = vmatprep.subr.mxu0 0.0
    %3726 = vmatpush1.msra.mxu0 %v3286
    %3727 = vmatprep.subr.mxu0 0.0
    %3728 = vmatpush1.msra.mxu0 %v3285
    %3729 = vmatprep.subr.mxu0 0.0
    %3730 = vmatpush1.msra.mxu0 %v3284
    %3731 = vmatprep.subr.mxu0 0.0
    %3732 = vmatpush1.msra.mxu0 %v3283
    %3733 = vmatprep.subr.mxu0 0.0
    %3734 = vmatpush1.msra.mxu0 %v3282
    %3735 = vmatprep.subr.mxu0 0.0
    %3736 = vmatpush1.msra.mxu0 %v3281
    %3737 = vmatprep.subr.mxu0 0.0
    %3738 = vmatpush1.msra.mxu0 %v3280
    %3739 = vmatprep.subr.mxu0 0.0
    %3740 = vmatpush1.msra.mxu0 %v3279
    %3741 = vmatprep.subr.mxu0 0.0
    %3742 = vmatpush1.msra.mxu0 %v3278
    %3743 = vmatprep.subr.mxu0 0.0
    %3744 = vmatpush1.msra.mxu0 %v3277
    %3745 = vmatprep.subr.mxu0 0.0
    %3746 = vmatpush1.msra.mxu0 %v3276
    %3747 = vmatprep.subr.mxu0 0.0
    %3748 = vmatpush1.msra.mxu0 %v3275
    %3749 = vmatprep.subr.mxu0 0.0
    %3750 = vmatpush1.msra.mxu0 %v3274
    %3751 = vmatprep.subr.mxu0 0.0
    %3752 = vmatpush1.msra.mxu0 %v3273
    %3753 = vmatprep.subr.mxu0 0.0
    %3754 = vmatpush1.msra.mxu0 %v3272
    %3755 = vmatprep.subr.mxu0 0.0
    %3756 = vmatpush2.msra.mxu0 %v3303
    %3757 = vmatprep.subr.mxu0 0.0
    %3758 = vmatpush2.msra.mxu0 %v3302
    %3759 = vmatprep.subr.mxu0 0.0
    %3760 = vmatpush2.msra.mxu0 %v3301
    %3761 = vmatprep.subr.mxu0 0.0
    %3762 = vmatpush2.msra.mxu0 %v3300
    %3763 = vmatprep.subr.mxu0 0.0
    %3764 = vmatpush2.msra.mxu0 %v3299
    %3765 = vmatprep.subr.mxu0 0.0
    %3766 = vmatpush2.msra.mxu0 %v3298
    %3767 = vmatprep.subr.mxu0 0.0
    %3768 = vmatpush2.msra.mxu0 %v3297
    %3769 = vmatprep.subr.mxu0 0.0
    %3770 = vmatpush2.msra.mxu0 %v3296
    %3771 = vmatprep.subr.mxu0 0.0
    %3772 = vmatpush2.msra.mxu0 %v3295
    %3773 = vmatprep.subr.mxu0 0.0
    %3774 = vmatpush2.msra.mxu0 %v3294
    %3775 = vmatprep.subr.mxu0 0.0
    %3776 = vmatpush2.msra.mxu0 %v3293
    %3777 = vmatprep.subr.mxu0 0.0
    %3778 = vmatpush2.msra.mxu0 %v3292
    %3779 = vmatprep.subr.mxu0 0.0
    %3780 = vmatpush2.msra.mxu0 %v3291
    %3781 = vmatprep.subr.mxu0 0.0
    %3782 = vmatpush2.msra.mxu0 %v3290
    %3783 = vmatprep.subr.mxu0 0.0
    %3784 = vmatpush2.msra.mxu0 %v3289
    %3785 = vmatprep.subr.mxu0 0.0
    %3786 = vmatpush2.msra.mxu0 %v3288
    %3787 = vmatprep.mubr.f32.mxu0 %v3107
    %3788 = vmatmul.mubr.f32.gmra.mxu0 %v3106
    %v3789 = vpop.f32.mrf.mxu0
    %v3790 = vadd.f32 %v3720, %v3789
    %v3791 = vpop.f32.mrf.mxu0
    %3792 = vdwg.mxu0
    %3793 = vmatprep.subr.mxu0 0.0
    %3794 = vmatpush1.msra.mxu0 %v3319
    %3795 = vmatprep.subr.mxu0 0.0
    %3796 = vmatpush1.msra.mxu0 %v3318
    %3797 = vmatprep.subr.mxu0 0.0
    %3798 = vmatpush1.msra.mxu0 %v3317
    %3799 = vmatprep.subr.mxu0 0.0
    %3800 = vmatpush1.msra.mxu0 %v3316
    %3801 = vmatprep.subr.mxu0 0.0
    %3802 = vmatpush1.msra.mxu0 %v3315
    %3803 = vmatprep.subr.mxu0 0.0
    %3804 = vmatpush1.msra.mxu0 %v3314
    %3805 = vmatprep.subr.mxu0 0.0
    %3806 = vmatpush1.msra.mxu0 %v3313
    %3807 = vmatprep.subr.mxu0 0.0
    %3808 = vmatpush1.msra.mxu0 %v3312
    %3809 = vmatprep.subr.mxu0 0.0
    %3810 = vmatpush1.msra.mxu0 %v3311
    %3811 = vmatprep.subr.mxu0 0.0
    %3812 = vmatpush1.msra.mxu0 %v3310
    %3813 = vmatprep.subr.mxu0 0.0
    %3814 = vmatpush1.msra.mxu0 %v3309
    %3815 = vmatprep.subr.mxu0 0.0
    %3816 = vmatpush1.msra.mxu0 %v3308
    %3817 = vmatprep.subr.mxu0 0.0
    %3818 = vmatpush1.msra.mxu0 %v3307
    %3819 = vmatprep.subr.mxu0 0.0
    %3820 = vmatpush1.msra.mxu0 %v3306
    %3821 = vmatprep.subr.mxu0 0.0
    %3822 = vmatpush1.msra.mxu0 %v3305
    %3823 = vmatprep.subr.mxu0 0.0
    %3824 = vmatpush1.msra.mxu0 %v3304
    %3825 = vmatprep.subr.mxu0 0.0
    %3826 = vmatpush2.msra.mxu0 %v3335
    %3827 = vmatprep.subr.mxu0 0.0
    %3828 = vmatpush2.msra.mxu0 %v3334
    %3829 = vmatprep.subr.mxu0 0.0
    %3830 = vmatpush2.msra.mxu0 %v3333
    %3831 = vmatprep.subr.mxu0 0.0
    %3832 = vmatpush2.msra.mxu0 %v3332
    %3833 = vmatprep.subr.mxu0 0.0
    %3834 = vmatpush2.msra.mxu0 %v3331
    %3835 = vmatprep.subr.mxu0 0.0
    %3836 = vmatpush2.msra.mxu0 %v3330
    %3837 = vmatprep.subr.mxu0 0.0
    %3838 = vmatpush2.msra.mxu0 %v3329
    %3839 = vmatprep.subr.mxu0 0.0
    %3840 = vmatpush2.msra.mxu0 %v3328
    %3841 = vmatprep.subr.mxu0 0.0
    %3842 = vmatpush2.msra.mxu0 %v3327
    %3843 = vmatprep.subr.mxu0 0.0
    %3844 = vmatpush2.msra.mxu0 %v3326
    %3845 = vmatprep.subr.mxu0 0.0
    %3846 = vmatpush2.msra.mxu0 %v3325
    %3847 = vmatprep.subr.mxu0 0.0
    %3848 = vmatpush2.msra.mxu0 %v3324
    %3849 = vmatprep.subr.mxu0 0.0
    %3850 = vmatpush2.msra.mxu0 %v3323
    %3851 = vmatprep.subr.mxu0 0.0
    %3852 = vmatpush2.msra.mxu0 %v3322
    %3853 = vmatprep.subr.mxu0 0.0
    %3854 = vmatpush2.msra.mxu0 %v3321
    %3855 = vmatprep.subr.mxu0 0.0
    %3856 = vmatpush2.msra.mxu0 %v3320
    %3857 = vmatprep.mubr.f32.mxu0 %v3109
    %3858 = vmatmul.mubr.f32.gmra.mxu0 %v3108
    %v3859 = vpop.f32.mrf.mxu0
    %v3860 = vadd.f32 %v3790, %v3859
    %v3861 = vpop.f32.mrf.mxu0
    %3862 = vdwg.mxu0
    %3863 = vmatprep.subr.mxu0 0.0
    %3864 = vmatpush1.msra.mxu0 %v3351
    %3865 = vmatprep.subr.mxu0 0.0
    %3866 = vmatpush1.msra.mxu0 %v3350
    %3867 = vmatprep.subr.mxu0 0.0
    %3868 = vmatpush1.msra.mxu0 %v3349
    %3869 = vmatprep.subr.mxu0 0.0
    %3870 = vmatpush1.msra.mxu0 %v3348
    %3871 = vmatprep.subr.mxu0 0.0
    %3872 = vmatpush1.msra.mxu0 %v3347
    %3873 = vmatprep.subr.mxu0 0.0
    %3874 = vmatpush1.msra.mxu0 %v3346
    %3875 = vmatprep.subr.mxu0 0.0
    %3876 = vmatpush1.msra.mxu0 %v3345
    %3877 = vmatprep.subr.mxu0 0.0
    %3878 = vmatpush1.msra.mxu0 %v3344
    %3879 = vmatprep.subr.mxu0 0.0
    %3880 = vmatpush1.msra.mxu0 %v3343
    %3881 = vmatprep.subr.mxu0 0.0
    %3882 = vmatpush1.msra.mxu0 %v3342
    %3883 = vmatprep.subr.mxu0 0.0
    %3884 = vmatpush1.msra.mxu0 %v3341
    %3885 = vmatprep.subr.mxu0 0.0
    %3886 = vmatpush1.msra.mxu0 %v3340
    %3887 = vmatprep.subr.mxu0 0.0
    %3888 = vmatpush1.msra.mxu0 %v3339
    %3889 = vmatprep.subr.mxu0 0.0
    %3890 = vmatpush1.msra.mxu0 %v3338
    %3891 = vmatprep.subr.mxu0 0.0
    %3892 = vmatpush1.msra.mxu0 %v3337
    %3893 = vmatprep.subr.mxu0 0.0
    %3894 = vmatpush1.msra.mxu0 %v3336
    %3895 = vmatprep.subr.mxu0 0.0
    %3896 = vmatpush2.msra.mxu0 0.0
    %3897 = vmatprep.subr.mxu0 0.0
    %3898 = vmatpush2.msra.mxu0 0.0
    %3899 = vmatprep.subr.mxu0 0.0
    %3900 = vmatpush2.msra.mxu0 0.0
    %3901 = vmatprep.subr.mxu0 0.0
    %3902 = vmatpush2.msra.mxu0 0.0
    %3903 = vmatprep.subr.mxu0 0.0
    %3904 = vmatpush2.msra.mxu0 0.0
    %3905 = vmatprep.subr.mxu0 0.0
    %3906 = vmatpush2.msra.mxu0 0.0
    %3907 = vmatprep.subr.mxu0 0.0
    %3908 = vmatpush2.msra.mxu0 %v3361
    %3909 = vmatprep.subr.mxu0 0.0
    %3910 = vmatpush2.msra.mxu0 %v3360
    %3911 = vmatprep.subr.mxu0 0.0
    %3912 = vmatpush2.msra.mxu0 %v3359
    %3913 = vmatprep.subr.mxu0 0.0
    %3914 = vmatpush2.msra.mxu0 %v3358
    %3915 = vmatprep.subr.mxu0 0.0
    %3916 = vmatpush2.msra.mxu0 %v3357
    %3917 = vmatprep.subr.mxu0 0.0
    %3918 = vmatpush2.msra.mxu0 %v3356
    %3919 = vmatprep.subr.mxu0 0.0
    %3920 = vmatpush2.msra.mxu0 %v3355
    %3921 = vmatprep.subr.mxu0 0.0
    %3922 = vmatpush2.msra.mxu0 %v3354
    %3923 = vmatprep.subr.mxu0 0.0
    %3924 = vmatpush2.msra.mxu0 %v3353
    %3925 = vmatprep.subr.mxu0 0.0
    %3926 = vmatpush2.msra.mxu0 %v3352
    %3927 = vmatprep.mubr.f32.mxu0 %v3371
    %3928 = vmatmul.mubr.f32.gmra.mxu0 %v3110
    %v3929 = vpop.f32.mrf.mxu0
    %v3930 = vadd.f32 %v3860, %v3929
    %v3931 = vpop.f32.mrf.mxu0
    %3932 = vdwg.mxu0
    %vm3933 = vcmask 261120
    %3934 = vst.msk [vmem:[#allocation2] sm:$0xff] %vm3933, %v3930
    // Predicated region
    $region38: #{tpu_custom_call.1} parent=1 // pred_check
      _
    $region39: #{tpu_custom_call.1} parent=1 // pred_check_branch
      %3936 = sbr.rel (0) target = $region41
    $region40: #{tpu_custom_call.1} parent=1 // pred_region
      %s3938 = ssub.s32 128, 128
      %3939 = vsyncadd [#allocation3], %s3938
      %s3941 = sshll.u32 [#allocation2], 4
      %s3942 = int_to_ptr.vmem [resolvable:$true] %s3941
      %3944 = dma.vmem_to_hbm [thread:$0]  %s3942, 128, %s9, [#allocation3]
    $region41: #{tpu_custom_call.1} parent=1 // pred_fallthru
      _
    // Predicated region
    $region42: #{tpu_custom_call.1} parent=1 // pred_check
      _
    $region43: #{tpu_custom_call.1} parent=1 // pred_check_branch
      %3946 = sbr.rel (0) target = $region45
    $region44: #{tpu_custom_call.1} parent=1 // pred_region
      %3947 = dma.done [#allocation3], 128
    $region45: #{tpu_custom_call.1} parent=1 // pred_fallthru
      _
    %3948 = vsyncpa [#allocation3], 1

</llo_original>
